<compile_context>
chip_gen: v5e
topology: v5e:2x2
jax: 0.10.0
libtpu: 0.0.40
codegen_flags: <defaults>
</compile_context>

<pallas_src>
import functools

import jax
import jax.numpy as jnp
from jax import lax
from jax.experimental import pallas as pl
from jax.experimental.pallas import tpu as pltpu

EPS = 1e-5  # PyTorch BatchNorm2d default eps


# --------------------------------------------------------------------------
# Fused Conv + BatchNorm (+ residual) (+ ReLU) kernel
# --------------------------------------------------------------------------
def _conv_bn_kernel(*refs, ntaps, relu, has_res, inv_m):
    """refs = [a_0..a_{T-1} (M,Cin), w (T,Cin,Cn), gamma (1,Cn), beta (1,Cn),
               (res (M,Cn)), out (M,Cn)]"""
    a_refs = refs[:ntaps]
    w_ref = refs[ntaps]
    gamma_ref = refs[ntaps + 1]
    beta_ref = refs[ntaps + 2]
    res_ref = refs[ntaps + 3] if has_res else None
    o_ref = refs[-1]

    # Convolution as a sum of per-tap matmuls, accumulated in f32 (MXU).
    acc = jnp.dot(a_refs[0][...], w_ref[0], preferred_element_type=jnp.float32)
    for t in range(1, ntaps):
        acc = acc + jnp.dot(a_refs[t][...], w_ref[t],
                            preferred_element_type=jnp.float32)

    # Training-mode BatchNorm: per-channel batch mean / biased variance,
    # computed on the centered values (no E[x^2]-mean^2 cancellation).
    mean = jnp.sum(acc, axis=0, keepdims=True) * inv_m
    centered = acc - mean
    var = jnp.sum(centered * centered, axis=0, keepdims=True) * inv_m
    scale = gamma_ref[...] * lax.rsqrt(var + EPS)

    out = centered * scale + beta_ref[...]
    if has_res:
        out = out + res_ref[...]
    if relu:
        out = jnp.maximum(out, 0.0)
    o_ref[...] = out


def conv_bn(x, w_packed, gamma, beta, stride, relu, residual=None):
    """Conv2d(bias=False) + BatchNorm2d(train) [+ residual] [+ ReLU].

    x: NHWC float32, w_packed: (T, Cin, Cout) where T = KH*KW (9 or 1),
    gamma/beta: (1, Cout) float32, residual: NHWC float32 or None."""
    T, Cin, Cout = w_packed.shape
    kh = kw = 3 if T == 9 else 1
    pad = 1 if T == 9 else 0

    N, H, W, _ = x.shape
    Ho = (H + 2 * pad - kh) // stride + 1
    Wo = (W + 2 * pad - kw) // stride + 1
    M = N * Ho * Wo

    xp = jnp.pad(x, ((0, 0), (pad, pad), (pad, pad), (0, 0))) if pad else x
    # Shifted "tap" views (im2col without the 9x concat); cast to the MXU
    # operand dtype (bf16 where the weights were packed as bf16).
    taps = []
    for i in range(kh):
        for j in range(kw):
            s = xp[:, i:i + stride * (Ho - 1) + 1:stride,
                   j:j + stride * (Wo - 1) + 1:stride, :]
            taps.append(s.reshape(M, Cin).astype(w_packed.dtype))

    # Split output channels into 2 "parallel" blocks for wide layers so a
    # v7x megacore can use both TensorCores (Cout/2 stays a multiple of 128).
    ns = 2 if Cout >= 256 else 1
    Cn = Cout // ns

    tap_spec = pl.BlockSpec((M, Cin), lambda j: (0, 0))
    in_specs = [tap_spec] * T + [
        pl.BlockSpec((T, Cin, Cn), lambda j: (0, 0, j)),
        pl.BlockSpec((1, Cn), lambda j: (0, j)),
        pl.BlockSpec((1, Cn), lambda j: (0, j)),
    ]
    args = taps + [w_packed, gamma, beta]
    has_res = residual is not None
    if has_res:
        in_specs.append(pl.BlockSpec((M, Cn), lambda j: (0, j)))
        args.append(residual.reshape(M, Cout))

    kernel = functools.partial(_conv_bn_kernel, ntaps=T, relu=relu,
                               has_res=has_res, inv_m=1.0 / M)
    out = pl.pallas_call(
        kernel,
        out_shape=jax.ShapeDtypeStruct((M, Cout), jnp.float32),
        grid_spec=pltpu.PrefetchScalarGridSpec(
            num_scalar_prefetch=0,
            grid=(ns,),
            in_specs=in_specs,
            out_specs=pl.BlockSpec((M, Cn), lambda j: (0, j)),
        ),
        compiler_params=pltpu.CompilerParams(
            dimension_semantics=("parallel",),
        ),
    )(*args)
    return out.reshape(N, Ho, Wo, Cout)


# --------------------------------------------------------------------------
# MaxPool2d(kernel=3, stride=2, padding=1) — one max-of-9 kernel, lane-dense
# --------------------------------------------------------------------------
def _max9_kernel(*refs):
    o_ref = refs[-1]
    m = refs[0][...]
    for r in refs[1:-1]:
        m = jnp.maximum(m, r[...])
    o_ref[...] = m


def maxpool_3x3_s2(x):
    N, H, W, C = x.shape
    Ho = (H + 2 - 3) // 2 + 1
    Wo = (W + 2 - 3) // 2 + 1
    xp = jnp.pad(x, ((0, 0), (1, 1), (1, 1), (0, 0)), constant_values=-jnp.inf)

    total = N * Ho * Wo * C
    lanes = 128 if total % 128 == 0 else C   # lane-dense store when possible
    rows = total // lanes
    slices = []
    for i in range(3):
        for j in range(3):
            s = xp[:, i:i + 2 * (Ho - 1) + 1:2, j:j + 2 * (Wo - 1) + 1:2, :]
            slices.append(s.reshape(rows, lanes))

    spec = pl.BlockSpec((rows, lanes), lambda i: (0, 0))
    out = pl.pallas_call(
        _max9_kernel,
        out_shape=jax.ShapeDtypeStruct((rows, lanes), jnp.float32),
        grid_spec=pltpu.PrefetchScalarGridSpec(
            num_scalar_prefetch=0,
            grid=(1,),
            in_specs=[spec] * 9,
            out_specs=spec,
        ),
        compiler_params=pltpu.CompilerParams(dimension_semantics=("arbitrary",)),
    )(*slices)
    return out.reshape(N, Ho, Wo, C)


# --------------------------------------------------------------------------
# Final FC: matmul + bias
# --------------------------------------------------------------------------
def _fc_kernel(a_ref, b_ref, bias_ref, o_ref):
    o_ref[...] = (
        jnp.dot(a_ref[...], b_ref[...], preferred_element_type=jnp.float32)
        + bias_ref[...]
    )


def fc(a, b, bias):
    M, K = a.shape
    _, Nc = b.shape
    return pl.pallas_call(
        _fc_kernel,
        out_shape=jax.ShapeDtypeStruct((M, Nc), jnp.float32),
        grid_spec=pltpu.PrefetchScalarGridSpec(
            num_scalar_prefetch=0,
            grid=(1,),
            in_specs=[
                pl.BlockSpec((M, K), lambda i: (0, 0)),
                pl.BlockSpec((K, Nc), lambda i: (0, 0)),
                pl.BlockSpec((1, Nc), lambda i: (0, 0)),
            ],
            out_specs=pl.BlockSpec((M, Nc), lambda i: (0, 0)),
        ),
        compiler_params=pltpu.CompilerParams(dimension_semantics=("arbitrary",)),
    )(a, b, bias)


# --------------------------------------------------------------------------
# Network: blocks and forward
# --------------------------------------------------------------------------
def basic_block(x, p):
    stride = p["stride"]
    h = conv_bn(x, p["conv1"], p["bn1_g"], p["bn1_b"], stride, relu=True)
    if "conv_sc" in p:
        sc = conv_bn(x, p["conv_sc"], p["bnsc_g"], p["bnsc_b"], stride, relu=False)
    else:
        sc = x
    # out = relu(bn2(conv2(h)) + shortcut)   (BN stats computed before the add)
    return conv_bn(h, p["conv2"], p["bn2_g"], p["bn2_b"], 1, relu=True,
                   residual=sc)


def resnet18_forward(params, x_nchw):
    x = jnp.transpose(x_nchw, (0, 2, 3, 1)).astype(jnp.float32)  # NCHW -> NHWC
    x = conv_bn(x, params["conv1"], params["bn1_g"], params["bn1_b"], 1, relu=True)
    x = maxpool_3x3_s2(x)
    for blocks in params["layers"]:
        for p in blocks:
            x = basic_block(x, p)
    # AdaptiveAvgPool2d((1,1)): spatial is 1x1 for a 16x16 input -> trivial mean,
    # kept as plain-JAX glue.
    feat = jnp.mean(x, axis=(1, 2))  # (N, 512)
    return fc(feat, params["fc_w"], params["fc_b"])


# --------------------------------------------------------------------------
# Deterministic parameter init (PyTorch layout) + one-time packing for kernels
# --------------------------------------------------------------------------
def _init_conv(key, cout, cin, k):
    fan_in = cin * k * k
    std = (2.0 / fan_in) ** 0.5
    return std * jax.random.normal(key, (cout, cin, k, k), jnp.float32)


def _init_bn(c):
    return (jnp.ones((c,), jnp.float32), jnp.zeros((c,), jnp.float32))


def _init_block(key, cin, cout, stride):
    k1, k2, k3 = jax.random.split(key, 3)
    p = {
        "conv1": _init_conv(k1, cout, cin, 3),
        "bn1": _init_bn(cout),
        "conv2": _init_conv(k2, cout, cout, 3),
        "bn2": _init_bn(cout),
        "stride": stride,
    }
    if stride != 1 or cin != cout:
        p["conv_sc"] = _init_conv(k3, cout, cin, 1)
        p["bn_sc"] = _init_bn(cout)
    return p


def init_resnet18(key, num_channels=3, num_classes=10):
    keys = jax.random.split(key, 12)
    params = {
        "conv1": _init_conv(keys[0], 64, num_channels, 3),
        "bn1": _init_bn(64),
    }
    cfg = [(64, 1), (128, 2), (256, 2), (512, 2)]
    cin = 64
    ki = 1
    layers = []
    for cout, stride in cfg:
        blocks = []
        for s in (stride, 1):
            blocks.append(_init_block(keys[ki], cin, cout, s))
            ki += 1
            cin = cout
        layers.append(blocks)
    params["layers"] = layers
    params["fc_w"] = (1.0 / 512 ** 0.5) * jax.random.normal(
        keys[ki], (num_classes, 512), jnp.float32
    )
    params["fc_b"] = 0.01 * jax.random.normal(keys[ki + 1], (num_classes,), jnp.float32)
    return params


def _pack_conv(w):
    """(Cout,Cin,KH,KW) -> (KH*KW, Cin, Cout); bf16 when Cin is MXU-friendly."""
    cout, cin, kh, kw = w.shape
    wp = jnp.transpose(w, (2, 3, 1, 0)).reshape(kh * kw, cin, cout)
    dtype = jnp.bfloat16 if cin % 16 == 0 else jnp.float32
    return wp.astype(dtype)


def _pack_bn(bn):
    g, b = bn
    return g.reshape(1, -1).astype(jnp.float32), b.reshape(1, -1).astype(jnp.float32)


def pack_params(params):
    """One-time weight re-layout / bf16 cast so no transposes happen per forward."""
    packed = {"conv1": _pack_conv(params["conv1"])}
    packed["bn1_g"], packed["bn1_b"] = _pack_bn(params["bn1"])
    layers = []
    for blocks in params["layers"]:
        pb = []
        for p in blocks:
            q = {
                "stride": p["stride"],
                "conv1": _pack_conv(p["conv1"]),
                "conv2": _pack_conv(p["conv2"]),
            }
            q["bn1_g"], q["bn1_b"] = _pack_bn(p["bn1"])
            q["bn2_g"], q["bn2_b"] = _pack_bn(p["bn2"])
            if "conv_sc" in p:
                q["conv_sc"] = _pack_conv(p["conv_sc"])
                q["bnsc_g"], q["bnsc_b"] = _pack_bn(p["bn_sc"])
            pb.append(q)
        layers.append(pb)
    packed["layers"] = layers
    packed["fc_w"] = params["fc_w"].T.astype(jnp.float32)
    packed["fc_b"] = params["fc_b"].reshape(1, -1).astype(jnp.float32)
    return packed


if __name__ == "__main__":
    key = jax.random.PRNGKey(0)
    kp, kx = jax.random.split(key)
    params = init_resnet18(kp, num_channels=3, num_classes=10)
    packed = pack_params(params)  # weight re-layout done once, outside forward
    x = jax.random.normal(kx, (2, 3, 16, 16), jnp.float32)  # small NCHW input
    out = resnet18_forward(packed, x)
    out = jax.block_until_ready(out)
    assert out.shape == (2, 10) and out.dtype == jnp.float32
    print("KERNEL_OK")
</pallas_src>

<mosaic_0001>
module attributes {stable_mosaic.version = 11 : i64} {
  func.func @_conv_bn_kernel(%arg0: i32, %arg1: memref<512x3xf32, #tpu.memory_space<vmem>>, %arg2: memref<512x3xf32, #tpu.memory_space<vmem>>, %arg3: memref<512x3xf32, #tpu.memory_space<vmem>>, %arg4: memref<512x3xf32, #tpu.memory_space<vmem>>, %arg5: memref<512x3xf32, #tpu.memory_space<vmem>>, %arg6: memref<512x3xf32, #tpu.memory_space<vmem>>, %arg7: memref<512x3xf32, #tpu.memory_space<vmem>>, %arg8: memref<512x3xf32, #tpu.memory_space<vmem>>, %arg9: memref<512x3xf32, #tpu.memory_space<vmem>>, %arg10: memref<9x3x64xf32, #tpu.memory_space<vmem>>, %arg11: memref<1x64xf32, #tpu.memory_space<vmem>>, %arg12: memref<1x64xf32, #tpu.memory_space<vmem>>, %arg13: memref<512x64xf32, #tpu.memory_space<vmem>>) attributes {dimension_semantics = [#tpu.dimension_semantics<parallel>], iteration_bounds = array<i64: 1>, scalar_prefetch = 0 : i64, scratch_operands = 0 : i64, tpu.core_type = #tpu.core_type<tc>, window_params = [{pipeline_mode = #tpu.pipeline_mode<synchronous>, transform_indices = @transform_0, window_bounds = array<i64: 512, 3>}, {pipeline_mode = #tpu.pipeline_mode<synchronous>, transform_indices = @transform_1, window_bounds = array<i64: 512, 3>}, {pipeline_mode = #tpu.pipeline_mode<synchronous>, transform_indices = @transform_2, window_bounds = array<i64: 512, 3>}, {pipeline_mode = #tpu.pipeline_mode<synchronous>, transform_indices = @transform_3, window_bounds = array<i64: 512, 3>}, {pipeline_mode = #tpu.pipeline_mode<synchronous>, transform_indices = @transform_4, window_bounds = array<i64: 512, 3>}, {pipeline_mode = #tpu.pipeline_mode<synchronous>, transform_indices = @transform_5, window_bounds = array<i64: 512, 3>}, {pipeline_mode = #tpu.pipeline_mode<synchronous>, transform_indices = @transform_6, window_bounds = array<i64: 512, 3>}, {pipeline_mode = #tpu.pipeline_mode<synchronous>, transform_indices = @transform_7, window_bounds = array<i64: 512, 3>}, {pipeline_mode = #tpu.pipeline_mode<synchronous>, transform_indices = @transform_8, window_bounds = array<i64: 512, 3>}, {transform_indices = @transform_9, window_bounds = array<i64: 9, 3, 64>}, {transform_indices = @transform_10, window_bounds = array<i64: 1, 64>}, {transform_indices = @transform_11, window_bounds = array<i64: 1, 64>}, {transform_indices = @transform_12, window_bounds = array<i64: 512, 64>}]} {
    %c0 = arith.constant 0 : index
    %c0_0 = arith.constant 0 : index
    %0 = vector.load %arg1[%c0, %c0_0] : memref<512x3xf32, #tpu.memory_space<vmem>>, vector<512x3xf32>
    %c0_1 = arith.constant 0 : index
    %c0_2 = arith.constant 0 : index
    %c0_3 = arith.constant 0 : index
    %1 = vector.load %arg10[%c0_1, %c0_2, %c0_3] : memref<9x3x64xf32, #tpu.memory_space<vmem>>, vector<1x3x64xf32>
    %2 = vector.shape_cast %1 : vector<1x3x64xf32> to vector<3x64xf32>
    %cst = arith.constant dense<0.000000e+00> : vector<512x64xf32>
    %3 = tpu.matmul %0, %2, %cst {dimension_numbers = #tpu.dot_dimension_numbers<[1], [0], [0], [1], [0, 0, 1, 1], [], []>} : vector<512x3xf32>, vector<3x64xf32>, vector<512x64xf32> -> vector<512x64xf32>
    %c0_4 = arith.constant 0 : index
    %c0_5 = arith.constant 0 : index
    %4 = vector.load %arg2[%c0_4, %c0_5] : memref<512x3xf32, #tpu.memory_space<vmem>>, vector<512x3xf32>
    %c1 = arith.constant 1 : index
    %c0_6 = arith.constant 0 : index
    %c0_7 = arith.constant 0 : index
    %5 = vector.load %arg10[%c1, %c0_6, %c0_7] : memref<9x3x64xf32, #tpu.memory_space<vmem>>, vector<1x3x64xf32>
    %6 = vector.shape_cast %5 : vector<1x3x64xf32> to vector<3x64xf32>
    %cst_8 = arith.constant dense<0.000000e+00> : vector<512x64xf32>
    %7 = tpu.matmul %4, %6, %cst_8 {dimension_numbers = #tpu.dot_dimension_numbers<[1], [0], [0], [1], [0, 0, 1, 1], [], []>} : vector<512x3xf32>, vector<3x64xf32>, vector<512x64xf32> -> vector<512x64xf32>
    %8 = arith.addf %3, %7 : vector<512x64xf32>
    %c0_9 = arith.constant 0 : index
    %c0_10 = arith.constant 0 : index
    %9 = vector.load %arg3[%c0_9, %c0_10] : memref<512x3xf32, #tpu.memory_space<vmem>>, vector<512x3xf32>
    %c2 = arith.constant 2 : index
    %c0_11 = arith.constant 0 : index
    %c0_12 = arith.constant 0 : index
    %10 = vector.load %arg10[%c2, %c0_11, %c0_12] : memref<9x3x64xf32, #tpu.memory_space<vmem>>, vector<1x3x64xf32>
    %11 = vector.shape_cast %10 : vector<1x3x64xf32> to vector<3x64xf32>
    %cst_13 = arith.constant dense<0.000000e+00> : vector<512x64xf32>
    %12 = tpu.matmul %9, %11, %cst_13 {dimension_numbers = #tpu.dot_dimension_numbers<[1], [0], [0], [1], [0, 0, 1, 1], [], []>} : vector<512x3xf32>, vector<3x64xf32>, vector<512x64xf32> -> vector<512x64xf32>
    %13 = arith.addf %8, %12 : vector<512x64xf32>
    %c0_14 = arith.constant 0 : index
    %c0_15 = arith.constant 0 : index
    %14 = vector.load %arg4[%c0_14, %c0_15] : memref<512x3xf32, #tpu.memory_space<vmem>>, vector<512x3xf32>
    %c3 = arith.constant 3 : index
    %c0_16 = arith.constant 0 : index
    %c0_17 = arith.constant 0 : index
    %15 = vector.load %arg10[%c3, %c0_16, %c0_17] : memref<9x3x64xf32, #tpu.memory_space<vmem>>, vector<1x3x64xf32>
    %16 = vector.shape_cast %15 : vector<1x3x64xf32> to vector<3x64xf32>
    %cst_18 = arith.constant dense<0.000000e+00> : vector<512x64xf32>
    %17 = tpu.matmul %14, %16, %cst_18 {dimension_numbers = #tpu.dot_dimension_numbers<[1], [0], [0], [1], [0, 0, 1, 1], [], []>} : vector<512x3xf32>, vector<3x64xf32>, vector<512x64xf32> -> vector<512x64xf32>
    %18 = arith.addf %13, %17 : vector<512x64xf32>
    %c0_19 = arith.constant 0 : index
    %c0_20 = arith.constant 0 : index
    %19 = vector.load %arg5[%c0_19, %c0_20] : memref<512x3xf32, #tpu.memory_space<vmem>>, vector<512x3xf32>
    %c4 = arith.constant 4 : index
    %c0_21 = arith.constant 0 : index
    %c0_22 = arith.constant 0 : index
    %20 = vector.load %arg10[%c4, %c0_21, %c0_22] : memref<9x3x64xf32, #tpu.memory_space<vmem>>, vector<1x3x64xf32>
    %21 = vector.shape_cast %20 : vector<1x3x64xf32> to vector<3x64xf32>
    %cst_23 = arith.constant dense<0.000000e+00> : vector<512x64xf32>
    %22 = tpu.matmul %19, %21, %cst_23 {dimension_numbers = #tpu.dot_dimension_numbers<[1], [0], [0], [1], [0, 0, 1, 1], [], []>} : vector<512x3xf32>, vector<3x64xf32>, vector<512x64xf32> -> vector<512x64xf32>
    %23 = arith.addf %18, %22 : vector<512x64xf32>
    %c0_24 = arith.constant 0 : index
    %c0_25 = arith.constant 0 : index
    %24 = vector.load %arg6[%c0_24, %c0_25] : memref<512x3xf32, #tpu.memory_space<vmem>>, vector<512x3xf32>
    %c5 = arith.constant 5 : index
    %c0_26 = arith.constant 0 : index
    %c0_27 = arith.constant 0 : index
    %25 = vector.load %arg10[%c5, %c0_26, %c0_27] : memref<9x3x64xf32, #tpu.memory_space<vmem>>, vector<1x3x64xf32>
    %26 = vector.shape_cast %25 : vector<1x3x64xf32> to vector<3x64xf32>
    %cst_28 = arith.constant dense<0.000000e+00> : vector<512x64xf32>
    %27 = tpu.matmul %24, %26, %cst_28 {dimension_numbers = #tpu.dot_dimension_numbers<[1], [0], [0], [1], [0, 0, 1, 1], [], []>} : vector<512x3xf32>, vector<3x64xf32>, vector<512x64xf32> -> vector<512x64xf32>
    %28 = arith.addf %23, %27 : vector<512x64xf32>
    %c0_29 = arith.constant 0 : index
    %c0_30 = arith.constant 0 : index
    %29 = vector.load %arg7[%c0_29, %c0_30] : memref<512x3xf32, #tpu.memory_space<vmem>>, vector<512x3xf32>
    %c6 = arith.constant 6 : index
    %c0_31 = arith.constant 0 : index
    %c0_32 = arith.constant 0 : index
    %30 = vector.load %arg10[%c6, %c0_31, %c0_32] : memref<9x3x64xf32, #tpu.memory_space<vmem>>, vector<1x3x64xf32>
    %31 = vector.shape_cast %30 : vector<1x3x64xf32> to vector<3x64xf32>
    %cst_33 = arith.constant dense<0.000000e+00> : vector<512x64xf32>
    %32 = tpu.matmul %29, %31, %cst_33 {dimension_numbers = #tpu.dot_dimension_numbers<[1], [0], [0], [1], [0, 0, 1, 1], [], []>} : vector<512x3xf32>, vector<3x64xf32>, vector<512x64xf32> -> vector<512x64xf32>
    %33 = arith.addf %28, %32 : vector<512x64xf32>
    %c0_34 = arith.constant 0 : index
    %c0_35 = arith.constant 0 : index
    %34 = vector.load %arg8[%c0_34, %c0_35] : memref<512x3xf32, #tpu.memory_space<vmem>>, vector<512x3xf32>
    %c7 = arith.constant 7 : index
    %c0_36 = arith.constant 0 : index
    %c0_37 = arith.constant 0 : index
    %35 = vector.load %arg10[%c7, %c0_36, %c0_37] : memref<9x3x64xf32, #tpu.memory_space<vmem>>, vector<1x3x64xf32>
    %36 = vector.shape_cast %35 : vector<1x3x64xf32> to vector<3x64xf32>
    %cst_38 = arith.constant dense<0.000000e+00> : vector<512x64xf32>
    %37 = tpu.matmul %34, %36, %cst_38 {dimension_numbers = #tpu.dot_dimension_numbers<[1], [0], [0], [1], [0, 0, 1, 1], [], []>} : vector<512x3xf32>, vector<3x64xf32>, vector<512x64xf32> -> vector<512x64xf32>
    %38 = arith.addf %33, %37 : vector<512x64xf32>
    %c0_39 = arith.constant 0 : index
    %c0_40 = arith.constant 0 : index
    %39 = vector.load %arg9[%c0_39, %c0_40] : memref<512x3xf32, #tpu.memory_space<vmem>>, vector<512x3xf32>
    %c8 = arith.constant 8 : index
    %c0_41 = arith.constant 0 : index
    %c0_42 = arith.constant 0 : index
    %40 = vector.load %arg10[%c8, %c0_41, %c0_42] : memref<9x3x64xf32, #tpu.memory_space<vmem>>, vector<1x3x64xf32>
    %41 = vector.shape_cast %40 : vector<1x3x64xf32> to vector<3x64xf32>
    %cst_43 = arith.constant dense<0.000000e+00> : vector<512x64xf32>
    %42 = tpu.matmul %39, %41, %cst_43 {dimension_numbers = #tpu.dot_dimension_numbers<[1], [0], [0], [1], [0, 0, 1, 1], [], []>} : vector<512x3xf32>, vector<3x64xf32>, vector<512x64xf32> -> vector<512x64xf32>
    %43 = arith.addf %38, %42 : vector<512x64xf32>
    %cst_44 = arith.constant dense<0.000000e+00> : vector<64xf32>
    %44 = vector.multi_reduction <add>, %43, %cst_44 [0] : vector<512x64xf32> to vector<64xf32>
    %45 = vector.shape_cast %44 : vector<64xf32> to vector<1x64xf32>
    %cst_45 = arith.constant 0.001953125 : f32
    %46 = vector.broadcast %cst_45 : f32 to vector<1x64xf32>
    %47 = arith.mulf %45, %46 : vector<1x64xf32>
    %48 = vector.broadcast %47 : vector<1x64xf32> to vector<512x64xf32>
    %49 = arith.subf %43, %48 : vector<512x64xf32>
    %50 = arith.mulf %49, %49 : vector<512x64xf32>
    %cst_46 = arith.constant dense<0.000000e+00> : vector<64xf32>
    %51 = vector.multi_reduction <add>, %50, %cst_46 [0] : vector<512x64xf32> to vector<64xf32>
    %52 = vector.shape_cast %51 : vector<64xf32> to vector<1x64xf32>
    %cst_47 = arith.constant 0.001953125 : f32
    %53 = vector.broadcast %cst_47 : f32 to vector<1x64xf32>
    %54 = arith.mulf %52, %53 : vector<1x64xf32>
    %c0_48 = arith.constant 0 : index
    %c0_49 = arith.constant 0 : index
    %55 = vector.load %arg11[%c0_48, %c0_49] : memref<1x64xf32, #tpu.memory_space<vmem>>, vector<1x64xf32>
    %cst_50 = arith.constant 9.99999974E-6 : f32
    %56 = vector.broadcast %cst_50 : f32 to vector<1x64xf32>
    %57 = arith.addf %54, %56 : vector<1x64xf32>
    %58 = math.rsqrt %57 : vector<1x64xf32>
    %59 = arith.mulf %55, %58 : vector<1x64xf32>
    %60 = vector.broadcast %59 : vector<1x64xf32> to vector<512x64xf32>
    %61 = arith.mulf %49, %60 : vector<512x64xf32>
    %c0_51 = arith.constant 0 : index
    %c0_52 = arith.constant 0 : index
    %62 = vector.load %arg12[%c0_51, %c0_52] : memref<1x64xf32, #tpu.memory_space<vmem>>, vector<1x64xf32>
    %63 = vector.broadcast %62 : vector<1x64xf32> to vector<512x64xf32>
    %64 = arith.addf %61, %63 : vector<512x64xf32>
    %cst_53 = arith.constant 0.000000e+00 : f32
    %65 = vector.broadcast %cst_53 : f32 to vector<512x64xf32>
    %66 = arith.maximumf %64, %65 : vector<512x64xf32>
    %c0_54 = arith.constant 0 : index
    %c0_55 = arith.constant 0 : index
    %67 = vector.load %arg13[%c0_54, %c0_55] : memref<512x64xf32, #tpu.memory_space<vmem>>, vector<512x64xf32>
    tpu.vector_store %arg13[%c0_54, %c0_55], %66 {strides = array<i32>} : memref<512x64xf32, #tpu.memory_space<vmem>>, vector<512x64xf32>,
    return
  }
  func.func @transform_0(%arg0: i32) -> (i32, i32) {
    %c0_i32 = arith.constant 0 : i32
    %c0_i32_0 = arith.constant 0 : i32
    %c0_i32_1 = arith.constant 0 : i32
    return %c0_i32, %c0_i32_0 : i32, i32
  }
  func.func @transform_1(%arg0: i32) -> (i32, i32) {
    %c0_i32 = arith.constant 0 : i32
    %c0_i32_0 = arith.constant 0 : i32
    %c0_i32_1 = arith.constant 0 : i32
    return %c0_i32, %c0_i32_0 : i32, i32
  }
  func.func @transform_2(%arg0: i32) -> (i32, i32) {
    %c0_i32 = arith.constant 0 : i32
    %c0_i32_0 = arith.constant 0 : i32
    %c0_i32_1 = arith.constant 0 : i32
    return %c0_i32, %c0_i32_0 : i32, i32
  }
  func.func @transform_3(%arg0: i32) -> (i32, i32) {
    %c0_i32 = arith.constant 0 : i32
    %c0_i32_0 = arith.constant 0 : i32
    %c0_i32_1 = arith.constant 0 : i32
    return %c0_i32, %c0_i32_0 : i32, i32
  }
  func.func @transform_4(%arg0: i32) -> (i32, i32) {
    %c0_i32 = arith.constant 0 : i32
    %c0_i32_0 = arith.constant 0 : i32
    %c0_i32_1 = arith.constant 0 : i32
    return %c0_i32, %c0_i32_0 : i32, i32
  }
  func.func @transform_5(%arg0: i32) -> (i32, i32) {
    %c0_i32 = arith.constant 0 : i32
    %c0_i32_0 = arith.constant 0 : i32
    %c0_i32_1 = arith.constant 0 : i32
    return %c0_i32, %c0_i32_0 : i32, i32
  }
  func.func @transform_6(%arg0: i32) -> (i32, i32) {
    %c0_i32 = arith.constant 0 : i32
    %c0_i32_0 = arith.constant 0 : i32
    %c0_i32_1 = arith.constant 0 : i32
    return %c0_i32, %c0_i32_0 : i32, i32
  }
  func.func @transform_7(%arg0: i32) -> (i32, i32) {
    %c0_i32 = arith.constant 0 : i32
    %c0_i32_0 = arith.constant 0 : i32
    %c0_i32_1 = arith.constant 0 : i32
    return %c0_i32, %c0_i32_0 : i32, i32
  }
  func.func @transform_8(%arg0: i32) -> (i32, i32) {
    %c0_i32 = arith.constant 0 : i32
    %c0_i32_0 = arith.constant 0 : i32
    %c0_i32_1 = arith.constant 0 : i32
    return %c0_i32, %c0_i32_0 : i32, i32
  }
  func.func @transform_9(%arg0: i32) -> (i32, i32, i32) {
    %c0_i32 = arith.constant 0 : i32
    %c0_i32_0 = arith.constant 0 : i32
    %c0_i32_1 = arith.constant 0 : i32
    return %c0_i32, %c0_i32_0, %arg0 : i32, i32, i32
  }
  func.func @transform_10(%arg0: i32) -> (i32, i32) {
    %c0_i32 = arith.constant 0 : i32
    %c0_i32_0 = arith.constant 0 : i32
    return %c0_i32, %arg0 : i32, i32
  }
  func.func @transform_11(%arg0: i32) -> (i32, i32) {
    %c0_i32 = arith.constant 0 : i32
    %c0_i32_0 = arith.constant 0 : i32
    return %c0_i32, %arg0 : i32, i32
  }
  func.func @transform_12(%arg0: i32) -> (i32, i32) {
    %c0_i32 = arith.constant 0 : i32
    %c0_i32_0 = arith.constant 0 : i32
    return %c0_i32, %arg0 : i32, i32
  }
}

</mosaic_0001>

<llo_original>
// kernel: tpu_custom_call.1
$region0: #{tpu_custom_call.1}
  #allocation0 [shape = 'u32[]', space=smem, size = 0x4, offset = 0x4, fixed_abs, tag = 'smem constant byte address 0x4 - core index']
  #allocation1 [shape = 'u32[72,128]{1,0:T(1,128)}', space=vmem, size = 0x9000, scoped, tag = 'internal scratch']
  %s0 = inlined_call_operand.vmem [shape: f32[512,3], index: 0, kind: input, shape index: {}]
  %s1 = inlined_call_operand.vmem [shape: f32[512,3], index: 1, kind: input, shape index: {}]
  %s2 = inlined_call_operand.vmem [shape: f32[512,3], index: 2, kind: input, shape index: {}]
  %s3 = inlined_call_operand.vmem [shape: f32[512,3], index: 3, kind: input, shape index: {}]
  %s4 = inlined_call_operand.vmem [shape: f32[512,3], index: 4, kind: input, shape index: {}]
  %s5 = inlined_call_operand.vmem [shape: f32[512,3], index: 5, kind: input, shape index: {}]
  %s6 = inlined_call_operand.vmem [shape: f32[512,3], index: 6, kind: input, shape index: {}]
  %s7 = inlined_call_operand.vmem [shape: f32[512,3], index: 7, kind: input, shape index: {}]
  %s8 = inlined_call_operand.vmem [shape: f32[512,3], index: 8, kind: input, shape index: {}]
  %s9 = inlined_call_operand.vmem [shape: f32[9,3,64], index: 9, kind: input, shape index: {}]
  %s10 = inlined_call_operand.vmem [shape: f32[1,64], index: 10, kind: input, shape index: {}]
  %s11 = inlined_call_operand.vmem [shape: f32[1,64], index: 11, kind: input, shape index: {}]
  %s12 = inlined_call_operand.vmem [shape: f32[512,64], index: 12, kind: output, shape index: {}]
  %s13 = sld [smem:[#allocation0]]
  $region58: #{tpu_custom_call.1} parent=0
    _
  %s15 = ssub.s32 1, %s13
  %s16 = scalar_select 0, %s15, %s13
  // Predicated region
  $region2: #{tpu_custom_call.1} parent=0 // pred_check
    _
  $region3: #{tpu_custom_call.1} parent=0 // pred_check_branch
    %18 = sbr.rel (0) target = $region5
  $region4: #{tpu_custom_call.1} parent=0 // pred_region
    _
  $region5: #{tpu_custom_call.1} parent=0 // pred_fallthru
    _
  // Predicated region
  $region6: #{tpu_custom_call.1} parent=0 // pred_check
    _
  $region7: #{tpu_custom_call.1} parent=0 // pred_check_branch
    %20 = sbr.rel (0) target = $region9
  $region8: #{tpu_custom_call.1} parent=0 // pred_region
    _
  $region9: #{tpu_custom_call.1} parent=0 // pred_fallthru
    _
  // Predicated region
  $region10: #{tpu_custom_call.1} parent=0 // pred_check
    _
  $region11: #{tpu_custom_call.1} parent=0 // pred_check_branch
    %22 = sbr.rel (0) target = $region13
  $region12: #{tpu_custom_call.1} parent=0 // pred_region
    _
  $region13: #{tpu_custom_call.1} parent=0 // pred_fallthru
    _
  // Predicated region
  $region14: #{tpu_custom_call.1} parent=0 // pred_check
    _
  $region15: #{tpu_custom_call.1} parent=0 // pred_check_branch
    %24 = sbr.rel (0) target = $region17
  $region16: #{tpu_custom_call.1} parent=0 // pred_region
    _
  $region17: #{tpu_custom_call.1} parent=0 // pred_fallthru
    _
  // Predicated region
  $region18: #{tpu_custom_call.1} parent=0 // pred_check
    _
  $region19: #{tpu_custom_call.1} parent=0 // pred_check_branch
    %26 = sbr.rel (0) target = $region21
  $region20: #{tpu_custom_call.1} parent=0 // pred_region
    _
  $region21: #{tpu_custom_call.1} parent=0 // pred_fallthru
    _
  // Predicated region
  $region22: #{tpu_custom_call.1} parent=0 // pred_check
    _
  $region23: #{tpu_custom_call.1} parent=0 // pred_check_branch
    %28 = sbr.rel (0) target = $region25
  $region24: #{tpu_custom_call.1} parent=0 // pred_region
    _
  $region25: #{tpu_custom_call.1} parent=0 // pred_fallthru
    _
  // Predicated region
  $region26: #{tpu_custom_call.1} parent=0 // pred_check
    _
  $region27: #{tpu_custom_call.1} parent=0 // pred_check_branch
    %30 = sbr.rel (0) target = $region29
  $region28: #{tpu_custom_call.1} parent=0 // pred_region
    _
  $region29: #{tpu_custom_call.1} parent=0 // pred_fallthru
    _
  // Predicated region
  $region30: #{tpu_custom_call.1} parent=0 // pred_check
    _
  $region31: #{tpu_custom_call.1} parent=0 // pred_check_branch
    %32 = sbr.rel (0) target = $region33
  $region32: #{tpu_custom_call.1} parent=0 // pred_region
    _
  $region33: #{tpu_custom_call.1} parent=0 // pred_fallthru
    _
  // Predicated region
  $region34: #{tpu_custom_call.1} parent=0 // pred_check
    _
  $region35: #{tpu_custom_call.1} parent=0 // pred_check_branch
    %34 = sbr.rel (0) target = $region37
  $region36: #{tpu_custom_call.1} parent=0 // pred_region
    _
  $region37: #{tpu_custom_call.1} parent=0 // pred_fallthru
    _
  // Predicated region
  $region38: #{tpu_custom_call.1} parent=0 // pred_check
    _
  $region39: #{tpu_custom_call.1} parent=0 // pred_check_branch
    %36 = sbr.rel (0) target = $region41
  $region40: #{tpu_custom_call.1} parent=0 // pred_region
    _
  $region41: #{tpu_custom_call.1} parent=0 // pred_fallthru
    _
  // Predicated region
  $region42: #{tpu_custom_call.1} parent=0 // pred_check
    _
  $region43: #{tpu_custom_call.1} parent=0 // pred_check_branch
    %38 = sbr.rel (0) target = $region45
  $region44: #{tpu_custom_call.1} parent=0 // pred_region
    _
  $region45: #{tpu_custom_call.1} parent=0 // pred_fallthru
    _
  // Predicated region
  $region46: #{tpu_custom_call.1} parent=0 // pred_check
    _
  $region47: #{tpu_custom_call.1} parent=0 // pred_check_branch
    %40 = sbr.rel (0) target = $region49
  $region48: #{tpu_custom_call.1} parent=0 // pred_region
    _
  $region49: #{tpu_custom_call.1} parent=0 // pred_fallthru
    _
  %v41 = vld [vmem:[%s0] sm:$0xff]
  %v42 = vld [vmem:[%s0 + $0x8] sm:$0xff]
  %v43 = vld [vmem:[%s0 + $0x10] sm:$0xff]
  %v44 = vld [vmem:[%s0 + $0x18] sm:$0xff]
  %v45 = vld [vmem:[%s0 + $0x20] sm:$0xff]
  %v46 = vld [vmem:[%s0 + $0x28] sm:$0xff]
  %v47 = vld [vmem:[%s0 + $0x30] sm:$0xff]
  %v48 = vld [vmem:[%s0 + $0x38] sm:$0xff]
  %v49 = vld [vmem:[%s0 + $0x40] sm:$0xff]
  %v50 = vld [vmem:[%s0 + $0x48] sm:$0xff]
  %v51 = vld [vmem:[%s0 + $0x50] sm:$0xff]
  %v52 = vld [vmem:[%s0 + $0x58] sm:$0xff]
  %v53 = vld [vmem:[%s0 + $0x60] sm:$0xff]
  %v54 = vld [vmem:[%s0 + $0x68] sm:$0xff]
  %v55 = vld [vmem:[%s0 + $0x70] sm:$0xff]
  %v56 = vld [vmem:[%s0 + $0x78] sm:$0xff]
  %v57 = vld [vmem:[%s0 + $0x80] sm:$0xff]
  %v58 = vld [vmem:[%s0 + $0x88] sm:$0xff]
  %v59 = vld [vmem:[%s0 + $0x90] sm:$0xff]
  %v60 = vld [vmem:[%s0 + $0x98] sm:$0xff]
  %v61 = vld [vmem:[%s0 + $0xa0] sm:$0xff]
  %v62 = vld [vmem:[%s0 + $0xa8] sm:$0xff]
  %v63 = vld [vmem:[%s0 + $0xb0] sm:$0xff]
  %v64 = vld [vmem:[%s0 + $0xb8] sm:$0xff]
  %v65 = vld [vmem:[%s0 + $0xc0] sm:$0xff]
  %v66 = vld [vmem:[%s0 + $0xc8] sm:$0xff]
  %v67 = vld [vmem:[%s0 + $0xd0] sm:$0xff]
  %v68 = vld [vmem:[%s0 + $0xd8] sm:$0xff]
  %v69 = vld [vmem:[%s0 + $0xe0] sm:$0xff]
  %v70 = vld [vmem:[%s0 + $0xe8] sm:$0xff]
  %v71 = vld [vmem:[%s0 + $0xf0] sm:$0xff]
  %v72 = vld [vmem:[%s0 + $0xf8] sm:$0xff]
  %v73 = vld [vmem:[%s0 + $0x100] sm:$0xff]
  %v74 = vld [vmem:[%s0 + $0x108] sm:$0xff]
  %v75 = vld [vmem:[%s0 + $0x110] sm:$0xff]
  %v76 = vld [vmem:[%s0 + $0x118] sm:$0xff]
  %v77 = vld [vmem:[%s0 + $0x120] sm:$0xff]
  %v78 = vld [vmem:[%s0 + $0x128] sm:$0xff]
  %v79 = vld [vmem:[%s0 + $0x130] sm:$0xff]
  %v80 = vld [vmem:[%s0 + $0x138] sm:$0xff]
  %v81 = vld [vmem:[%s0 + $0x140] sm:$0xff]
  %v82 = vld [vmem:[%s0 + $0x148] sm:$0xff]
  %v83 = vld [vmem:[%s0 + $0x150] sm:$0xff]
  %v84 = vld [vmem:[%s0 + $0x158] sm:$0xff]
  %v85 = vld [vmem:[%s0 + $0x160] sm:$0xff]
  %v86 = vld [vmem:[%s0 + $0x168] sm:$0xff]
  %v87 = vld [vmem:[%s0 + $0x170] sm:$0xff]
  %v88 = vld [vmem:[%s0 + $0x178] sm:$0xff]
  %v89 = vld [vmem:[%s0 + $0x180] sm:$0xff]
  %v90 = vld [vmem:[%s0 + $0x188] sm:$0xff]
  %v91 = vld [vmem:[%s0 + $0x190] sm:$0xff]
  %v92 = vld [vmem:[%s0 + $0x198] sm:$0xff]
  %v93 = vld [vmem:[%s0 + $0x1a0] sm:$0xff]
  %v94 = vld [vmem:[%s0 + $0x1a8] sm:$0xff]
  %v95 = vld [vmem:[%s0 + $0x1b0] sm:$0xff]
  %v96 = vld [vmem:[%s0 + $0x1b8] sm:$0xff]
  %v97 = vld [vmem:[%s0 + $0x1c0] sm:$0xff]
  %v98 = vld [vmem:[%s0 + $0x1c8] sm:$0xff]
  %v99 = vld [vmem:[%s0 + $0x1d0] sm:$0xff]
  %v100 = vld [vmem:[%s0 + $0x1d8] sm:$0xff]
  %v101 = vld [vmem:[%s0 + $0x1e0] sm:$0xff]
  %v102 = vld [vmem:[%s0 + $0x1e8] sm:$0xff]
  %v103 = vld [vmem:[%s0 + $0x1f0] sm:$0xff]
  %v104 = vld [vmem:[%s0 + $0x1f8] sm:$0xff]
  %v105 = vld [vmem:[%s9] sm:$0x7]
  %v106 = vld [vmem:[%s1] sm:$0xff]
  %v107 = vld [vmem:[%s1 + $0x8] sm:$0xff]
  %v108 = vld [vmem:[%s1 + $0x10] sm:$0xff]
  %v109 = vld [vmem:[%s1 + $0x18] sm:$0xff]
  %v110 = vld [vmem:[%s1 + $0x20] sm:$0xff]
  %v111 = vld [vmem:[%s1 + $0x28] sm:$0xff]
  %v112 = vld [vmem:[%s1 + $0x30] sm:$0xff]
  %v113 = vld [vmem:[%s1 + $0x38] sm:$0xff]
  %v114 = vld [vmem:[%s1 + $0x40] sm:$0xff]
  %v115 = vld [vmem:[%s1 + $0x48] sm:$0xff]
  %v116 = vld [vmem:[%s1 + $0x50] sm:$0xff]
  %v117 = vld [vmem:[%s1 + $0x58] sm:$0xff]
  %v118 = vld [vmem:[%s1 + $0x60] sm:$0xff]
  %v119 = vld [vmem:[%s1 + $0x68] sm:$0xff]
  %v120 = vld [vmem:[%s1 + $0x70] sm:$0xff]
  %v121 = vld [vmem:[%s1 + $0x78] sm:$0xff]
  %v122 = vld [vmem:[%s1 + $0x80] sm:$0xff]
  %v123 = vld [vmem:[%s1 + $0x88] sm:$0xff]
  %v124 = vld [vmem:[%s1 + $0x90] sm:$0xff]
  %v125 = vld [vmem:[%s1 + $0x98] sm:$0xff]
  %v126 = vld [vmem:[%s1 + $0xa0] sm:$0xff]
  %v127 = vld [vmem:[%s1 + $0xa8] sm:$0xff]
  %v128 = vld [vmem:[%s1 + $0xb0] sm:$0xff]
  %v129 = vld [vmem:[%s1 + $0xb8] sm:$0xff]
  %v130 = vld [vmem:[%s1 + $0xc0] sm:$0xff]
  %v131 = vld [vmem:[%s1 + $0xc8] sm:$0xff]
  %v132 = vld [vmem:[%s1 + $0xd0] sm:$0xff]
  %v133 = vld [vmem:[%s1 + $0xd8] sm:$0xff]
  %v134 = vld [vmem:[%s1 + $0xe0] sm:$0xff]
  %v135 = vld [vmem:[%s1 + $0xe8] sm:$0xff]
  %v136 = vld [vmem:[%s1 + $0xf0] sm:$0xff]
  %v137 = vld [vmem:[%s1 + $0xf8] sm:$0xff]
  %v138 = vld [vmem:[%s1 + $0x100] sm:$0xff]
  %v139 = vld [vmem:[%s1 + $0x108] sm:$0xff]
  %v140 = vld [vmem:[%s1 + $0x110] sm:$0xff]
  %v141 = vld [vmem:[%s1 + $0x118] sm:$0xff]
  %v142 = vld [vmem:[%s1 + $0x120] sm:$0xff]
  %v143 = vld [vmem:[%s1 + $0x128] sm:$0xff]
  %v144 = vld [vmem:[%s1 + $0x130] sm:$0xff]
  %v145 = vld [vmem:[%s1 + $0x138] sm:$0xff]
  %v146 = vld [vmem:[%s1 + $0x140] sm:$0xff]
  %v147 = vld [vmem:[%s1 + $0x148] sm:$0xff]
  %v148 = vld [vmem:[%s1 + $0x150] sm:$0xff]
  %v149 = vld [vmem:[%s1 + $0x158] sm:$0xff]
  %v150 = vld [vmem:[%s1 + $0x160] sm:$0xff]
  %v151 = vld [vmem:[%s1 + $0x168] sm:$0xff]
  %v152 = vld [vmem:[%s1 + $0x170] sm:$0xff]
  %v153 = vld [vmem:[%s1 + $0x178] sm:$0xff]
  %v154 = vld [vmem:[%s1 + $0x180] sm:$0xff]
  %v155 = vld [vmem:[%s1 + $0x188] sm:$0xff]
  %v156 = vld [vmem:[%s1 + $0x190] sm:$0xff]
  %v157 = vld [vmem:[%s1 + $0x198] sm:$0xff]
  %v158 = vld [vmem:[%s1 + $0x1a0] sm:$0xff]
  %v159 = vld [vmem:[%s1 + $0x1a8] sm:$0xff]
  %v160 = vld [vmem:[%s1 + $0x1b0] sm:$0xff]
  %v161 = vld [vmem:[%s1 + $0x1b8] sm:$0xff]
  %v162 = vld [vmem:[%s1 + $0x1c0] sm:$0xff]
  %v163 = vld [vmem:[%s1 + $0x1c8] sm:$0xff]
  %v164 = vld [vmem:[%s1 + $0x1d0] sm:$0xff]
  %v165 = vld [vmem:[%s1 + $0x1d8] sm:$0xff]
  %v166 = vld [vmem:[%s1 + $0x1e0] sm:$0xff]
  %v167 = vld [vmem:[%s1 + $0x1e8] sm:$0xff]
  %v168 = vld [vmem:[%s1 + $0x1f0] sm:$0xff]
  %v169 = vld [vmem:[%s1 + $0x1f8] sm:$0xff]
  %s170 = scalar_lea.vmem %s9, 4
  %v171 = vld [vmem:[%s170] sm:$0x7]
  %vm172 = vcmask 23552
  %v174 = vsel %vm172, %v106, 0
  %v177 = vsel %vm172, %v107, 0
  %v180 = vsel %vm172, %v108, 0
  %v183 = vsel %vm172, %v109, 0
  %v186 = vsel %vm172, %v110, 0
  %v189 = vsel %vm172, %v111, 0
  %v192 = vsel %vm172, %v112, 0
  %v195 = vsel %vm172, %v113, 0
  %v198 = vsel %vm172, %v114, 0
  %v201 = vsel %vm172, %v115, 0
  %v204 = vsel %vm172, %v116, 0
  %v207 = vsel %vm172, %v117, 0
  %v210 = vsel %vm172, %v118, 0
  %v213 = vsel %vm172, %v119, 0
  %v216 = vsel %vm172, %v120, 0
  %v219 = vsel %vm172, %v121, 0
  %v222 = vsel %vm172, %v122, 0
  %v225 = vsel %vm172, %v123, 0
  %v228 = vsel %vm172, %v124, 0
  %v231 = vsel %vm172, %v125, 0
  %v234 = vsel %vm172, %v126, 0
  %v237 = vsel %vm172, %v127, 0
  %v240 = vsel %vm172, %v128, 0
  %v243 = vsel %vm172, %v129, 0
  %v246 = vsel %vm172, %v130, 0
  %v249 = vsel %vm172, %v131, 0
  %v252 = vsel %vm172, %v132, 0
  %v255 = vsel %vm172, %v133, 0
  %v258 = vsel %vm172, %v134, 0
  %v261 = vsel %vm172, %v135, 0
  %v264 = vsel %vm172, %v136, 0
  %v267 = vsel %vm172, %v137, 0
  %v270 = vsel %vm172, %v138, 0
  %v273 = vsel %vm172, %v139, 0
  %v276 = vsel %vm172, %v140, 0
  %v279 = vsel %vm172, %v141, 0
  %v282 = vsel %vm172, %v142, 0
  %v285 = vsel %vm172, %v143, 0
  %v288 = vsel %vm172, %v144, 0
  %v291 = vsel %vm172, %v145, 0
  %v294 = vsel %vm172, %v146, 0
  %v297 = vsel %vm172, %v147, 0
  %v300 = vsel %vm172, %v148, 0
  %v303 = vsel %vm172, %v149, 0
  %v306 = vsel %vm172, %v150, 0
  %v309 = vsel %vm172, %v151, 0
  %v312 = vsel %vm172, %v152, 0
  %v315 = vsel %vm172, %v153, 0
  %v318 = vsel %vm172, %v154, 0
  %v321 = vsel %vm172, %v155, 0
  %v324 = vsel %vm172, %v156, 0
  %v327 = vsel %vm172, %v157, 0
  %v330 = vsel %vm172, %v158, 0
  %v333 = vsel %vm172, %v159, 0
  %v336 = vsel %vm172, %v160, 0
  %v339 = vsel %vm172, %v161, 0
  %v342 = vsel %vm172, %v162, 0
  %v345 = vsel %vm172, %v163, 0
  %v348 = vsel %vm172, %v164, 0
  %v351 = vsel %vm172, %v165, 0
  %v354 = vsel %vm172, %v166, 0
  %v357 = vsel %vm172, %v167, 0
  %v360 = vsel %vm172, %v168, 0
  %v363 = vsel %vm172, %v169, 0
  %vm365 = vcmask 1042432
  %v367 = vsel %vm365, %v171, 0
  %369 = vmatpush.msra.mxu0 0.0
  %370 = vmatpush.msra.mxu0 0.0
  %371 = vmatpush.msra.mxu0 0.0
  %372 = vmatpush.msra.mxu0 0.0
  %373 = vmatpush.msra.mxu0 0.0
  %374 = vmatpush.msra.mxu0 0.0
  %375 = vmatpush.msra.mxu0 0.0
  %376 = vmatpush.msra.mxu0 0.0
  %377 = vmatpush.msra.mxu0 0.0
  %378 = vmatpush.msra.mxu0 0.0
  %379 = vmatpush.msra.mxu0 0.0
  %380 = vmatpush.msra.mxu0 0.0
  %381 = vmatpush.msra.mxu0 0.0
  %382 = vmatpush.msra.mxu0 0.0
  %383 = vmatpush.msra.mxu0 0.0
  %384 = vmatpush.msra.mxu0 %v367
  %385 = vmatmul.f32.gmra.mxu0 %v174
  %v386 = vpop.f32.mrf.mxu0
  %v387 = vadd.f32 0.0, %v386
  %388 = vmatmul.f32.gmra.mxu0 %v177
  %v389 = vpop.f32.mrf.mxu0
  %v390 = vadd.f32 0.0, %v389
  %391 = vmatmul.f32.gmra.mxu0 %v180
  %v392 = vpop.f32.mrf.mxu0
  %v393 = vadd.f32 0.0, %v392
  %394 = vmatmul.f32.gmra.mxu0 %v183
  %v395 = vpop.f32.mrf.mxu0
  %v396 = vadd.f32 0.0, %v395
  %397 = vmatmul.f32.gmra.mxu0 %v186
  %v398 = vpop.f32.mrf.mxu0
  %v399 = vadd.f32 0.0, %v398
  %400 = vmatmul.f32.gmra.mxu0 %v189
  %v401 = vpop.f32.mrf.mxu0
  %v402 = vadd.f32 0.0, %v401
  %403 = vmatmul.f32.gmra.mxu0 %v192
  %v404 = vpop.f32.mrf.mxu0
  %v405 = vadd.f32 0.0, %v404
  %406 = vmatmul.f32.gmra.mxu0 %v195
  %v407 = vpop.f32.mrf.mxu0
  %v408 = vadd.f32 0.0, %v407
  %409 = vmatmul.f32.gmra.mxu0 %v198
  %v410 = vpop.f32.mrf.mxu0
  %v411 = vadd.f32 0.0, %v410
  %412 = vmatmul.f32.gmra.mxu0 %v201
  %v413 = vpop.f32.mrf.mxu0
  %v414 = vadd.f32 0.0, %v413
  %415 = vmatmul.f32.gmra.mxu0 %v204
  %v416 = vpop.f32.mrf.mxu0
  %v417 = vadd.f32 0.0, %v416
  %418 = vmatmul.f32.gmra.mxu0 %v207
  %v419 = vpop.f32.mrf.mxu0
  %v420 = vadd.f32 0.0, %v419
  %421 = vmatmul.f32.gmra.mxu0 %v210
  %v422 = vpop.f32.mrf.mxu0
  %v423 = vadd.f32 0.0, %v422
  %424 = vmatmul.f32.gmra.mxu0 %v213
  %v425 = vpop.f32.mrf.mxu0
  %v426 = vadd.f32 0.0, %v425
  %427 = vmatmul.f32.gmra.mxu0 %v216
  %v428 = vpop.f32.mrf.mxu0
  %v429 = vadd.f32 0.0, %v428
  %430 = vmatmul.f32.gmra.mxu0 %v219
  %v431 = vpop.f32.mrf.mxu0
  %v432 = vadd.f32 0.0, %v431
  %433 = vmatmul.f32.gmra.mxu0 %v222
  %v434 = vpop.f32.mrf.mxu0
  %v435 = vadd.f32 0.0, %v434
  %436 = vmatmul.f32.gmra.mxu0 %v225
  %v437 = vpop.f32.mrf.mxu0
  %v438 = vadd.f32 0.0, %v437
  %439 = vmatmul.f32.gmra.mxu0 %v228
  %v440 = vpop.f32.mrf.mxu0
  %v441 = vadd.f32 0.0, %v440
  %442 = vmatmul.f32.gmra.mxu0 %v231
  %v443 = vpop.f32.mrf.mxu0
  %v444 = vadd.f32 0.0, %v443
  %445 = vmatmul.f32.gmra.mxu0 %v234
  %v446 = vpop.f32.mrf.mxu0
  %v447 = vadd.f32 0.0, %v446
  %448 = vmatmul.f32.gmra.mxu0 %v237
  %v449 = vpop.f32.mrf.mxu0
  %v450 = vadd.f32 0.0, %v449
  %451 = vmatmul.f32.gmra.mxu0 %v240
  %v452 = vpop.f32.mrf.mxu0
  %v453 = vadd.f32 0.0, %v452
  %454 = vmatmul.f32.gmra.mxu0 %v243
  %v455 = vpop.f32.mrf.mxu0
  %v456 = vadd.f32 0.0, %v455
  %457 = vmatmul.f32.gmra.mxu0 %v246
  %v458 = vpop.f32.mrf.mxu0
  %v459 = vadd.f32 0.0, %v458
  %460 = vmatmul.f32.gmra.mxu0 %v249
  %v461 = vpop.f32.mrf.mxu0
  %v462 = vadd.f32 0.0, %v461
  %463 = vmatmul.f32.gmra.mxu0 %v252
  %v464 = vpop.f32.mrf.mxu0
  %v465 = vadd.f32 0.0, %v464
  %466 = vmatmul.f32.gmra.mxu0 %v255
  %v467 = vpop.f32.mrf.mxu0
  %v468 = vadd.f32 0.0, %v467
  %469 = vmatmul.f32.gmra.mxu0 %v258
  %v470 = vpop.f32.mrf.mxu0
  %v471 = vadd.f32 0.0, %v470
  %472 = vmatmul.f32.gmra.mxu0 %v261
  %v473 = vpop.f32.mrf.mxu0
  %v474 = vadd.f32 0.0, %v473
  %475 = vmatmul.f32.gmra.mxu0 %v264
  %v476 = vpop.f32.mrf.mxu0
  %v477 = vadd.f32 0.0, %v476
  %478 = vmatmul.f32.gmra.mxu0 %v267
  %v479 = vpop.f32.mrf.mxu0
  %v480 = vadd.f32 0.0, %v479
  %481 = vmatmul.f32.gmra.mxu0 %v270
  %v482 = vpop.f32.mrf.mxu0
  %v483 = vadd.f32 0.0, %v482
  %484 = vmatmul.f32.gmra.mxu0 %v273
  %v485 = vpop.f32.mrf.mxu0
  %v486 = vadd.f32 0.0, %v485
  %487 = vmatmul.f32.gmra.mxu0 %v276
  %v488 = vpop.f32.mrf.mxu0
  %v489 = vadd.f32 0.0, %v488
  %490 = vmatmul.f32.gmra.mxu0 %v279
  %v491 = vpop.f32.mrf.mxu0
  %v492 = vadd.f32 0.0, %v491
  %493 = vmatmul.f32.gmra.mxu0 %v282
  %v494 = vpop.f32.mrf.mxu0
  %v495 = vadd.f32 0.0, %v494
  %496 = vmatmul.f32.gmra.mxu0 %v285
  %v497 = vpop.f32.mrf.mxu0
  %v498 = vadd.f32 0.0, %v497
  %499 = vmatmul.f32.gmra.mxu0 %v288
  %v500 = vpop.f32.mrf.mxu0
  %v501 = vadd.f32 0.0, %v500
  %502 = vmatmul.f32.gmra.mxu0 %v291
  %v503 = vpop.f32.mrf.mxu0
  %v504 = vadd.f32 0.0, %v503
  %505 = vmatmul.f32.gmra.mxu0 %v294
  %v506 = vpop.f32.mrf.mxu0
  %v507 = vadd.f32 0.0, %v506
  %508 = vmatmul.f32.gmra.mxu0 %v297
  %v509 = vpop.f32.mrf.mxu0
  %v510 = vadd.f32 0.0, %v509
  %511 = vmatmul.f32.gmra.mxu0 %v300
  %v512 = vpop.f32.mrf.mxu0
  %v513 = vadd.f32 0.0, %v512
  %514 = vmatmul.f32.gmra.mxu0 %v303
  %v515 = vpop.f32.mrf.mxu0
  %v516 = vadd.f32 0.0, %v515
  %517 = vmatmul.f32.gmra.mxu0 %v306
  %v518 = vpop.f32.mrf.mxu0
  %v519 = vadd.f32 0.0, %v518
  %520 = vmatmul.f32.gmra.mxu0 %v309
  %v521 = vpop.f32.mrf.mxu0
  %v522 = vadd.f32 0.0, %v521
  %523 = vmatmul.f32.gmra.mxu0 %v312
  %v524 = vpop.f32.mrf.mxu0
  %v525 = vadd.f32 0.0, %v524
  %526 = vmatmul.f32.gmra.mxu0 %v315
  %v527 = vpop.f32.mrf.mxu0
  %v528 = vadd.f32 0.0, %v527
  %529 = vmatmul.f32.gmra.mxu0 %v318
  %v530 = vpop.f32.mrf.mxu0
  %v531 = vadd.f32 0.0, %v530
  %532 = vmatmul.f32.gmra.mxu0 %v321
  %v533 = vpop.f32.mrf.mxu0
  %v534 = vadd.f32 0.0, %v533
  %535 = vmatmul.f32.gmra.mxu0 %v324
  %v536 = vpop.f32.mrf.mxu0
  %v537 = vadd.f32 0.0, %v536
  %538 = vmatmul.f32.gmra.mxu0 %v327
  %v539 = vpop.f32.mrf.mxu0
  %v540 = vadd.f32 0.0, %v539
  %541 = vmatmul.f32.gmra.mxu0 %v330
  %v542 = vpop.f32.mrf.mxu0
  %v543 = vadd.f32 0.0, %v542
  %544 = vmatmul.f32.gmra.mxu0 %v333
  %v545 = vpop.f32.mrf.mxu0
  %v546 = vadd.f32 0.0, %v545
  %547 = vmatmul.f32.gmra.mxu0 %v336
  %v548 = vpop.f32.mrf.mxu0
  %v549 = vadd.f32 0.0, %v548
  %550 = vmatmul.f32.gmra.mxu0 %v339
  %v551 = vpop.f32.mrf.mxu0
  %v552 = vadd.f32 0.0, %v551
  %553 = vmatmul.f32.gmra.mxu0 %v342
  %v554 = vpop.f32.mrf.mxu0
  %v555 = vadd.f32 0.0, %v554
  %556 = vmatmul.f32.gmra.mxu0 %v345
  %v557 = vpop.f32.mrf.mxu0
  %v558 = vadd.f32 0.0, %v557
  %559 = vmatmul.f32.gmra.mxu0 %v348
  %v560 = vpop.f32.mrf.mxu0
  %v561 = vadd.f32 0.0, %v560
  %562 = vmatmul.f32.gmra.mxu0 %v351
  %v563 = vpop.f32.mrf.mxu0
  %v564 = vadd.f32 0.0, %v563
  %565 = vmatmul.f32.gmra.mxu0 %v354
  %v566 = vpop.f32.mrf.mxu0
  %v567 = vadd.f32 0.0, %v566
  %568 = vmatmul.f32.gmra.mxu0 %v357
  %v569 = vpop.f32.mrf.mxu0
  %v570 = vadd.f32 0.0, %v569
  %571 = vmatmul.f32.gmra.mxu0 %v360
  %v572 = vpop.f32.mrf.mxu0
  %v573 = vadd.f32 0.0, %v572
  %574 = vmatmul.f32.gmra.mxu0 %v363
  %v575 = vpop.f32.mrf.mxu0
  %v576 = vadd.f32 0.0, %v575
  %577 = vdwg.mxu0
  %v579 = vsel %vm172, %v41, 0
  %v582 = vsel %vm172, %v42, 0
  %v585 = vsel %vm172, %v43, 0
  %v588 = vsel %vm172, %v44, 0
  %v591 = vsel %vm172, %v45, 0
  %v594 = vsel %vm172, %v46, 0
  %v597 = vsel %vm172, %v47, 0
  %v600 = vsel %vm172, %v48, 0
  %v603 = vsel %vm172, %v49, 0
  %v606 = vsel %vm172, %v50, 0
  %v609 = vsel %vm172, %v51, 0
  %v612 = vsel %vm172, %v52, 0
  %v615 = vsel %vm172, %v53, 0
  %v618 = vsel %vm172, %v54, 0
  %v621 = vsel %vm172, %v55, 0
  %v624 = vsel %vm172, %v56, 0
  %v627 = vsel %vm172, %v57, 0
  %v630 = vsel %vm172, %v58, 0
  %v633 = vsel %vm172, %v59, 0
  %v636 = vsel %vm172, %v60, 0
  %v639 = vsel %vm172, %v61, 0
  %v642 = vsel %vm172, %v62, 0
  %v645 = vsel %vm172, %v63, 0
  %v648 = vsel %vm172, %v64, 0
  %v651 = vsel %vm172, %v65, 0
  %v654 = vsel %vm172, %v66, 0
  %v657 = vsel %vm172, %v67, 0
  %v660 = vsel %vm172, %v68, 0
  %v663 = vsel %vm172, %v69, 0
  %v666 = vsel %vm172, %v70, 0
  %v669 = vsel %vm172, %v71, 0
  %v672 = vsel %vm172, %v72, 0
  %v675 = vsel %vm172, %v73, 0
  %v678 = vsel %vm172, %v74, 0
  %v681 = vsel %vm172, %v75, 0
  %v684 = vsel %vm172, %v76, 0
  %v687 = vsel %vm172, %v77, 0
  %v690 = vsel %vm172, %v78, 0
  %v693 = vsel %vm172, %v79, 0
  %v696 = vsel %vm172, %v80, 0
  %v699 = vsel %vm172, %v81, 0
  %v702 = vsel %vm172, %v82, 0
  %v705 = vsel %vm172, %v83, 0
  %v708 = vsel %vm172, %v84, 0
  %v711 = vsel %vm172, %v85, 0
  %v714 = vsel %vm172, %v86, 0
  %v717 = vsel %vm172, %v87, 0
  %v720 = vsel %vm172, %v88, 0
  %v723 = vsel %vm172, %v89, 0
  %v726 = vsel %vm172, %v90, 0
  %v729 = vsel %vm172, %v91, 0
  %v732 = vsel %vm172, %v92, 0
  %v735 = vsel %vm172, %v93, 0
  %v738 = vsel %vm172, %v94, 0
  %v741 = vsel %vm172, %v95, 0
  %v744 = vsel %vm172, %v96, 0
  %v747 = vsel %vm172, %v97, 0
  %v750 = vsel %vm172, %v98, 0
  %v753 = vsel %vm172, %v99, 0
  %v756 = vsel %vm172, %v100, 0
  %v759 = vsel %vm172, %v101, 0
  %v762 = vsel %vm172, %v102, 0
  %v765 = vsel %vm172, %v103, 0
  %v768 = vsel %vm172, %v104, 0
  %v771 = vsel %vm365, %v105, 0
  %773 = vmatpush.msra.mxu0 0.0
  %774 = vmatpush.msra.mxu0 0.0
  %775 = vmatpush.msra.mxu0 0.0
  %776 = vmatpush.msra.mxu0 0.0
  %777 = vmatpush.msra.mxu0 0.0
  %778 = vmatpush.msra.mxu0 0.0
  %779 = vmatpush.msra.mxu0 0.0
  %780 = vmatpush.msra.mxu0 0.0
  %781 = vmatpush.msra.mxu0 0.0
  %782 = vmatpush.msra.mxu0 0.0
  %783 = vmatpush.msra.mxu0 0.0
  %784 = vmatpush.msra.mxu0 0.0
  %785 = vmatpush.msra.mxu0 0.0
  %786 = vmatpush.msra.mxu0 0.0
  %787 = vmatpush.msra.mxu0 0.0
  %788 = vmatpush.msra.mxu0 %v771
  %789 = vmatmul.f32.gmra.mxu0 %v579
  %v790 = vpop.f32.mrf.mxu0
  %v791 = vadd.f32 %v387, %v790
  %792 = vmatmul.f32.gmra.mxu0 %v582
  %v793 = vpop.f32.mrf.mxu0
  %v794 = vadd.f32 %v390, %v793
  %795 = vmatmul.f32.gmra.mxu0 %v585
  %v796 = vpop.f32.mrf.mxu0
  %v797 = vadd.f32 %v393, %v796
  %798 = vmatmul.f32.gmra.mxu0 %v588
  %v799 = vpop.f32.mrf.mxu0
  %v800 = vadd.f32 %v396, %v799
  %801 = vmatmul.f32.gmra.mxu0 %v591
  %v802 = vpop.f32.mrf.mxu0
  %v803 = vadd.f32 %v399, %v802
  %804 = vmatmul.f32.gmra.mxu0 %v594
  %v805 = vpop.f32.mrf.mxu0
  %v806 = vadd.f32 %v402, %v805
  %807 = vmatmul.f32.gmra.mxu0 %v597
  %v808 = vpop.f32.mrf.mxu0
  %v809 = vadd.f32 %v405, %v808
  %810 = vmatmul.f32.gmra.mxu0 %v600
  %v811 = vpop.f32.mrf.mxu0
  %v812 = vadd.f32 %v408, %v811
  %813 = vmatmul.f32.gmra.mxu0 %v603
  %v814 = vpop.f32.mrf.mxu0
  %v815 = vadd.f32 %v411, %v814
  %816 = vmatmul.f32.gmra.mxu0 %v606
  %v817 = vpop.f32.mrf.mxu0
  %v818 = vadd.f32 %v414, %v817
  %819 = vmatmul.f32.gmra.mxu0 %v609
  %v820 = vpop.f32.mrf.mxu0
  %v821 = vadd.f32 %v417, %v820
  %822 = vmatmul.f32.gmra.mxu0 %v612
  %v823 = vpop.f32.mrf.mxu0
  %v824 = vadd.f32 %v420, %v823
  %825 = vmatmul.f32.gmra.mxu0 %v615
  %v826 = vpop.f32.mrf.mxu0
  %v827 = vadd.f32 %v423, %v826
  %828 = vmatmul.f32.gmra.mxu0 %v618
  %v829 = vpop.f32.mrf.mxu0
  %v830 = vadd.f32 %v426, %v829
  %831 = vmatmul.f32.gmra.mxu0 %v621
  %v832 = vpop.f32.mrf.mxu0
  %v833 = vadd.f32 %v429, %v832
  %834 = vmatmul.f32.gmra.mxu0 %v624
  %v835 = vpop.f32.mrf.mxu0
  %v836 = vadd.f32 %v432, %v835
  %837 = vmatmul.f32.gmra.mxu0 %v627
  %v838 = vpop.f32.mrf.mxu0
  %v839 = vadd.f32 %v435, %v838
  %840 = vmatmul.f32.gmra.mxu0 %v630
  %v841 = vpop.f32.mrf.mxu0
  %v842 = vadd.f32 %v438, %v841
  %843 = vmatmul.f32.gmra.mxu0 %v633
  %v844 = vpop.f32.mrf.mxu0
  %v845 = vadd.f32 %v441, %v844
  %846 = vmatmul.f32.gmra.mxu0 %v636
  %v847 = vpop.f32.mrf.mxu0
  %v848 = vadd.f32 %v444, %v847
  %849 = vmatmul.f32.gmra.mxu0 %v639
  %v850 = vpop.f32.mrf.mxu0
  %v851 = vadd.f32 %v447, %v850
  %852 = vmatmul.f32.gmra.mxu0 %v642
  %v853 = vpop.f32.mrf.mxu0
  %v854 = vadd.f32 %v450, %v853
  %855 = vmatmul.f32.gmra.mxu0 %v645
  %v856 = vpop.f32.mrf.mxu0
  %v857 = vadd.f32 %v453, %v856
  %858 = vmatmul.f32.gmra.mxu0 %v648
  %v859 = vpop.f32.mrf.mxu0
  %v860 = vadd.f32 %v456, %v859
  %861 = vmatmul.f32.gmra.mxu0 %v651
  %v862 = vpop.f32.mrf.mxu0
  %v863 = vadd.f32 %v459, %v862
  %864 = vmatmul.f32.gmra.mxu0 %v654
  %v865 = vpop.f32.mrf.mxu0
  %v866 = vadd.f32 %v462, %v865
  %867 = vmatmul.f32.gmra.mxu0 %v657
  %v868 = vpop.f32.mrf.mxu0
  %v869 = vadd.f32 %v465, %v868
  %870 = vmatmul.f32.gmra.mxu0 %v660
  %v871 = vpop.f32.mrf.mxu0
  %v872 = vadd.f32 %v468, %v871
  %873 = vmatmul.f32.gmra.mxu0 %v663
  %v874 = vpop.f32.mrf.mxu0
  %v875 = vadd.f32 %v471, %v874
  %876 = vmatmul.f32.gmra.mxu0 %v666
  %v877 = vpop.f32.mrf.mxu0
  %v878 = vadd.f32 %v474, %v877
  %879 = vmatmul.f32.gmra.mxu0 %v669
  %v880 = vpop.f32.mrf.mxu0
  %v881 = vadd.f32 %v477, %v880
  %882 = vmatmul.f32.gmra.mxu0 %v672
  %v883 = vpop.f32.mrf.mxu0
  %v884 = vadd.f32 %v480, %v883
  %885 = vmatmul.f32.gmra.mxu0 %v675
  %v886 = vpop.f32.mrf.mxu0
  %v887 = vadd.f32 %v483, %v886
  %888 = vmatmul.f32.gmra.mxu0 %v678
  %v889 = vpop.f32.mrf.mxu0
  %v890 = vadd.f32 %v486, %v889
  %891 = vmatmul.f32.gmra.mxu0 %v681
  %v892 = vpop.f32.mrf.mxu0
  %v893 = vadd.f32 %v489, %v892
  %894 = vmatmul.f32.gmra.mxu0 %v684
  %v895 = vpop.f32.mrf.mxu0
  %v896 = vadd.f32 %v492, %v895
  %897 = vmatmul.f32.gmra.mxu0 %v687
  %v898 = vpop.f32.mrf.mxu0
  %v899 = vadd.f32 %v495, %v898
  %900 = vmatmul.f32.gmra.mxu0 %v690
  %v901 = vpop.f32.mrf.mxu0
  %v902 = vadd.f32 %v498, %v901
  %903 = vmatmul.f32.gmra.mxu0 %v693
  %v904 = vpop.f32.mrf.mxu0
  %v905 = vadd.f32 %v501, %v904
  %906 = vmatmul.f32.gmra.mxu0 %v696
  %v907 = vpop.f32.mrf.mxu0
  %v908 = vadd.f32 %v504, %v907
  %909 = vmatmul.f32.gmra.mxu0 %v699
  %v910 = vpop.f32.mrf.mxu0
  %v911 = vadd.f32 %v507, %v910
  %912 = vmatmul.f32.gmra.mxu0 %v702
  %v913 = vpop.f32.mrf.mxu0
  %v914 = vadd.f32 %v510, %v913
  %915 = vmatmul.f32.gmra.mxu0 %v705
  %v916 = vpop.f32.mrf.mxu0
  %v917 = vadd.f32 %v513, %v916
  %918 = vmatmul.f32.gmra.mxu0 %v708
  %v919 = vpop.f32.mrf.mxu0
  %v920 = vadd.f32 %v516, %v919
  %921 = vmatmul.f32.gmra.mxu0 %v711
  %v922 = vpop.f32.mrf.mxu0
  %v923 = vadd.f32 %v519, %v922
  %924 = vmatmul.f32.gmra.mxu0 %v714
  %v925 = vpop.f32.mrf.mxu0
  %v926 = vadd.f32 %v522, %v925
  %927 = vmatmul.f32.gmra.mxu0 %v717
  %v928 = vpop.f32.mrf.mxu0
  %v929 = vadd.f32 %v525, %v928
  %930 = vmatmul.f32.gmra.mxu0 %v720
  %v931 = vpop.f32.mrf.mxu0
  %v932 = vadd.f32 %v528, %v931
  %933 = vmatmul.f32.gmra.mxu0 %v723
  %v934 = vpop.f32.mrf.mxu0
  %v935 = vadd.f32 %v531, %v934
  %936 = vmatmul.f32.gmra.mxu0 %v726
  %v937 = vpop.f32.mrf.mxu0
  %v938 = vadd.f32 %v534, %v937
  %939 = vmatmul.f32.gmra.mxu0 %v729
  %v940 = vpop.f32.mrf.mxu0
  %v941 = vadd.f32 %v537, %v940
  %942 = vmatmul.f32.gmra.mxu0 %v732
  %v943 = vpop.f32.mrf.mxu0
  %v944 = vadd.f32 %v540, %v943
  %945 = vmatmul.f32.gmra.mxu0 %v735
  %v946 = vpop.f32.mrf.mxu0
  %v947 = vadd.f32 %v543, %v946
  %948 = vmatmul.f32.gmra.mxu0 %v738
  %v949 = vpop.f32.mrf.mxu0
  %v950 = vadd.f32 %v546, %v949
  %951 = vmatmul.f32.gmra.mxu0 %v741
  %v952 = vpop.f32.mrf.mxu0
  %v953 = vadd.f32 %v549, %v952
  %954 = vmatmul.f32.gmra.mxu0 %v744
  %v955 = vpop.f32.mrf.mxu0
  %v956 = vadd.f32 %v552, %v955
  %957 = vmatmul.f32.gmra.mxu0 %v747
  %v958 = vpop.f32.mrf.mxu0
  %v959 = vadd.f32 %v555, %v958
  %960 = vmatmul.f32.gmra.mxu0 %v750
  %v961 = vpop.f32.mrf.mxu0
  %v962 = vadd.f32 %v558, %v961
  %963 = vmatmul.f32.gmra.mxu0 %v753
  %v964 = vpop.f32.mrf.mxu0
  %v965 = vadd.f32 %v561, %v964
  %966 = vmatmul.f32.gmra.mxu0 %v756
  %v967 = vpop.f32.mrf.mxu0
  %v968 = vadd.f32 %v564, %v967
  %969 = vmatmul.f32.gmra.mxu0 %v759
  %v970 = vpop.f32.mrf.mxu0
  %v971 = vadd.f32 %v567, %v970
  %972 = vmatmul.f32.gmra.mxu0 %v762
  %v973 = vpop.f32.mrf.mxu0
  %v974 = vadd.f32 %v570, %v973
  %975 = vmatmul.f32.gmra.mxu0 %v765
  %v976 = vpop.f32.mrf.mxu0
  %v977 = vadd.f32 %v573, %v976
  %978 = vmatmul.f32.gmra.mxu0 %v768
  %v979 = vpop.f32.mrf.mxu0
  %v980 = vadd.f32 %v576, %v979
  %981 = vdwg.mxu0
  %v982 = vld [vmem:[%s2] sm:$0xff]
  %v983 = vld [vmem:[%s2 + $0x8] sm:$0xff]
  %v984 = vld [vmem:[%s2 + $0x10] sm:$0xff]
  %v985 = vld [vmem:[%s2 + $0x18] sm:$0xff]
  %v986 = vld [vmem:[%s2 + $0x20] sm:$0xff]
  %v987 = vld [vmem:[%s2 + $0x28] sm:$0xff]
  %v988 = vld [vmem:[%s2 + $0x30] sm:$0xff]
  %v989 = vld [vmem:[%s2 + $0x38] sm:$0xff]
  %v990 = vld [vmem:[%s2 + $0x40] sm:$0xff]
  %v991 = vld [vmem:[%s2 + $0x48] sm:$0xff]
  %v992 = vld [vmem:[%s2 + $0x50] sm:$0xff]
  %v993 = vld [vmem:[%s2 + $0x58] sm:$0xff]
  %v994 = vld [vmem:[%s2 + $0x60] sm:$0xff]
  %v995 = vld [vmem:[%s2 + $0x68] sm:$0xff]
  %v996 = vld [vmem:[%s2 + $0x70] sm:$0xff]
  %v997 = vld [vmem:[%s2 + $0x78] sm:$0xff]
  %v998 = vld [vmem:[%s2 + $0x80] sm:$0xff]
  %v999 = vld [vmem:[%s2 + $0x88] sm:$0xff]
  %v1000 = vld [vmem:[%s2 + $0x90] sm:$0xff]
  %v1001 = vld [vmem:[%s2 + $0x98] sm:$0xff]
  %v1002 = vld [vmem:[%s2 + $0xa0] sm:$0xff]
  %v1003 = vld [vmem:[%s2 + $0xa8] sm:$0xff]
  %v1004 = vld [vmem:[%s2 + $0xb0] sm:$0xff]
  %v1005 = vld [vmem:[%s2 + $0xb8] sm:$0xff]
  %v1006 = vld [vmem:[%s2 + $0xc0] sm:$0xff]
  %v1007 = vld [vmem:[%s2 + $0xc8] sm:$0xff]
  %v1008 = vld [vmem:[%s2 + $0xd0] sm:$0xff]
  %v1009 = vld [vmem:[%s2 + $0xd8] sm:$0xff]
  %v1010 = vld [vmem:[%s2 + $0xe0] sm:$0xff]
  %v1011 = vld [vmem:[%s2 + $0xe8] sm:$0xff]
  %v1012 = vld [vmem:[%s2 + $0xf0] sm:$0xff]
  %v1013 = vld [vmem:[%s2 + $0xf8] sm:$0xff]
  %v1014 = vld [vmem:[%s2 + $0x100] sm:$0xff]
  %v1015 = vld [vmem:[%s2 + $0x108] sm:$0xff]
  %v1016 = vld [vmem:[%s2 + $0x110] sm:$0xff]
  %v1017 = vld [vmem:[%s2 + $0x118] sm:$0xff]
  %v1018 = vld [vmem:[%s2 + $0x120] sm:$0xff]
  %v1019 = vld [vmem:[%s2 + $0x128] sm:$0xff]
  %v1020 = vld [vmem:[%s2 + $0x130] sm:$0xff]
  %v1021 = vld [vmem:[%s2 + $0x138] sm:$0xff]
  %v1022 = vld [vmem:[%s2 + $0x140] sm:$0xff]
  %v1023 = vld [vmem:[%s2 + $0x148] sm:$0xff]
  %v1024 = vld [vmem:[%s2 + $0x150] sm:$0xff]
  %v1025 = vld [vmem:[%s2 + $0x158] sm:$0xff]
  %v1026 = vld [vmem:[%s2 + $0x160] sm:$0xff]
  %v1027 = vld [vmem:[%s2 + $0x168] sm:$0xff]
  %v1028 = vld [vmem:[%s2 + $0x170] sm:$0xff]
  %v1029 = vld [vmem:[%s2 + $0x178] sm:$0xff]
  %v1030 = vld [vmem:[%s2 + $0x180] sm:$0xff]
  %v1031 = vld [vmem:[%s2 + $0x188] sm:$0xff]
  %v1032 = vld [vmem:[%s2 + $0x190] sm:$0xff]
  %v1033 = vld [vmem:[%s2 + $0x198] sm:$0xff]
  %v1034 = vld [vmem:[%s2 + $0x1a0] sm:$0xff]
  %v1035 = vld [vmem:[%s2 + $0x1a8] sm:$0xff]
  %v1036 = vld [vmem:[%s2 + $0x1b0] sm:$0xff]
  %v1037 = vld [vmem:[%s2 + $0x1b8] sm:$0xff]
  %v1038 = vld [vmem:[%s2 + $0x1c0] sm:$0xff]
  %v1039 = vld [vmem:[%s2 + $0x1c8] sm:$0xff]
  %v1040 = vld [vmem:[%s2 + $0x1d0] sm:$0xff]
  %v1041 = vld [vmem:[%s2 + $0x1d8] sm:$0xff]
  %v1042 = vld [vmem:[%s2 + $0x1e0] sm:$0xff]
  %v1043 = vld [vmem:[%s2 + $0x1e8] sm:$0xff]
  %v1044 = vld [vmem:[%s2 + $0x1f0] sm:$0xff]
  %v1045 = vld [vmem:[%s2 + $0x1f8] sm:$0xff]
  %s1046 = scalar_lea.vmem %s9, 8
  %v1047 = vld [vmem:[%s1046] sm:$0x7]
  %v1049 = vsel %vm172, %v982, 0
  %v1052 = vsel %vm172, %v983, 0
  %v1055 = vsel %vm172, %v984, 0
  %v1058 = vsel %vm172, %v985, 0
  %v1061 = vsel %vm172, %v986, 0
  %v1064 = vsel %vm172, %v987, 0
  %v1067 = vsel %vm172, %v988, 0
  %v1070 = vsel %vm172, %v989, 0
  %v1073 = vsel %vm172, %v990, 0
  %v1076 = vsel %vm172, %v991, 0
  %v1079 = vsel %vm172, %v992, 0
  %v1082 = vsel %vm172, %v993, 0
  %v1085 = vsel %vm172, %v994, 0
  %v1088 = vsel %vm172, %v995, 0
  %v1091 = vsel %vm172, %v996, 0
  %v1094 = vsel %vm172, %v997, 0
  %v1097 = vsel %vm172, %v998, 0
  %v1100 = vsel %vm172, %v999, 0
  %v1103 = vsel %vm172, %v1000, 0
  %v1106 = vsel %vm172, %v1001, 0
  %v1109 = vsel %vm172, %v1002, 0
  %v1112 = vsel %vm172, %v1003, 0
  %v1115 = vsel %vm172, %v1004, 0
  %v1118 = vsel %vm172, %v1005, 0
  %v1121 = vsel %vm172, %v1006, 0
  %v1124 = vsel %vm172, %v1007, 0
  %v1127 = vsel %vm172, %v1008, 0
  %v1130 = vsel %vm172, %v1009, 0
  %v1133 = vsel %vm172, %v1010, 0
  %v1136 = vsel %vm172, %v1011, 0
  %v1139 = vsel %vm172, %v1012, 0
  %v1142 = vsel %vm172, %v1013, 0
  %v1145 = vsel %vm172, %v1014, 0
  %v1148 = vsel %vm172, %v1015, 0
  %v1151 = vsel %vm172, %v1016, 0
  %v1154 = vsel %vm172, %v1017, 0
  %v1157 = vsel %vm172, %v1018, 0
  %v1160 = vsel %vm172, %v1019, 0
  %v1163 = vsel %vm172, %v1020, 0
  %v1166 = vsel %vm172, %v1021, 0
  %v1169 = vsel %vm172, %v1022, 0
  %v1172 = vsel %vm172, %v1023, 0
  %v1175 = vsel %vm172, %v1024, 0
  %v1178 = vsel %vm172, %v1025, 0
  %v1181 = vsel %vm172, %v1026, 0
  %v1184 = vsel %vm172, %v1027, 0
  %v1187 = vsel %vm172, %v1028, 0
  %v1190 = vsel %vm172, %v1029, 0
  %v1193 = vsel %vm172, %v1030, 0
  %v1196 = vsel %vm172, %v1031, 0
  %v1199 = vsel %vm172, %v1032, 0
  %v1202 = vsel %vm172, %v1033, 0
  %v1205 = vsel %vm172, %v1034, 0
  %v1208 = vsel %vm172, %v1035, 0
  %v1211 = vsel %vm172, %v1036, 0
  %v1214 = vsel %vm172, %v1037, 0
  %v1217 = vsel %vm172, %v1038, 0
  %v1220 = vsel %vm172, %v1039, 0
  %v1223 = vsel %vm172, %v1040, 0
  %v1226 = vsel %vm172, %v1041, 0
  %v1229 = vsel %vm172, %v1042, 0
  %v1232 = vsel %vm172, %v1043, 0
  %v1235 = vsel %vm172, %v1044, 0
  %v1238 = vsel %vm172, %v1045, 0
  %v1241 = vsel %vm365, %v1047, 0
  %1243 = vmatpush.msra.mxu0 0.0
  %1244 = vmatpush.msra.mxu0 0.0
  %1245 = vmatpush.msra.mxu0 0.0
  %1246 = vmatpush.msra.mxu0 0.0
  %1247 = vmatpush.msra.mxu0 0.0
  %1248 = vmatpush.msra.mxu0 0.0
  %1249 = vmatpush.msra.mxu0 0.0
  %1250 = vmatpush.msra.mxu0 0.0
  %1251 = vmatpush.msra.mxu0 0.0
  %1252 = vmatpush.msra.mxu0 0.0
  %1253 = vmatpush.msra.mxu0 0.0
  %1254 = vmatpush.msra.mxu0 0.0
  %1255 = vmatpush.msra.mxu0 0.0
  %1256 = vmatpush.msra.mxu0 0.0
  %1257 = vmatpush.msra.mxu0 0.0
  %1258 = vmatpush.msra.mxu0 %v1241
  %1259 = vmatmul.f32.gmra.mxu0 %v1049
  %v1260 = vpop.f32.mrf.mxu0
  %v1261 = vadd.f32 0.0, %v1260
  %1262 = vmatmul.f32.gmra.mxu0 %v1052
  %v1263 = vpop.f32.mrf.mxu0
  %v1264 = vadd.f32 0.0, %v1263
  %1265 = vmatmul.f32.gmra.mxu0 %v1055
  %v1266 = vpop.f32.mrf.mxu0
  %v1267 = vadd.f32 0.0, %v1266
  %1268 = vmatmul.f32.gmra.mxu0 %v1058
  %v1269 = vpop.f32.mrf.mxu0
  %v1270 = vadd.f32 0.0, %v1269
  %1271 = vmatmul.f32.gmra.mxu0 %v1061
  %v1272 = vpop.f32.mrf.mxu0
  %v1273 = vadd.f32 0.0, %v1272
  %1274 = vmatmul.f32.gmra.mxu0 %v1064
  %v1275 = vpop.f32.mrf.mxu0
  %v1276 = vadd.f32 0.0, %v1275
  %1277 = vmatmul.f32.gmra.mxu0 %v1067
  %v1278 = vpop.f32.mrf.mxu0
  %v1279 = vadd.f32 0.0, %v1278
  %1280 = vmatmul.f32.gmra.mxu0 %v1070
  %v1281 = vpop.f32.mrf.mxu0
  %v1282 = vadd.f32 0.0, %v1281
  %1283 = vmatmul.f32.gmra.mxu0 %v1073
  %v1284 = vpop.f32.mrf.mxu0
  %v1285 = vadd.f32 0.0, %v1284
  %1286 = vmatmul.f32.gmra.mxu0 %v1076
  %v1287 = vpop.f32.mrf.mxu0
  %v1288 = vadd.f32 0.0, %v1287
  %1289 = vmatmul.f32.gmra.mxu0 %v1079
  %v1290 = vpop.f32.mrf.mxu0
  %v1291 = vadd.f32 0.0, %v1290
  %1292 = vmatmul.f32.gmra.mxu0 %v1082
  %v1293 = vpop.f32.mrf.mxu0
  %v1294 = vadd.f32 0.0, %v1293
  %1295 = vmatmul.f32.gmra.mxu0 %v1085
  %v1296 = vpop.f32.mrf.mxu0
  %v1297 = vadd.f32 0.0, %v1296
  %1298 = vmatmul.f32.gmra.mxu0 %v1088
  %v1299 = vpop.f32.mrf.mxu0
  %v1300 = vadd.f32 0.0, %v1299
  %1301 = vmatmul.f32.gmra.mxu0 %v1091
  %v1302 = vpop.f32.mrf.mxu0
  %v1303 = vadd.f32 0.0, %v1302
  %1304 = vmatmul.f32.gmra.mxu0 %v1094
  %v1305 = vpop.f32.mrf.mxu0
  %v1306 = vadd.f32 0.0, %v1305
  %1307 = vmatmul.f32.gmra.mxu0 %v1097
  %v1308 = vpop.f32.mrf.mxu0
  %v1309 = vadd.f32 0.0, %v1308
  %1310 = vmatmul.f32.gmra.mxu0 %v1100
  %v1311 = vpop.f32.mrf.mxu0
  %v1312 = vadd.f32 0.0, %v1311
  %1313 = vmatmul.f32.gmra.mxu0 %v1103
  %v1314 = vpop.f32.mrf.mxu0
  %v1315 = vadd.f32 0.0, %v1314
  %1316 = vmatmul.f32.gmra.mxu0 %v1106
  %v1317 = vpop.f32.mrf.mxu0
  %v1318 = vadd.f32 0.0, %v1317
  %1319 = vmatmul.f32.gmra.mxu0 %v1109
  %v1320 = vpop.f32.mrf.mxu0
  %v1321 = vadd.f32 0.0, %v1320
  %1322 = vmatmul.f32.gmra.mxu0 %v1112
  %v1323 = vpop.f32.mrf.mxu0
  %v1324 = vadd.f32 0.0, %v1323
  %1325 = vmatmul.f32.gmra.mxu0 %v1115
  %v1326 = vpop.f32.mrf.mxu0
  %v1327 = vadd.f32 0.0, %v1326
  %1328 = vmatmul.f32.gmra.mxu0 %v1118
  %v1329 = vpop.f32.mrf.mxu0
  %v1330 = vadd.f32 0.0, %v1329
  %1331 = vmatmul.f32.gmra.mxu0 %v1121
  %v1332 = vpop.f32.mrf.mxu0
  %v1333 = vadd.f32 0.0, %v1332
  %1334 = vmatmul.f32.gmra.mxu0 %v1124
  %v1335 = vpop.f32.mrf.mxu0
  %v1336 = vadd.f32 0.0, %v1335
  %1337 = vmatmul.f32.gmra.mxu0 %v1127
  %v1338 = vpop.f32.mrf.mxu0
  %v1339 = vadd.f32 0.0, %v1338
  %1340 = vmatmul.f32.gmra.mxu0 %v1130
  %v1341 = vpop.f32.mrf.mxu0
  %v1342 = vadd.f32 0.0, %v1341
  %1343 = vmatmul.f32.gmra.mxu0 %v1133
  %v1344 = vpop.f32.mrf.mxu0
  %v1345 = vadd.f32 0.0, %v1344
  %1346 = vmatmul.f32.gmra.mxu0 %v1136
  %v1347 = vpop.f32.mrf.mxu0
  %v1348 = vadd.f32 0.0, %v1347
  %1349 = vmatmul.f32.gmra.mxu0 %v1139
  %v1350 = vpop.f32.mrf.mxu0
  %v1351 = vadd.f32 0.0, %v1350
  %1352 = vmatmul.f32.gmra.mxu0 %v1142
  %v1353 = vpop.f32.mrf.mxu0
  %v1354 = vadd.f32 0.0, %v1353
  %1355 = vmatmul.f32.gmra.mxu0 %v1145
  %v1356 = vpop.f32.mrf.mxu0
  %v1357 = vadd.f32 0.0, %v1356
  %1358 = vmatmul.f32.gmra.mxu0 %v1148
  %v1359 = vpop.f32.mrf.mxu0
  %v1360 = vadd.f32 0.0, %v1359
  %1361 = vmatmul.f32.gmra.mxu0 %v1151
  %v1362 = vpop.f32.mrf.mxu0
  %v1363 = vadd.f32 0.0, %v1362
  %1364 = vmatmul.f32.gmra.mxu0 %v1154
  %v1365 = vpop.f32.mrf.mxu0
  %v1366 = vadd.f32 0.0, %v1365
  %1367 = vmatmul.f32.gmra.mxu0 %v1157
  %v1368 = vpop.f32.mrf.mxu0
  %v1369 = vadd.f32 0.0, %v1368
  %1370 = vmatmul.f32.gmra.mxu0 %v1160
  %v1371 = vpop.f32.mrf.mxu0
  %v1372 = vadd.f32 0.0, %v1371
  %1373 = vmatmul.f32.gmra.mxu0 %v1163
  %v1374 = vpop.f32.mrf.mxu0
  %v1375 = vadd.f32 0.0, %v1374
  %1376 = vmatmul.f32.gmra.mxu0 %v1166
  %v1377 = vpop.f32.mrf.mxu0
  %v1378 = vadd.f32 0.0, %v1377
  %1379 = vmatmul.f32.gmra.mxu0 %v1169
  %v1380 = vpop.f32.mrf.mxu0
  %v1381 = vadd.f32 0.0, %v1380
  %1382 = vmatmul.f32.gmra.mxu0 %v1172
  %v1383 = vpop.f32.mrf.mxu0
  %v1384 = vadd.f32 0.0, %v1383
  %1385 = vmatmul.f32.gmra.mxu0 %v1175
  %v1386 = vpop.f32.mrf.mxu0
  %v1387 = vadd.f32 0.0, %v1386
  %1388 = vmatmul.f32.gmra.mxu0 %v1178
  %v1389 = vpop.f32.mrf.mxu0
  %v1390 = vadd.f32 0.0, %v1389
  %1391 = vmatmul.f32.gmra.mxu0 %v1181
  %v1392 = vpop.f32.mrf.mxu0
  %v1393 = vadd.f32 0.0, %v1392
  %1394 = vmatmul.f32.gmra.mxu0 %v1184
  %v1395 = vpop.f32.mrf.mxu0
  %v1396 = vadd.f32 0.0, %v1395
  %1397 = vmatmul.f32.gmra.mxu0 %v1187
  %v1398 = vpop.f32.mrf.mxu0
  %v1399 = vadd.f32 0.0, %v1398
  %1400 = vmatmul.f32.gmra.mxu0 %v1190
  %v1401 = vpop.f32.mrf.mxu0
  %v1402 = vadd.f32 0.0, %v1401
  %1403 = vmatmul.f32.gmra.mxu0 %v1193
  %v1404 = vpop.f32.mrf.mxu0
  %v1405 = vadd.f32 0.0, %v1404
  %1406 = vmatmul.f32.gmra.mxu0 %v1196
  %v1407 = vpop.f32.mrf.mxu0
  %v1408 = vadd.f32 0.0, %v1407
  %1409 = vmatmul.f32.gmra.mxu0 %v1199
  %v1410 = vpop.f32.mrf.mxu0
  %v1411 = vadd.f32 0.0, %v1410
  %1412 = vmatmul.f32.gmra.mxu0 %v1202
  %v1413 = vpop.f32.mrf.mxu0
  %v1414 = vadd.f32 0.0, %v1413
  %1415 = vmatmul.f32.gmra.mxu0 %v1205
  %v1416 = vpop.f32.mrf.mxu0
  %v1417 = vadd.f32 0.0, %v1416
  %1418 = vmatmul.f32.gmra.mxu0 %v1208
  %v1419 = vpop.f32.mrf.mxu0
  %v1420 = vadd.f32 0.0, %v1419
  %1421 = vmatmul.f32.gmra.mxu0 %v1211
  %v1422 = vpop.f32.mrf.mxu0
  %v1423 = vadd.f32 0.0, %v1422
  %1424 = vmatmul.f32.gmra.mxu0 %v1214
  %v1425 = vpop.f32.mrf.mxu0
  %v1426 = vadd.f32 0.0, %v1425
  %1427 = vmatmul.f32.gmra.mxu0 %v1217
  %v1428 = vpop.f32.mrf.mxu0
  %v1429 = vadd.f32 0.0, %v1428
  %1430 = vmatmul.f32.gmra.mxu0 %v1220
  %v1431 = vpop.f32.mrf.mxu0
  %v1432 = vadd.f32 0.0, %v1431
  %1433 = vmatmul.f32.gmra.mxu0 %v1223
  %v1434 = vpop.f32.mrf.mxu0
  %v1435 = vadd.f32 0.0, %v1434
  %1436 = vmatmul.f32.gmra.mxu0 %v1226
  %v1437 = vpop.f32.mrf.mxu0
  %v1438 = vadd.f32 0.0, %v1437
  %1439 = vmatmul.f32.gmra.mxu0 %v1229
  %v1440 = vpop.f32.mrf.mxu0
  %v1441 = vadd.f32 0.0, %v1440
  %1442 = vmatmul.f32.gmra.mxu0 %v1232
  %v1443 = vpop.f32.mrf.mxu0
  %v1444 = vadd.f32 0.0, %v1443
  %1445 = vmatmul.f32.gmra.mxu0 %v1235
  %v1446 = vpop.f32.mrf.mxu0
  %v1447 = vadd.f32 0.0, %v1446
  %1448 = vmatmul.f32.gmra.mxu0 %v1238
  %v1449 = vpop.f32.mrf.mxu0
  %v1450 = vadd.f32 0.0, %v1449
  %1451 = vdwg.mxu0
  %v1452 = vadd.f32 %v791, %v1261
  %v1453 = vadd.f32 %v794, %v1264
  %v1454 = vadd.f32 %v797, %v1267
  %v1455 = vadd.f32 %v800, %v1270
  %v1456 = vadd.f32 %v803, %v1273
  %v1457 = vadd.f32 %v806, %v1276
  %v1458 = vadd.f32 %v809, %v1279
  %v1459 = vadd.f32 %v812, %v1282
  %v1460 = vadd.f32 %v815, %v1285
  %v1461 = vadd.f32 %v818, %v1288
  %v1462 = vadd.f32 %v821, %v1291
  %v1463 = vadd.f32 %v824, %v1294
  %v1464 = vadd.f32 %v827, %v1297
  %v1465 = vadd.f32 %v830, %v1300
  %v1466 = vadd.f32 %v833, %v1303
  %v1467 = vadd.f32 %v836, %v1306
  %v1468 = vadd.f32 %v839, %v1309
  %v1469 = vadd.f32 %v842, %v1312
  %v1470 = vadd.f32 %v845, %v1315
  %v1471 = vadd.f32 %v848, %v1318
  %v1472 = vadd.f32 %v851, %v1321
  %v1473 = vadd.f32 %v854, %v1324
  %v1474 = vadd.f32 %v857, %v1327
  %v1475 = vadd.f32 %v860, %v1330
  %v1476 = vadd.f32 %v863, %v1333
  %v1477 = vadd.f32 %v866, %v1336
  %v1478 = vadd.f32 %v869, %v1339
  %v1479 = vadd.f32 %v872, %v1342
  %v1480 = vadd.f32 %v875, %v1345
  %v1481 = vadd.f32 %v878, %v1348
  %v1482 = vadd.f32 %v881, %v1351
  %v1483 = vadd.f32 %v884, %v1354
  %v1484 = vadd.f32 %v887, %v1357
  %v1485 = vadd.f32 %v890, %v1360
  %v1486 = vadd.f32 %v893, %v1363
  %v1487 = vadd.f32 %v896, %v1366
  %v1488 = vadd.f32 %v899, %v1369
  %v1489 = vadd.f32 %v902, %v1372
  %v1490 = vadd.f32 %v905, %v1375
  %v1491 = vadd.f32 %v908, %v1378
  %v1492 = vadd.f32 %v911, %v1381
  %v1493 = vadd.f32 %v914, %v1384
  %v1494 = vadd.f32 %v917, %v1387
  %v1495 = vadd.f32 %v920, %v1390
  %v1496 = vadd.f32 %v923, %v1393
  %v1497 = vadd.f32 %v926, %v1396
  %v1498 = vadd.f32 %v929, %v1399
  %v1499 = vadd.f32 %v932, %v1402
  %v1500 = vadd.f32 %v935, %v1405
  %v1501 = vadd.f32 %v938, %v1408
  %v1502 = vadd.f32 %v941, %v1411
  %v1503 = vadd.f32 %v944, %v1414
  %v1504 = vadd.f32 %v947, %v1417
  %v1505 = vadd.f32 %v950, %v1420
  %v1506 = vadd.f32 %v953, %v1423
  %v1507 = vadd.f32 %v956, %v1426
  %v1508 = vadd.f32 %v959, %v1429
  %v1509 = vadd.f32 %v962, %v1432
  %v1510 = vadd.f32 %v965, %v1435
  %v1511 = vadd.f32 %v968, %v1438
  %v1512 = vadd.f32 %v971, %v1441
  %v1513 = vadd.f32 %v974, %v1444
  %v1514 = vadd.f32 %v977, %v1447
  %v1515 = vadd.f32 %v980, %v1450
  %v1516 = vld [vmem:[%s3] sm:$0xff]
  %v1517 = vld [vmem:[%s3 + $0x8] sm:$0xff]
  %v1518 = vld [vmem:[%s3 + $0x10] sm:$0xff]
  %v1519 = vld [vmem:[%s3 + $0x18] sm:$0xff]
  %v1520 = vld [vmem:[%s3 + $0x20] sm:$0xff]
  %v1521 = vld [vmem:[%s3 + $0x28] sm:$0xff]
  %v1522 = vld [vmem:[%s3 + $0x30] sm:$0xff]
  %v1523 = vld [vmem:[%s3 + $0x38] sm:$0xff]
  %v1524 = vld [vmem:[%s3 + $0x40] sm:$0xff]
  %v1525 = vld [vmem:[%s3 + $0x48] sm:$0xff]
  %v1526 = vld [vmem:[%s3 + $0x50] sm:$0xff]
  %v1527 = vld [vmem:[%s3 + $0x58] sm:$0xff]
  %v1528 = vld [vmem:[%s3 + $0x60] sm:$0xff]
  %v1529 = vld [vmem:[%s3 + $0x68] sm:$0xff]
  %v1530 = vld [vmem:[%s3 + $0x70] sm:$0xff]
  %v1531 = vld [vmem:[%s3 + $0x78] sm:$0xff]
  %v1532 = vld [vmem:[%s3 + $0x80] sm:$0xff]
  %v1533 = vld [vmem:[%s3 + $0x88] sm:$0xff]
  %v1534 = vld [vmem:[%s3 + $0x90] sm:$0xff]
  %v1535 = vld [vmem:[%s3 + $0x98] sm:$0xff]
  %v1536 = vld [vmem:[%s3 + $0xa0] sm:$0xff]
  %v1537 = vld [vmem:[%s3 + $0xa8] sm:$0xff]
  %v1538 = vld [vmem:[%s3 + $0xb0] sm:$0xff]
  %v1539 = vld [vmem:[%s3 + $0xb8] sm:$0xff]
  %v1540 = vld [vmem:[%s3 + $0xc0] sm:$0xff]
  %v1541 = vld [vmem:[%s3 + $0xc8] sm:$0xff]
  %v1542 = vld [vmem:[%s3 + $0xd0] sm:$0xff]
  %v1543 = vld [vmem:[%s3 + $0xd8] sm:$0xff]
  %v1544 = vld [vmem:[%s3 + $0xe0] sm:$0xff]
  %v1545 = vld [vmem:[%s3 + $0xe8] sm:$0xff]
  %v1546 = vld [vmem:[%s3 + $0xf0] sm:$0xff]
  %v1547 = vld [vmem:[%s3 + $0xf8] sm:$0xff]
  %v1548 = vld [vmem:[%s3 + $0x100] sm:$0xff]
  %v1549 = vld [vmem:[%s3 + $0x108] sm:$0xff]
  %v1550 = vld [vmem:[%s3 + $0x110] sm:$0xff]
  %v1551 = vld [vmem:[%s3 + $0x118] sm:$0xff]
  %v1552 = vld [vmem:[%s3 + $0x120] sm:$0xff]
  %v1553 = vld [vmem:[%s3 + $0x128] sm:$0xff]
  %v1554 = vld [vmem:[%s3 + $0x130] sm:$0xff]
  %v1555 = vld [vmem:[%s3 + $0x138] sm:$0xff]
  %v1556 = vld [vmem:[%s3 + $0x140] sm:$0xff]
  %v1557 = vld [vmem:[%s3 + $0x148] sm:$0xff]
  %v1558 = vld [vmem:[%s3 + $0x150] sm:$0xff]
  %v1559 = vld [vmem:[%s3 + $0x158] sm:$0xff]
  %v1560 = vld [vmem:[%s3 + $0x160] sm:$0xff]
  %v1561 = vld [vmem:[%s3 + $0x168] sm:$0xff]
  %v1562 = vld [vmem:[%s3 + $0x170] sm:$0xff]
  %v1563 = vld [vmem:[%s3 + $0x178] sm:$0xff]
  %v1564 = vld [vmem:[%s3 + $0x180] sm:$0xff]
  %v1565 = vld [vmem:[%s3 + $0x188] sm:$0xff]
  %v1566 = vld [vmem:[%s3 + $0x190] sm:$0xff]
  %v1567 = vld [vmem:[%s3 + $0x198] sm:$0xff]
  %v1568 = vld [vmem:[%s3 + $0x1a0] sm:$0xff]
  %v1569 = vld [vmem:[%s3 + $0x1a8] sm:$0xff]
  %v1570 = vld [vmem:[%s3 + $0x1b0] sm:$0xff]
  %v1571 = vld [vmem:[%s3 + $0x1b8] sm:$0xff]
  %v1572 = vld [vmem:[%s3 + $0x1c0] sm:$0xff]
  %v1573 = vld [vmem:[%s3 + $0x1c8] sm:$0xff]
  %v1574 = vld [vmem:[%s3 + $0x1d0] sm:$0xff]
  %v1575 = vld [vmem:[%s3 + $0x1d8] sm:$0xff]
  %v1576 = vld [vmem:[%s3 + $0x1e0] sm:$0xff]
  %v1577 = vld [vmem:[%s3 + $0x1e8] sm:$0xff]
  %v1578 = vld [vmem:[%s3 + $0x1f0] sm:$0xff]
  %v1579 = vld [vmem:[%s3 + $0x1f8] sm:$0xff]
  %s1580 = scalar_lea.vmem %s9, 12
  %v1581 = vld [vmem:[%s1580] sm:$0x7]
  %v1583 = vsel %vm172, %v1516, 0
  %v1586 = vsel %vm172, %v1517, 0
  %v1589 = vsel %vm172, %v1518, 0
  %v1592 = vsel %vm172, %v1519, 0
  %v1595 = vsel %vm172, %v1520, 0
  %v1598 = vsel %vm172, %v1521, 0
  %v1601 = vsel %vm172, %v1522, 0
  %v1604 = vsel %vm172, %v1523, 0
  %v1607 = vsel %vm172, %v1524, 0
  %v1610 = vsel %vm172, %v1525, 0
  %v1613 = vsel %vm172, %v1526, 0
  %v1616 = vsel %vm172, %v1527, 0
  %v1619 = vsel %vm172, %v1528, 0
  %v1622 = vsel %vm172, %v1529, 0
  %v1625 = vsel %vm172, %v1530, 0
  %v1628 = vsel %vm172, %v1531, 0
  %v1631 = vsel %vm172, %v1532, 0
  %v1634 = vsel %vm172, %v1533, 0
  %v1637 = vsel %vm172, %v1534, 0
  %v1640 = vsel %vm172, %v1535, 0
  %v1643 = vsel %vm172, %v1536, 0
  %v1646 = vsel %vm172, %v1537, 0
  %v1649 = vsel %vm172, %v1538, 0
  %v1652 = vsel %vm172, %v1539, 0
  %v1655 = vsel %vm172, %v1540, 0
  %v1658 = vsel %vm172, %v1541, 0
  %v1661 = vsel %vm172, %v1542, 0
  %v1664 = vsel %vm172, %v1543, 0
  %v1667 = vsel %vm172, %v1544, 0
  %v1670 = vsel %vm172, %v1545, 0
  %v1673 = vsel %vm172, %v1546, 0
  %v1676 = vsel %vm172, %v1547, 0
  %v1679 = vsel %vm172, %v1548, 0
  %v1682 = vsel %vm172, %v1549, 0
  %v1685 = vsel %vm172, %v1550, 0
  %v1688 = vsel %vm172, %v1551, 0
  %v1691 = vsel %vm172, %v1552, 0
  %v1694 = vsel %vm172, %v1553, 0
  %v1697 = vsel %vm172, %v1554, 0
  %v1700 = vsel %vm172, %v1555, 0
  %v1703 = vsel %vm172, %v1556, 0
  %v1706 = vsel %vm172, %v1557, 0
  %v1709 = vsel %vm172, %v1558, 0
  %v1712 = vsel %vm172, %v1559, 0
  %v1715 = vsel %vm172, %v1560, 0
  %v1718 = vsel %vm172, %v1561, 0
  %v1721 = vsel %vm172, %v1562, 0
  %v1724 = vsel %vm172, %v1563, 0
  %v1727 = vsel %vm172, %v1564, 0
  %v1730 = vsel %vm172, %v1565, 0
  %v1733 = vsel %vm172, %v1566, 0
  %v1736 = vsel %vm172, %v1567, 0
  %v1739 = vsel %vm172, %v1568, 0
  %v1742 = vsel %vm172, %v1569, 0
  %v1745 = vsel %vm172, %v1570, 0
  %v1748 = vsel %vm172, %v1571, 0
  %v1751 = vsel %vm172, %v1572, 0
  %v1754 = vsel %vm172, %v1573, 0
  %v1757 = vsel %vm172, %v1574, 0
  %v1760 = vsel %vm172, %v1575, 0
  %v1763 = vsel %vm172, %v1576, 0
  %v1766 = vsel %vm172, %v1577, 0
  %v1769 = vsel %vm172, %v1578, 0
  %v1772 = vsel %vm172, %v1579, 0
  %v1775 = vsel %vm365, %v1581, 0
  %1777 = vmatpush.msra.mxu0 0.0
  %1778 = vmatpush.msra.mxu0 0.0
  %1779 = vmatpush.msra.mxu0 0.0
  %1780 = vmatpush.msra.mxu0 0.0
  %1781 = vmatpush.msra.mxu0 0.0
  %1782 = vmatpush.msra.mxu0 0.0
  %1783 = vmatpush.msra.mxu0 0.0
  %1784 = vmatpush.msra.mxu0 0.0
  %1785 = vmatpush.msra.mxu0 0.0
  %1786 = vmatpush.msra.mxu0 0.0
  %1787 = vmatpush.msra.mxu0 0.0
  %1788 = vmatpush.msra.mxu0 0.0
  %1789 = vmatpush.msra.mxu0 0.0
  %1790 = vmatpush.msra.mxu0 0.0
  %1791 = vmatpush.msra.mxu0 0.0
  %1792 = vmatpush.msra.mxu0 %v1775
  %1793 = vmatmul.f32.gmra.mxu0 %v1583
  %v1794 = vpop.f32.mrf.mxu0
  %v1795 = vadd.f32 0.0, %v1794
  %1796 = vmatmul.f32.gmra.mxu0 %v1586
  %v1797 = vpop.f32.mrf.mxu0
  %v1798 = vadd.f32 0.0, %v1797
  %1799 = vmatmul.f32.gmra.mxu0 %v1589
  %v1800 = vpop.f32.mrf.mxu0
  %v1801 = vadd.f32 0.0, %v1800
  %1802 = vmatmul.f32.gmra.mxu0 %v1592
  %v1803 = vpop.f32.mrf.mxu0
  %v1804 = vadd.f32 0.0, %v1803
  %1805 = vmatmul.f32.gmra.mxu0 %v1595
  %v1806 = vpop.f32.mrf.mxu0
  %v1807 = vadd.f32 0.0, %v1806
  %1808 = vmatmul.f32.gmra.mxu0 %v1598
  %v1809 = vpop.f32.mrf.mxu0
  %v1810 = vadd.f32 0.0, %v1809
  %1811 = vmatmul.f32.gmra.mxu0 %v1601
  %v1812 = vpop.f32.mrf.mxu0
  %v1813 = vadd.f32 0.0, %v1812
  %1814 = vmatmul.f32.gmra.mxu0 %v1604
  %v1815 = vpop.f32.mrf.mxu0
  %v1816 = vadd.f32 0.0, %v1815
  %1817 = vmatmul.f32.gmra.mxu0 %v1607
  %v1818 = vpop.f32.mrf.mxu0
  %v1819 = vadd.f32 0.0, %v1818
  %1820 = vmatmul.f32.gmra.mxu0 %v1610
  %v1821 = vpop.f32.mrf.mxu0
  %v1822 = vadd.f32 0.0, %v1821
  %1823 = vmatmul.f32.gmra.mxu0 %v1613
  %v1824 = vpop.f32.mrf.mxu0
  %v1825 = vadd.f32 0.0, %v1824
  %1826 = vmatmul.f32.gmra.mxu0 %v1616
  %v1827 = vpop.f32.mrf.mxu0
  %v1828 = vadd.f32 0.0, %v1827
  %1829 = vmatmul.f32.gmra.mxu0 %v1619
  %v1830 = vpop.f32.mrf.mxu0
  %v1831 = vadd.f32 0.0, %v1830
  %1832 = vmatmul.f32.gmra.mxu0 %v1622
  %v1833 = vpop.f32.mrf.mxu0
  %v1834 = vadd.f32 0.0, %v1833
  %1835 = vmatmul.f32.gmra.mxu0 %v1625
  %v1836 = vpop.f32.mrf.mxu0
  %v1837 = vadd.f32 0.0, %v1836
  %1838 = vmatmul.f32.gmra.mxu0 %v1628
  %v1839 = vpop.f32.mrf.mxu0
  %v1840 = vadd.f32 0.0, %v1839
  %1841 = vmatmul.f32.gmra.mxu0 %v1631
  %v1842 = vpop.f32.mrf.mxu0
  %v1843 = vadd.f32 0.0, %v1842
  %1844 = vmatmul.f32.gmra.mxu0 %v1634
  %v1845 = vpop.f32.mrf.mxu0
  %v1846 = vadd.f32 0.0, %v1845
  %1847 = vmatmul.f32.gmra.mxu0 %v1637
  %v1848 = vpop.f32.mrf.mxu0
  %v1849 = vadd.f32 0.0, %v1848
  %1850 = vmatmul.f32.gmra.mxu0 %v1640
  %v1851 = vpop.f32.mrf.mxu0
  %v1852 = vadd.f32 0.0, %v1851
  %1853 = vmatmul.f32.gmra.mxu0 %v1643
  %v1854 = vpop.f32.mrf.mxu0
  %v1855 = vadd.f32 0.0, %v1854
  %1856 = vmatmul.f32.gmra.mxu0 %v1646
  %v1857 = vpop.f32.mrf.mxu0
  %v1858 = vadd.f32 0.0, %v1857
  %1859 = vmatmul.f32.gmra.mxu0 %v1649
  %v1860 = vpop.f32.mrf.mxu0
  %v1861 = vadd.f32 0.0, %v1860
  %1862 = vmatmul.f32.gmra.mxu0 %v1652
  %v1863 = vpop.f32.mrf.mxu0
  %v1864 = vadd.f32 0.0, %v1863
  %1865 = vmatmul.f32.gmra.mxu0 %v1655
  %v1866 = vpop.f32.mrf.mxu0
  %v1867 = vadd.f32 0.0, %v1866
  %1868 = vmatmul.f32.gmra.mxu0 %v1658
  %v1869 = vpop.f32.mrf.mxu0
  %v1870 = vadd.f32 0.0, %v1869
  %1871 = vmatmul.f32.gmra.mxu0 %v1661
  %v1872 = vpop.f32.mrf.mxu0
  %v1873 = vadd.f32 0.0, %v1872
  %1874 = vmatmul.f32.gmra.mxu0 %v1664
  %v1875 = vpop.f32.mrf.mxu0
  %v1876 = vadd.f32 0.0, %v1875
  %1877 = vmatmul.f32.gmra.mxu0 %v1667
  %v1878 = vpop.f32.mrf.mxu0
  %v1879 = vadd.f32 0.0, %v1878
  %1880 = vmatmul.f32.gmra.mxu0 %v1670
  %v1881 = vpop.f32.mrf.mxu0
  %v1882 = vadd.f32 0.0, %v1881
  %1883 = vmatmul.f32.gmra.mxu0 %v1673
  %v1884 = vpop.f32.mrf.mxu0
  %v1885 = vadd.f32 0.0, %v1884
  %1886 = vmatmul.f32.gmra.mxu0 %v1676
  %v1887 = vpop.f32.mrf.mxu0
  %v1888 = vadd.f32 0.0, %v1887
  %1889 = vmatmul.f32.gmra.mxu0 %v1679
  %v1890 = vpop.f32.mrf.mxu0
  %v1891 = vadd.f32 0.0, %v1890
  %1892 = vmatmul.f32.gmra.mxu0 %v1682
  %v1893 = vpop.f32.mrf.mxu0
  %v1894 = vadd.f32 0.0, %v1893
  %1895 = vmatmul.f32.gmra.mxu0 %v1685
  %v1896 = vpop.f32.mrf.mxu0
  %v1897 = vadd.f32 0.0, %v1896
  %1898 = vmatmul.f32.gmra.mxu0 %v1688
  %v1899 = vpop.f32.mrf.mxu0
  %v1900 = vadd.f32 0.0, %v1899
  %1901 = vmatmul.f32.gmra.mxu0 %v1691
  %v1902 = vpop.f32.mrf.mxu0
  %v1903 = vadd.f32 0.0, %v1902
  %1904 = vmatmul.f32.gmra.mxu0 %v1694
  %v1905 = vpop.f32.mrf.mxu0
  %v1906 = vadd.f32 0.0, %v1905
  %1907 = vmatmul.f32.gmra.mxu0 %v1697
  %v1908 = vpop.f32.mrf.mxu0
  %v1909 = vadd.f32 0.0, %v1908
  %1910 = vmatmul.f32.gmra.mxu0 %v1700
  %v1911 = vpop.f32.mrf.mxu0
  %v1912 = vadd.f32 0.0, %v1911
  %1913 = vmatmul.f32.gmra.mxu0 %v1703
  %v1914 = vpop.f32.mrf.mxu0
  %v1915 = vadd.f32 0.0, %v1914
  %1916 = vmatmul.f32.gmra.mxu0 %v1706
  %v1917 = vpop.f32.mrf.mxu0
  %v1918 = vadd.f32 0.0, %v1917
  %1919 = vmatmul.f32.gmra.mxu0 %v1709
  %v1920 = vpop.f32.mrf.mxu0
  %v1921 = vadd.f32 0.0, %v1920
  %1922 = vmatmul.f32.gmra.mxu0 %v1712
  %v1923 = vpop.f32.mrf.mxu0
  %v1924 = vadd.f32 0.0, %v1923
  %1925 = vmatmul.f32.gmra.mxu0 %v1715
  %v1926 = vpop.f32.mrf.mxu0
  %v1927 = vadd.f32 0.0, %v1926
  %1928 = vmatmul.f32.gmra.mxu0 %v1718
  %v1929 = vpop.f32.mrf.mxu0
  %v1930 = vadd.f32 0.0, %v1929
  %1931 = vmatmul.f32.gmra.mxu0 %v1721
  %v1932 = vpop.f32.mrf.mxu0
  %v1933 = vadd.f32 0.0, %v1932
  %1934 = vmatmul.f32.gmra.mxu0 %v1724
  %v1935 = vpop.f32.mrf.mxu0
  %v1936 = vadd.f32 0.0, %v1935
  %1937 = vmatmul.f32.gmra.mxu0 %v1727
  %v1938 = vpop.f32.mrf.mxu0
  %v1939 = vadd.f32 0.0, %v1938
  %1940 = vmatmul.f32.gmra.mxu0 %v1730
  %v1941 = vpop.f32.mrf.mxu0
  %v1942 = vadd.f32 0.0, %v1941
  %1943 = vmatmul.f32.gmra.mxu0 %v1733
  %v1944 = vpop.f32.mrf.mxu0
  %v1945 = vadd.f32 0.0, %v1944
  %1946 = vmatmul.f32.gmra.mxu0 %v1736
  %v1947 = vpop.f32.mrf.mxu0
  %v1948 = vadd.f32 0.0, %v1947
  %1949 = vmatmul.f32.gmra.mxu0 %v1739
  %v1950 = vpop.f32.mrf.mxu0
  %v1951 = vadd.f32 0.0, %v1950
  %1952 = vmatmul.f32.gmra.mxu0 %v1742
  %v1953 = vpop.f32.mrf.mxu0
  %v1954 = vadd.f32 0.0, %v1953
  %1955 = vmatmul.f32.gmra.mxu0 %v1745
  %v1956 = vpop.f32.mrf.mxu0
  %v1957 = vadd.f32 0.0, %v1956
  %1958 = vmatmul.f32.gmra.mxu0 %v1748
  %v1959 = vpop.f32.mrf.mxu0
  %v1960 = vadd.f32 0.0, %v1959
  %1961 = vmatmul.f32.gmra.mxu0 %v1751
  %v1962 = vpop.f32.mrf.mxu0
  %v1963 = vadd.f32 0.0, %v1962
  %1964 = vmatmul.f32.gmra.mxu0 %v1754
  %v1965 = vpop.f32.mrf.mxu0
  %v1966 = vadd.f32 0.0, %v1965
  %1967 = vmatmul.f32.gmra.mxu0 %v1757
  %v1968 = vpop.f32.mrf.mxu0
  %v1969 = vadd.f32 0.0, %v1968
  %1970 = vmatmul.f32.gmra.mxu0 %v1760
  %v1971 = vpop.f32.mrf.mxu0
  %v1972 = vadd.f32 0.0, %v1971
  %1973 = vmatmul.f32.gmra.mxu0 %v1763
  %v1974 = vpop.f32.mrf.mxu0
  %v1975 = vadd.f32 0.0, %v1974
  %1976 = vmatmul.f32.gmra.mxu0 %v1766
  %v1977 = vpop.f32.mrf.mxu0
  %v1978 = vadd.f32 0.0, %v1977
  %1979 = vmatmul.f32.gmra.mxu0 %v1769
  %v1980 = vpop.f32.mrf.mxu0
  %v1981 = vadd.f32 0.0, %v1980
  %1982 = vmatmul.f32.gmra.mxu0 %v1772
  %v1983 = vpop.f32.mrf.mxu0
  %v1984 = vadd.f32 0.0, %v1983
  %1985 = vdwg.mxu0
  %v1986 = vadd.f32 %v1452, %v1795
  %v1987 = vadd.f32 %v1453, %v1798
  %v1988 = vadd.f32 %v1454, %v1801
  %v1989 = vadd.f32 %v1455, %v1804
  %v1990 = vadd.f32 %v1456, %v1807
  %v1991 = vadd.f32 %v1457, %v1810
  %v1992 = vadd.f32 %v1458, %v1813
  %v1993 = vadd.f32 %v1459, %v1816
  %v1994 = vadd.f32 %v1460, %v1819
  %v1995 = vadd.f32 %v1461, %v1822
  %v1996 = vadd.f32 %v1462, %v1825
  %v1997 = vadd.f32 %v1463, %v1828
  %v1998 = vadd.f32 %v1464, %v1831
  %v1999 = vadd.f32 %v1465, %v1834
  %v2000 = vadd.f32 %v1466, %v1837
  %v2001 = vadd.f32 %v1467, %v1840
  %v2002 = vadd.f32 %v1468, %v1843
  %v2003 = vadd.f32 %v1469, %v1846
  %v2004 = vadd.f32 %v1470, %v1849
  %v2005 = vadd.f32 %v1471, %v1852
  %v2006 = vadd.f32 %v1472, %v1855
  %v2007 = vadd.f32 %v1473, %v1858
  %v2008 = vadd.f32 %v1474, %v1861
  %v2009 = vadd.f32 %v1475, %v1864
  %v2010 = vadd.f32 %v1476, %v1867
  %v2011 = vadd.f32 %v1477, %v1870
  %v2012 = vadd.f32 %v1478, %v1873
  %v2013 = vadd.f32 %v1479, %v1876
  %v2014 = vadd.f32 %v1480, %v1879
  %v2015 = vadd.f32 %v1481, %v1882
  %v2016 = vadd.f32 %v1482, %v1885
  %v2017 = vadd.f32 %v1483, %v1888
  %v2018 = vadd.f32 %v1484, %v1891
  %v2019 = vadd.f32 %v1485, %v1894
  %v2020 = vadd.f32 %v1486, %v1897
  %v2021 = vadd.f32 %v1487, %v1900
  %v2022 = vadd.f32 %v1488, %v1903
  %v2023 = vadd.f32 %v1489, %v1906
  %v2024 = vadd.f32 %v1490, %v1909
  %v2025 = vadd.f32 %v1491, %v1912
  %v2026 = vadd.f32 %v1492, %v1915
  %v2027 = vadd.f32 %v1493, %v1918
  %v2028 = vadd.f32 %v1494, %v1921
  %v2029 = vadd.f32 %v1495, %v1924
  %v2030 = vadd.f32 %v1496, %v1927
  %v2031 = vadd.f32 %v1497, %v1930
  %v2032 = vadd.f32 %v1498, %v1933
  %v2033 = vadd.f32 %v1499, %v1936
  %v2034 = vadd.f32 %v1500, %v1939
  %v2035 = vadd.f32 %v1501, %v1942
  %v2036 = vadd.f32 %v1502, %v1945
  %v2037 = vadd.f32 %v1503, %v1948
  %v2038 = vadd.f32 %v1504, %v1951
  %v2039 = vadd.f32 %v1505, %v1954
  %v2040 = vadd.f32 %v1506, %v1957
  %v2041 = vadd.f32 %v1507, %v1960
  %v2042 = vadd.f32 %v1508, %v1963
  %v2043 = vadd.f32 %v1509, %v1966
  %v2044 = vadd.f32 %v1510, %v1969
  %v2045 = vadd.f32 %v1511, %v1972
  %v2046 = vadd.f32 %v1512, %v1975
  %v2047 = vadd.f32 %v1513, %v1978
  %v2048 = vadd.f32 %v1514, %v1981
  %v2049 = vadd.f32 %v1515, %v1984
  %v2050 = vld [vmem:[%s4] sm:$0xff]
  %v2051 = vld [vmem:[%s4 + $0x8] sm:$0xff]
  %v2052 = vld [vmem:[%s4 + $0x10] sm:$0xff]
  %v2053 = vld [vmem:[%s4 + $0x18] sm:$0xff]
  %v2054 = vld [vmem:[%s4 + $0x20] sm:$0xff]
  %v2055 = vld [vmem:[%s4 + $0x28] sm:$0xff]
  %v2056 = vld [vmem:[%s4 + $0x30] sm:$0xff]
  %v2057 = vld [vmem:[%s4 + $0x38] sm:$0xff]
  %v2058 = vld [vmem:[%s4 + $0x40] sm:$0xff]
  %v2059 = vld [vmem:[%s4 + $0x48] sm:$0xff]
  %v2060 = vld [vmem:[%s4 + $0x50] sm:$0xff]
  %v2061 = vld [vmem:[%s4 + $0x58] sm:$0xff]
  %v2062 = vld [vmem:[%s4 + $0x60] sm:$0xff]
  %v2063 = vld [vmem:[%s4 + $0x68] sm:$0xff]
  %v2064 = vld [vmem:[%s4 + $0x70] sm:$0xff]
  %v2065 = vld [vmem:[%s4 + $0x78] sm:$0xff]
  %v2066 = vld [vmem:[%s4 + $0x80] sm:$0xff]
  %v2067 = vld [vmem:[%s4 + $0x88] sm:$0xff]
  %v2068 = vld [vmem:[%s4 + $0x90] sm:$0xff]
  %v2069 = vld [vmem:[%s4 + $0x98] sm:$0xff]
  %v2070 = vld [vmem:[%s4 + $0xa0] sm:$0xff]
  %v2071 = vld [vmem:[%s4 + $0xa8] sm:$0xff]
  %v2072 = vld [vmem:[%s4 + $0xb0] sm:$0xff]
  %v2073 = vld [vmem:[%s4 + $0xb8] sm:$0xff]
  %v2074 = vld [vmem:[%s4 + $0xc0] sm:$0xff]
  %v2075 = vld [vmem:[%s4 + $0xc8] sm:$0xff]
  %v2076 = vld [vmem:[%s4 + $0xd0] sm:$0xff]
  %v2077 = vld [vmem:[%s4 + $0xd8] sm:$0xff]
  %v2078 = vld [vmem:[%s4 + $0xe0] sm:$0xff]
  %v2079 = vld [vmem:[%s4 + $0xe8] sm:$0xff]
  %v2080 = vld [vmem:[%s4 + $0xf0] sm:$0xff]
  %v2081 = vld [vmem:[%s4 + $0xf8] sm:$0xff]
  %v2082 = vld [vmem:[%s4 + $0x100] sm:$0xff]
  %v2083 = vld [vmem:[%s4 + $0x108] sm:$0xff]
  %v2084 = vld [vmem:[%s4 + $0x110] sm:$0xff]
  %v2085 = vld [vmem:[%s4 + $0x118] sm:$0xff]
  %v2086 = vld [vmem:[%s4 + $0x120] sm:$0xff]
  %v2087 = vld [vmem:[%s4 + $0x128] sm:$0xff]
  %v2088 = vld [vmem:[%s4 + $0x130] sm:$0xff]
  %v2089 = vld [vmem:[%s4 + $0x138] sm:$0xff]
  %v2090 = vld [vmem:[%s4 + $0x140] sm:$0xff]
  %v2091 = vld [vmem:[%s4 + $0x148] sm:$0xff]
  %v2092 = vld [vmem:[%s4 + $0x150] sm:$0xff]
  %v2093 = vld [vmem:[%s4 + $0x158] sm:$0xff]
  %v2094 = vld [vmem:[%s4 + $0x160] sm:$0xff]
  %v2095 = vld [vmem:[%s4 + $0x168] sm:$0xff]
  %v2096 = vld [vmem:[%s4 + $0x170] sm:$0xff]
  %v2097 = vld [vmem:[%s4 + $0x178] sm:$0xff]
  %v2098 = vld [vmem:[%s4 + $0x180] sm:$0xff]
  %v2099 = vld [vmem:[%s4 + $0x188] sm:$0xff]
  %v2100 = vld [vmem:[%s4 + $0x190] sm:$0xff]
  %v2101 = vld [vmem:[%s4 + $0x198] sm:$0xff]
  %v2102 = vld [vmem:[%s4 + $0x1a0] sm:$0xff]
  %v2103 = vld [vmem:[%s4 + $0x1a8] sm:$0xff]
  %v2104 = vld [vmem:[%s4 + $0x1b0] sm:$0xff]
  %v2105 = vld [vmem:[%s4 + $0x1b8] sm:$0xff]
  %v2106 = vld [vmem:[%s4 + $0x1c0] sm:$0xff]
  %v2107 = vld [vmem:[%s4 + $0x1c8] sm:$0xff]
  %v2108 = vld [vmem:[%s4 + $0x1d0] sm:$0xff]
  %v2109 = vld [vmem:[%s4 + $0x1d8] sm:$0xff]
  %v2110 = vld [vmem:[%s4 + $0x1e0] sm:$0xff]
  %v2111 = vld [vmem:[%s4 + $0x1e8] sm:$0xff]
  %v2112 = vld [vmem:[%s4 + $0x1f0] sm:$0xff]
  %v2113 = vld [vmem:[%s4 + $0x1f8] sm:$0xff]
  %s2114 = scalar_lea.vmem %s9, 16
  %v2115 = vld [vmem:[%s2114] sm:$0x7]
  %v2117 = vsel %vm172, %v2050, 0
  %v2120 = vsel %vm172, %v2051, 0
  %v2123 = vsel %vm172, %v2052, 0
  %v2126 = vsel %vm172, %v2053, 0
  %v2129 = vsel %vm172, %v2054, 0
  %v2132 = vsel %vm172, %v2055, 0
  %v2135 = vsel %vm172, %v2056, 0
  %v2138 = vsel %vm172, %v2057, 0
  %v2141 = vsel %vm172, %v2058, 0
  %v2144 = vsel %vm172, %v2059, 0
  %v2147 = vsel %vm172, %v2060, 0
  %v2150 = vsel %vm172, %v2061, 0
  %v2153 = vsel %vm172, %v2062, 0
  %v2156 = vsel %vm172, %v2063, 0
  %v2159 = vsel %vm172, %v2064, 0
  %v2162 = vsel %vm172, %v2065, 0
  %v2165 = vsel %vm172, %v2066, 0
  %v2168 = vsel %vm172, %v2067, 0
  %v2171 = vsel %vm172, %v2068, 0
  %v2174 = vsel %vm172, %v2069, 0
  %v2177 = vsel %vm172, %v2070, 0
  %v2180 = vsel %vm172, %v2071, 0
  %v2183 = vsel %vm172, %v2072, 0
  %v2186 = vsel %vm172, %v2073, 0
  %v2189 = vsel %vm172, %v2074, 0
  %v2192 = vsel %vm172, %v2075, 0
  %v2195 = vsel %vm172, %v2076, 0
  %v2198 = vsel %vm172, %v2077, 0
  %v2201 = vsel %vm172, %v2078, 0
  %v2204 = vsel %vm172, %v2079, 0
  %v2207 = vsel %vm172, %v2080, 0
  %v2210 = vsel %vm172, %v2081, 0
  %v2213 = vsel %vm172, %v2082, 0
  %v2216 = vsel %vm172, %v2083, 0
  %v2219 = vsel %vm172, %v2084, 0
  %v2222 = vsel %vm172, %v2085, 0
  %v2225 = vsel %vm172, %v2086, 0
  %v2228 = vsel %vm172, %v2087, 0
  %v2231 = vsel %vm172, %v2088, 0
  %v2234 = vsel %vm172, %v2089, 0
  %v2237 = vsel %vm172, %v2090, 0
  %v2240 = vsel %vm172, %v2091, 0
  %v2243 = vsel %vm172, %v2092, 0
  %v2246 = vsel %vm172, %v2093, 0
  %v2249 = vsel %vm172, %v2094, 0
  %v2252 = vsel %vm172, %v2095, 0
  %v2255 = vsel %vm172, %v2096, 0
  %v2258 = vsel %vm172, %v2097, 0
  %v2261 = vsel %vm172, %v2098, 0
  %v2264 = vsel %vm172, %v2099, 0
  %v2267 = vsel %vm172, %v2100, 0
  %v2270 = vsel %vm172, %v2101, 0
  %v2273 = vsel %vm172, %v2102, 0
  %v2276 = vsel %vm172, %v2103, 0
  %v2279 = vsel %vm172, %v2104, 0
  %v2282 = vsel %vm172, %v2105, 0
  %v2285 = vsel %vm172, %v2106, 0
  %v2288 = vsel %vm172, %v2107, 0
  %v2291 = vsel %vm172, %v2108, 0
  %v2294 = vsel %vm172, %v2109, 0
  %v2297 = vsel %vm172, %v2110, 0
  %v2300 = vsel %vm172, %v2111, 0
  %v2303 = vsel %vm172, %v2112, 0
  %v2306 = vsel %vm172, %v2113, 0
  %v2309 = vsel %vm365, %v2115, 0
  %2311 = vmatpush.msra.mxu0 0.0
  %2312 = vmatpush.msra.mxu0 0.0
  %2313 = vmatpush.msra.mxu0 0.0
  %2314 = vmatpush.msra.mxu0 0.0
  %2315 = vmatpush.msra.mxu0 0.0
  %2316 = vmatpush.msra.mxu0 0.0
  %2317 = vmatpush.msra.mxu0 0.0
  %2318 = vmatpush.msra.mxu0 0.0
  %2319 = vmatpush.msra.mxu0 0.0
  %2320 = vmatpush.msra.mxu0 0.0
  %2321 = vmatpush.msra.mxu0 0.0
  %2322 = vmatpush.msra.mxu0 0.0
  %2323 = vmatpush.msra.mxu0 0.0
  %2324 = vmatpush.msra.mxu0 0.0
  %2325 = vmatpush.msra.mxu0 0.0
  %2326 = vmatpush.msra.mxu0 %v2309
  %2327 = vmatmul.f32.gmra.mxu0 %v2117
  %v2328 = vpop.f32.mrf.mxu0
  %v2329 = vadd.f32 0.0, %v2328
  %2330 = vmatmul.f32.gmra.mxu0 %v2120
  %v2331 = vpop.f32.mrf.mxu0
  %v2332 = vadd.f32 0.0, %v2331
  %2333 = vmatmul.f32.gmra.mxu0 %v2123
  %v2334 = vpop.f32.mrf.mxu0
  %v2335 = vadd.f32 0.0, %v2334
  %2336 = vmatmul.f32.gmra.mxu0 %v2126
  %v2337 = vpop.f32.mrf.mxu0
  %v2338 = vadd.f32 0.0, %v2337
  %2339 = vmatmul.f32.gmra.mxu0 %v2129
  %v2340 = vpop.f32.mrf.mxu0
  %v2341 = vadd.f32 0.0, %v2340
  %2342 = vmatmul.f32.gmra.mxu0 %v2132
  %v2343 = vpop.f32.mrf.mxu0
  %v2344 = vadd.f32 0.0, %v2343
  %2345 = vmatmul.f32.gmra.mxu0 %v2135
  %v2346 = vpop.f32.mrf.mxu0
  %v2347 = vadd.f32 0.0, %v2346
  %2348 = vmatmul.f32.gmra.mxu0 %v2138
  %v2349 = vpop.f32.mrf.mxu0
  %v2350 = vadd.f32 0.0, %v2349
  %2351 = vmatmul.f32.gmra.mxu0 %v2141
  %v2352 = vpop.f32.mrf.mxu0
  %v2353 = vadd.f32 0.0, %v2352
  %2354 = vmatmul.f32.gmra.mxu0 %v2144
  %v2355 = vpop.f32.mrf.mxu0
  %v2356 = vadd.f32 0.0, %v2355
  %2357 = vmatmul.f32.gmra.mxu0 %v2147
  %v2358 = vpop.f32.mrf.mxu0
  %v2359 = vadd.f32 0.0, %v2358
  %2360 = vmatmul.f32.gmra.mxu0 %v2150
  %v2361 = vpop.f32.mrf.mxu0
  %v2362 = vadd.f32 0.0, %v2361
  %2363 = vmatmul.f32.gmra.mxu0 %v2153
  %v2364 = vpop.f32.mrf.mxu0
  %v2365 = vadd.f32 0.0, %v2364
  %2366 = vmatmul.f32.gmra.mxu0 %v2156
  %v2367 = vpop.f32.mrf.mxu0
  %v2368 = vadd.f32 0.0, %v2367
  %2369 = vmatmul.f32.gmra.mxu0 %v2159
  %v2370 = vpop.f32.mrf.mxu0
  %v2371 = vadd.f32 0.0, %v2370
  %2372 = vmatmul.f32.gmra.mxu0 %v2162
  %v2373 = vpop.f32.mrf.mxu0
  %v2374 = vadd.f32 0.0, %v2373
  %2375 = vmatmul.f32.gmra.mxu0 %v2165
  %v2376 = vpop.f32.mrf.mxu0
  %v2377 = vadd.f32 0.0, %v2376
  %2378 = vmatmul.f32.gmra.mxu0 %v2168
  %v2379 = vpop.f32.mrf.mxu0
  %v2380 = vadd.f32 0.0, %v2379
  %2381 = vmatmul.f32.gmra.mxu0 %v2171
  %v2382 = vpop.f32.mrf.mxu0
  %v2383 = vadd.f32 0.0, %v2382
  %2384 = vmatmul.f32.gmra.mxu0 %v2174
  %v2385 = vpop.f32.mrf.mxu0
  %v2386 = vadd.f32 0.0, %v2385
  %2387 = vmatmul.f32.gmra.mxu0 %v2177
  %v2388 = vpop.f32.mrf.mxu0
  %v2389 = vadd.f32 0.0, %v2388
  %2390 = vmatmul.f32.gmra.mxu0 %v2180
  %v2391 = vpop.f32.mrf.mxu0
  %v2392 = vadd.f32 0.0, %v2391
  %2393 = vmatmul.f32.gmra.mxu0 %v2183
  %v2394 = vpop.f32.mrf.mxu0
  %v2395 = vadd.f32 0.0, %v2394
  %2396 = vmatmul.f32.gmra.mxu0 %v2186
  %v2397 = vpop.f32.mrf.mxu0
  %v2398 = vadd.f32 0.0, %v2397
  %2399 = vmatmul.f32.gmra.mxu0 %v2189
  %v2400 = vpop.f32.mrf.mxu0
  %v2401 = vadd.f32 0.0, %v2400
  %2402 = vmatmul.f32.gmra.mxu0 %v2192
  %v2403 = vpop.f32.mrf.mxu0
  %v2404 = vadd.f32 0.0, %v2403
  %2405 = vmatmul.f32.gmra.mxu0 %v2195
  %v2406 = vpop.f32.mrf.mxu0
  %v2407 = vadd.f32 0.0, %v2406
  %2408 = vmatmul.f32.gmra.mxu0 %v2198
  %v2409 = vpop.f32.mrf.mxu0
  %v2410 = vadd.f32 0.0, %v2409
  %2411 = vmatmul.f32.gmra.mxu0 %v2201
  %v2412 = vpop.f32.mrf.mxu0
  %v2413 = vadd.f32 0.0, %v2412
  %2414 = vmatmul.f32.gmra.mxu0 %v2204
  %v2415 = vpop.f32.mrf.mxu0
  %v2416 = vadd.f32 0.0, %v2415
  %2417 = vmatmul.f32.gmra.mxu0 %v2207
  %v2418 = vpop.f32.mrf.mxu0
  %v2419 = vadd.f32 0.0, %v2418
  %2420 = vmatmul.f32.gmra.mxu0 %v2210
  %v2421 = vpop.f32.mrf.mxu0
  %v2422 = vadd.f32 0.0, %v2421
  %2423 = vmatmul.f32.gmra.mxu0 %v2213
  %v2424 = vpop.f32.mrf.mxu0
  %v2425 = vadd.f32 0.0, %v2424
  %2426 = vmatmul.f32.gmra.mxu0 %v2216
  %v2427 = vpop.f32.mrf.mxu0
  %v2428 = vadd.f32 0.0, %v2427
  %2429 = vmatmul.f32.gmra.mxu0 %v2219
  %v2430 = vpop.f32.mrf.mxu0
  %v2431 = vadd.f32 0.0, %v2430
  %2432 = vmatmul.f32.gmra.mxu0 %v2222
  %v2433 = vpop.f32.mrf.mxu0
  %v2434 = vadd.f32 0.0, %v2433
  %2435 = vmatmul.f32.gmra.mxu0 %v2225
  %v2436 = vpop.f32.mrf.mxu0
  %v2437 = vadd.f32 0.0, %v2436
  %2438 = vmatmul.f32.gmra.mxu0 %v2228
  %v2439 = vpop.f32.mrf.mxu0
  %v2440 = vadd.f32 0.0, %v2439
  %2441 = vmatmul.f32.gmra.mxu0 %v2231
  %v2442 = vpop.f32.mrf.mxu0
  %v2443 = vadd.f32 0.0, %v2442
  %2444 = vmatmul.f32.gmra.mxu0 %v2234
  %v2445 = vpop.f32.mrf.mxu0
  %v2446 = vadd.f32 0.0, %v2445
  %2447 = vmatmul.f32.gmra.mxu0 %v2237
  %v2448 = vpop.f32.mrf.mxu0
  %v2449 = vadd.f32 0.0, %v2448
  %2450 = vmatmul.f32.gmra.mxu0 %v2240
  %v2451 = vpop.f32.mrf.mxu0
  %v2452 = vadd.f32 0.0, %v2451
  %2453 = vmatmul.f32.gmra.mxu0 %v2243
  %v2454 = vpop.f32.mrf.mxu0
  %v2455 = vadd.f32 0.0, %v2454
  %2456 = vmatmul.f32.gmra.mxu0 %v2246
  %v2457 = vpop.f32.mrf.mxu0
  %v2458 = vadd.f32 0.0, %v2457
  %2459 = vmatmul.f32.gmra.mxu0 %v2249
  %v2460 = vpop.f32.mrf.mxu0
  %v2461 = vadd.f32 0.0, %v2460
  %2462 = vmatmul.f32.gmra.mxu0 %v2252
  %v2463 = vpop.f32.mrf.mxu0
  %v2464 = vadd.f32 0.0, %v2463
  %2465 = vmatmul.f32.gmra.mxu0 %v2255
  %v2466 = vpop.f32.mrf.mxu0
  %v2467 = vadd.f32 0.0, %v2466
  %2468 = vmatmul.f32.gmra.mxu0 %v2258
  %v2469 = vpop.f32.mrf.mxu0
  %v2470 = vadd.f32 0.0, %v2469
  %2471 = vmatmul.f32.gmra.mxu0 %v2261
  %v2472 = vpop.f32.mrf.mxu0
  %v2473 = vadd.f32 0.0, %v2472
  %2474 = vmatmul.f32.gmra.mxu0 %v2264
  %v2475 = vpop.f32.mrf.mxu0
  %v2476 = vadd.f32 0.0, %v2475
  %2477 = vmatmul.f32.gmra.mxu0 %v2267
  %v2478 = vpop.f32.mrf.mxu0
  %v2479 = vadd.f32 0.0, %v2478
  %2480 = vmatmul.f32.gmra.mxu0 %v2270
  %v2481 = vpop.f32.mrf.mxu0
  %v2482 = vadd.f32 0.0, %v2481
  %2483 = vmatmul.f32.gmra.mxu0 %v2273
  %v2484 = vpop.f32.mrf.mxu0
  %v2485 = vadd.f32 0.0, %v2484
  %2486 = vmatmul.f32.gmra.mxu0 %v2276
  %v2487 = vpop.f32.mrf.mxu0
  %v2488 = vadd.f32 0.0, %v2487
  %2489 = vmatmul.f32.gmra.mxu0 %v2279
  %v2490 = vpop.f32.mrf.mxu0
  %v2491 = vadd.f32 0.0, %v2490
  %2492 = vmatmul.f32.gmra.mxu0 %v2282
  %v2493 = vpop.f32.mrf.mxu0
  %v2494 = vadd.f32 0.0, %v2493
  %2495 = vmatmul.f32.gmra.mxu0 %v2285
  %v2496 = vpop.f32.mrf.mxu0
  %v2497 = vadd.f32 0.0, %v2496
  %2498 = vmatmul.f32.gmra.mxu0 %v2288
  %v2499 = vpop.f32.mrf.mxu0
  %v2500 = vadd.f32 0.0, %v2499
  %2501 = vmatmul.f32.gmra.mxu0 %v2291
  %v2502 = vpop.f32.mrf.mxu0
  %v2503 = vadd.f32 0.0, %v2502
  %2504 = vmatmul.f32.gmra.mxu0 %v2294
  %v2505 = vpop.f32.mrf.mxu0
  %v2506 = vadd.f32 0.0, %v2505
  %2507 = vmatmul.f32.gmra.mxu0 %v2297
  %v2508 = vpop.f32.mrf.mxu0
  %v2509 = vadd.f32 0.0, %v2508
  %2510 = vmatmul.f32.gmra.mxu0 %v2300
  %v2511 = vpop.f32.mrf.mxu0
  %v2512 = vadd.f32 0.0, %v2511
  %2513 = vmatmul.f32.gmra.mxu0 %v2303
  %v2514 = vpop.f32.mrf.mxu0
  %v2515 = vadd.f32 0.0, %v2514
  %2516 = vmatmul.f32.gmra.mxu0 %v2306
  %v2517 = vpop.f32.mrf.mxu0
  %v2518 = vadd.f32 0.0, %v2517
  %2519 = vdwg.mxu0
  %v2520 = vadd.f32 %v1986, %v2329
  %v2521 = vadd.f32 %v1987, %v2332
  %v2522 = vadd.f32 %v1988, %v2335
  %v2523 = vadd.f32 %v1989, %v2338
  %v2524 = vadd.f32 %v1990, %v2341
  %v2525 = vadd.f32 %v1991, %v2344
  %v2526 = vadd.f32 %v1992, %v2347
  %v2527 = vadd.f32 %v1993, %v2350
  %v2528 = vadd.f32 %v1994, %v2353
  %v2529 = vadd.f32 %v1995, %v2356
  %v2530 = vadd.f32 %v1996, %v2359
  %v2531 = vadd.f32 %v1997, %v2362
  %v2532 = vadd.f32 %v1998, %v2365
  %v2533 = vadd.f32 %v1999, %v2368
  %v2534 = vadd.f32 %v2000, %v2371
  %v2535 = vadd.f32 %v2001, %v2374
  %v2536 = vadd.f32 %v2002, %v2377
  %v2537 = vadd.f32 %v2003, %v2380
  %v2538 = vadd.f32 %v2004, %v2383
  %v2539 = vadd.f32 %v2005, %v2386
  %v2540 = vadd.f32 %v2006, %v2389
  %v2541 = vadd.f32 %v2007, %v2392
  %v2542 = vadd.f32 %v2008, %v2395
  %v2543 = vadd.f32 %v2009, %v2398
  %v2544 = vadd.f32 %v2010, %v2401
  %v2545 = vadd.f32 %v2011, %v2404
  %v2546 = vadd.f32 %v2012, %v2407
  %v2547 = vadd.f32 %v2013, %v2410
  %v2548 = vadd.f32 %v2014, %v2413
  %v2549 = vadd.f32 %v2015, %v2416
  %v2550 = vadd.f32 %v2016, %v2419
  %v2551 = vadd.f32 %v2017, %v2422
  %v2552 = vadd.f32 %v2018, %v2425
  %v2553 = vadd.f32 %v2019, %v2428
  %v2554 = vadd.f32 %v2020, %v2431
  %v2555 = vadd.f32 %v2021, %v2434
  %v2556 = vadd.f32 %v2022, %v2437
  %v2557 = vadd.f32 %v2023, %v2440
  %v2558 = vadd.f32 %v2024, %v2443
  %v2559 = vadd.f32 %v2025, %v2446
  %v2560 = vadd.f32 %v2026, %v2449
  %v2561 = vadd.f32 %v2027, %v2452
  %v2562 = vadd.f32 %v2028, %v2455
  %v2563 = vadd.f32 %v2029, %v2458
  %v2564 = vadd.f32 %v2030, %v2461
  %v2565 = vadd.f32 %v2031, %v2464
  %v2566 = vadd.f32 %v2032, %v2467
  %v2567 = vadd.f32 %v2033, %v2470
  %v2568 = vadd.f32 %v2034, %v2473
  %v2569 = vadd.f32 %v2035, %v2476
  %v2570 = vadd.f32 %v2036, %v2479
  %v2571 = vadd.f32 %v2037, %v2482
  %v2572 = vadd.f32 %v2038, %v2485
  %v2573 = vadd.f32 %v2039, %v2488
  %v2574 = vadd.f32 %v2040, %v2491
  %v2575 = vadd.f32 %v2041, %v2494
  %v2576 = vadd.f32 %v2042, %v2497
  %v2577 = vadd.f32 %v2043, %v2500
  %v2578 = vadd.f32 %v2044, %v2503
  %v2579 = vadd.f32 %v2045, %v2506
  %v2580 = vadd.f32 %v2046, %v2509
  %v2581 = vadd.f32 %v2047, %v2512
  %v2582 = vadd.f32 %v2048, %v2515
  %v2583 = vadd.f32 %v2049, %v2518
  %v2584 = vld [vmem:[%s5] sm:$0xff]
  %v2585 = vld [vmem:[%s5 + $0x8] sm:$0xff]
  %v2586 = vld [vmem:[%s5 + $0x10] sm:$0xff]
  %v2587 = vld [vmem:[%s5 + $0x18] sm:$0xff]
  %v2588 = vld [vmem:[%s5 + $0x20] sm:$0xff]
  %v2589 = vld [vmem:[%s5 + $0x28] sm:$0xff]
  %v2590 = vld [vmem:[%s5 + $0x30] sm:$0xff]
  %v2591 = vld [vmem:[%s5 + $0x38] sm:$0xff]
  %v2592 = vld [vmem:[%s5 + $0x40] sm:$0xff]
  %v2593 = vld [vmem:[%s5 + $0x48] sm:$0xff]
  %v2594 = vld [vmem:[%s5 + $0x50] sm:$0xff]
  %v2595 = vld [vmem:[%s5 + $0x58] sm:$0xff]
  %v2596 = vld [vmem:[%s5 + $0x60] sm:$0xff]
  %v2597 = vld [vmem:[%s5 + $0x68] sm:$0xff]
  %v2598 = vld [vmem:[%s5 + $0x70] sm:$0xff]
  %v2599 = vld [vmem:[%s5 + $0x78] sm:$0xff]
  %v2600 = vld [vmem:[%s5 + $0x80] sm:$0xff]
  %v2601 = vld [vmem:[%s5 + $0x88] sm:$0xff]
  %v2602 = vld [vmem:[%s5 + $0x90] sm:$0xff]
  %v2603 = vld [vmem:[%s5 + $0x98] sm:$0xff]
  %v2604 = vld [vmem:[%s5 + $0xa0] sm:$0xff]
  %v2605 = vld [vmem:[%s5 + $0xa8] sm:$0xff]
  %v2606 = vld [vmem:[%s5 + $0xb0] sm:$0xff]
  %v2607 = vld [vmem:[%s5 + $0xb8] sm:$0xff]
  %v2608 = vld [vmem:[%s5 + $0xc0] sm:$0xff]
  %v2609 = vld [vmem:[%s5 + $0xc8] sm:$0xff]
  %v2610 = vld [vmem:[%s5 + $0xd0] sm:$0xff]
  %v2611 = vld [vmem:[%s5 + $0xd8] sm:$0xff]
  %v2612 = vld [vmem:[%s5 + $0xe0] sm:$0xff]
  %v2613 = vld [vmem:[%s5 + $0xe8] sm:$0xff]
  %v2614 = vld [vmem:[%s5 + $0xf0] sm:$0xff]
  %v2615 = vld [vmem:[%s5 + $0xf8] sm:$0xff]
  %v2616 = vld [vmem:[%s5 + $0x100] sm:$0xff]
  %v2617 = vld [vmem:[%s5 + $0x108] sm:$0xff]
  %v2618 = vld [vmem:[%s5 + $0x110] sm:$0xff]
  %v2619 = vld [vmem:[%s5 + $0x118] sm:$0xff]
  %v2620 = vld [vmem:[%s5 + $0x120] sm:$0xff]
  %v2621 = vld [vmem:[%s5 + $0x128] sm:$0xff]
  %v2622 = vld [vmem:[%s5 + $0x130] sm:$0xff]
  %v2623 = vld [vmem:[%s5 + $0x138] sm:$0xff]
  %v2624 = vld [vmem:[%s5 + $0x140] sm:$0xff]
  %v2625 = vld [vmem:[%s5 + $0x148] sm:$0xff]
  %v2626 = vld [vmem:[%s5 + $0x150] sm:$0xff]
  %v2627 = vld [vmem:[%s5 + $0x158] sm:$0xff]
  %v2628 = vld [vmem:[%s5 + $0x160] sm:$0xff]
  %v2629 = vld [vmem:[%s5 + $0x168] sm:$0xff]
  %v2630 = vld [vmem:[%s5 + $0x170] sm:$0xff]
  %v2631 = vld [vmem:[%s5 + $0x178] sm:$0xff]
  %v2632 = vld [vmem:[%s5 + $0x180] sm:$0xff]
  %v2633 = vld [vmem:[%s5 + $0x188] sm:$0xff]
  %v2634 = vld [vmem:[%s5 + $0x190] sm:$0xff]
  %v2635 = vld [vmem:[%s5 + $0x198] sm:$0xff]
  %v2636 = vld [vmem:[%s5 + $0x1a0] sm:$0xff]
  %v2637 = vld [vmem:[%s5 + $0x1a8] sm:$0xff]
  %v2638 = vld [vmem:[%s5 + $0x1b0] sm:$0xff]
  %v2639 = vld [vmem:[%s5 + $0x1b8] sm:$0xff]
  %v2640 = vld [vmem:[%s5 + $0x1c0] sm:$0xff]
  %v2641 = vld [vmem:[%s5 + $0x1c8] sm:$0xff]
  %v2642 = vld [vmem:[%s5 + $0x1d0] sm:$0xff]
  %v2643 = vld [vmem:[%s5 + $0x1d8] sm:$0xff]
  %v2644 = vld [vmem:[%s5 + $0x1e0] sm:$0xff]
  %v2645 = vld [vmem:[%s5 + $0x1e8] sm:$0xff]
  %v2646 = vld [vmem:[%s5 + $0x1f0] sm:$0xff]
  %v2647 = vld [vmem:[%s5 + $0x1f8] sm:$0xff]
  %s2648 = scalar_lea.vmem %s9, 20
  %v2649 = vld [vmem:[%s2648] sm:$0x7]
  %v2651 = vsel %vm172, %v2584, 0
  %v2654 = vsel %vm172, %v2585, 0
  %v2657 = vsel %vm172, %v2586, 0
  %v2660 = vsel %vm172, %v2587, 0
  %v2663 = vsel %vm172, %v2588, 0
  %v2666 = vsel %vm172, %v2589, 0
  %v2669 = vsel %vm172, %v2590, 0
  %v2672 = vsel %vm172, %v2591, 0
  %v2675 = vsel %vm172, %v2592, 0
  %v2678 = vsel %vm172, %v2593, 0
  %v2681 = vsel %vm172, %v2594, 0
  %v2684 = vsel %vm172, %v2595, 0
  %v2687 = vsel %vm172, %v2596, 0
  %v2690 = vsel %vm172, %v2597, 0
  %v2693 = vsel %vm172, %v2598, 0
  %v2696 = vsel %vm172, %v2599, 0
  %v2699 = vsel %vm172, %v2600, 0
  %v2702 = vsel %vm172, %v2601, 0
  %v2705 = vsel %vm172, %v2602, 0
  %v2708 = vsel %vm172, %v2603, 0
  %v2711 = vsel %vm172, %v2604, 0
  %v2714 = vsel %vm172, %v2605, 0
  %v2717 = vsel %vm172, %v2606, 0
  %v2720 = vsel %vm172, %v2607, 0
  %v2723 = vsel %vm172, %v2608, 0
  %v2726 = vsel %vm172, %v2609, 0
  %v2729 = vsel %vm172, %v2610, 0
  %v2732 = vsel %vm172, %v2611, 0
  %v2735 = vsel %vm172, %v2612, 0
  %v2738 = vsel %vm172, %v2613, 0
  %v2741 = vsel %vm172, %v2614, 0
  %v2744 = vsel %vm172, %v2615, 0
  %v2747 = vsel %vm172, %v2616, 0
  %v2750 = vsel %vm172, %v2617, 0
  %v2753 = vsel %vm172, %v2618, 0
  %v2756 = vsel %vm172, %v2619, 0
  %v2759 = vsel %vm172, %v2620, 0
  %v2762 = vsel %vm172, %v2621, 0
  %v2765 = vsel %vm172, %v2622, 0
  %v2768 = vsel %vm172, %v2623, 0
  %v2771 = vsel %vm172, %v2624, 0
  %v2774 = vsel %vm172, %v2625, 0
  %v2777 = vsel %vm172, %v2626, 0
  %v2780 = vsel %vm172, %v2627, 0
  %v2783 = vsel %vm172, %v2628, 0
  %v2786 = vsel %vm172, %v2629, 0
  %v2789 = vsel %vm172, %v2630, 0
  %v2792 = vsel %vm172, %v2631, 0
  %v2795 = vsel %vm172, %v2632, 0
  %v2798 = vsel %vm172, %v2633, 0
  %v2801 = vsel %vm172, %v2634, 0
  %v2804 = vsel %vm172, %v2635, 0
  %v2807 = vsel %vm172, %v2636, 0
  %v2810 = vsel %vm172, %v2637, 0
  %v2813 = vsel %vm172, %v2638, 0
  %v2816 = vsel %vm172, %v2639, 0
  %v2819 = vsel %vm172, %v2640, 0
  %v2822 = vsel %vm172, %v2641, 0
  %v2825 = vsel %vm172, %v2642, 0
  %v2828 = vsel %vm172, %v2643, 0
  %v2831 = vsel %vm172, %v2644, 0
  %v2834 = vsel %vm172, %v2645, 0
  %v2837 = vsel %vm172, %v2646, 0
  %v2840 = vsel %vm172, %v2647, 0
  %v2843 = vsel %vm365, %v2649, 0
  %2845 = vmatpush.msra.mxu0 0.0
  %2846 = vmatpush.msra.mxu0 0.0
  %2847 = vmatpush.msra.mxu0 0.0
  %2848 = vmatpush.msra.mxu0 0.0
  %2849 = vmatpush.msra.mxu0 0.0
  %2850 = vmatpush.msra.mxu0 0.0
  %2851 = vmatpush.msra.mxu0 0.0
  %2852 = vmatpush.msra.mxu0 0.0
  %2853 = vmatpush.msra.mxu0 0.0
  %2854 = vmatpush.msra.mxu0 0.0
  %2855 = vmatpush.msra.mxu0 0.0
  %2856 = vmatpush.msra.mxu0 0.0
  %2857 = vmatpush.msra.mxu0 0.0
  %2858 = vmatpush.msra.mxu0 0.0
  %2859 = vmatpush.msra.mxu0 0.0
  %2860 = vmatpush.msra.mxu0 %v2843
  %2861 = vmatmul.f32.gmra.mxu0 %v2651
  %v2862 = vpop.f32.mrf.mxu0
  %v2863 = vadd.f32 0.0, %v2862
  %2864 = vmatmul.f32.gmra.mxu0 %v2654
  %v2865 = vpop.f32.mrf.mxu0
  %v2866 = vadd.f32 0.0, %v2865
  %2867 = vmatmul.f32.gmra.mxu0 %v2657
  %v2868 = vpop.f32.mrf.mxu0
  %v2869 = vadd.f32 0.0, %v2868
  %2870 = vmatmul.f32.gmra.mxu0 %v2660
  %v2871 = vpop.f32.mrf.mxu0
  %v2872 = vadd.f32 0.0, %v2871
  %2873 = vmatmul.f32.gmra.mxu0 %v2663
  %v2874 = vpop.f32.mrf.mxu0
  %v2875 = vadd.f32 0.0, %v2874
  %2876 = vmatmul.f32.gmra.mxu0 %v2666
  %v2877 = vpop.f32.mrf.mxu0
  %v2878 = vadd.f32 0.0, %v2877
  %2879 = vmatmul.f32.gmra.mxu0 %v2669
  %v2880 = vpop.f32.mrf.mxu0
  %v2881 = vadd.f32 0.0, %v2880
  %2882 = vmatmul.f32.gmra.mxu0 %v2672
  %v2883 = vpop.f32.mrf.mxu0
  %v2884 = vadd.f32 0.0, %v2883
  %2885 = vmatmul.f32.gmra.mxu0 %v2675
  %v2886 = vpop.f32.mrf.mxu0
  %v2887 = vadd.f32 0.0, %v2886
  %2888 = vmatmul.f32.gmra.mxu0 %v2678
  %v2889 = vpop.f32.mrf.mxu0
  %v2890 = vadd.f32 0.0, %v2889
  %2891 = vmatmul.f32.gmra.mxu0 %v2681
  %v2892 = vpop.f32.mrf.mxu0
  %v2893 = vadd.f32 0.0, %v2892
  %2894 = vmatmul.f32.gmra.mxu0 %v2684
  %v2895 = vpop.f32.mrf.mxu0
  %v2896 = vadd.f32 0.0, %v2895
  %2897 = vmatmul.f32.gmra.mxu0 %v2687
  %v2898 = vpop.f32.mrf.mxu0
  %v2899 = vadd.f32 0.0, %v2898
  %2900 = vmatmul.f32.gmra.mxu0 %v2690
  %v2901 = vpop.f32.mrf.mxu0
  %v2902 = vadd.f32 0.0, %v2901
  %2903 = vmatmul.f32.gmra.mxu0 %v2693
  %v2904 = vpop.f32.mrf.mxu0
  %v2905 = vadd.f32 0.0, %v2904
  %2906 = vmatmul.f32.gmra.mxu0 %v2696
  %v2907 = vpop.f32.mrf.mxu0
  %v2908 = vadd.f32 0.0, %v2907
  %2909 = vmatmul.f32.gmra.mxu0 %v2699
  %v2910 = vpop.f32.mrf.mxu0
  %v2911 = vadd.f32 0.0, %v2910
  %2912 = vmatmul.f32.gmra.mxu0 %v2702
  %v2913 = vpop.f32.mrf.mxu0
  %v2914 = vadd.f32 0.0, %v2913
  %2915 = vmatmul.f32.gmra.mxu0 %v2705
  %v2916 = vpop.f32.mrf.mxu0
  %v2917 = vadd.f32 0.0, %v2916
  %2918 = vmatmul.f32.gmra.mxu0 %v2708
  %v2919 = vpop.f32.mrf.mxu0
  %v2920 = vadd.f32 0.0, %v2919
  %2921 = vmatmul.f32.gmra.mxu0 %v2711
  %v2922 = vpop.f32.mrf.mxu0
  %v2923 = vadd.f32 0.0, %v2922
  %2924 = vmatmul.f32.gmra.mxu0 %v2714
  %v2925 = vpop.f32.mrf.mxu0
  %v2926 = vadd.f32 0.0, %v2925
  %2927 = vmatmul.f32.gmra.mxu0 %v2717
  %v2928 = vpop.f32.mrf.mxu0
  %v2929 = vadd.f32 0.0, %v2928
  %2930 = vmatmul.f32.gmra.mxu0 %v2720
  %v2931 = vpop.f32.mrf.mxu0
  %v2932 = vadd.f32 0.0, %v2931
  %2933 = vmatmul.f32.gmra.mxu0 %v2723
  %v2934 = vpop.f32.mrf.mxu0
  %v2935 = vadd.f32 0.0, %v2934
  %2936 = vmatmul.f32.gmra.mxu0 %v2726
  %v2937 = vpop.f32.mrf.mxu0
  %v2938 = vadd.f32 0.0, %v2937
  %2939 = vmatmul.f32.gmra.mxu0 %v2729
  %v2940 = vpop.f32.mrf.mxu0
  %v2941 = vadd.f32 0.0, %v2940
  %2942 = vmatmul.f32.gmra.mxu0 %v2732
  %v2943 = vpop.f32.mrf.mxu0
  %v2944 = vadd.f32 0.0, %v2943
  %2945 = vmatmul.f32.gmra.mxu0 %v2735
  %v2946 = vpop.f32.mrf.mxu0
  %v2947 = vadd.f32 0.0, %v2946
  %2948 = vmatmul.f32.gmra.mxu0 %v2738
  %v2949 = vpop.f32.mrf.mxu0
  %v2950 = vadd.f32 0.0, %v2949
  %2951 = vmatmul.f32.gmra.mxu0 %v2741
  %v2952 = vpop.f32.mrf.mxu0
  %v2953 = vadd.f32 0.0, %v2952
  %2954 = vmatmul.f32.gmra.mxu0 %v2744
  %v2955 = vpop.f32.mrf.mxu0
  %v2956 = vadd.f32 0.0, %v2955
  %2957 = vmatmul.f32.gmra.mxu0 %v2747
  %v2958 = vpop.f32.mrf.mxu0
  %v2959 = vadd.f32 0.0, %v2958
  %2960 = vmatmul.f32.gmra.mxu0 %v2750
  %v2961 = vpop.f32.mrf.mxu0
  %v2962 = vadd.f32 0.0, %v2961
  %2963 = vmatmul.f32.gmra.mxu0 %v2753
  %v2964 = vpop.f32.mrf.mxu0
  %v2965 = vadd.f32 0.0, %v2964
  %2966 = vmatmul.f32.gmra.mxu0 %v2756
  %v2967 = vpop.f32.mrf.mxu0
  %v2968 = vadd.f32 0.0, %v2967
  %2969 = vmatmul.f32.gmra.mxu0 %v2759
  %v2970 = vpop.f32.mrf.mxu0
  %v2971 = vadd.f32 0.0, %v2970
  %2972 = vmatmul.f32.gmra.mxu0 %v2762
  %v2973 = vpop.f32.mrf.mxu0
  %v2974 = vadd.f32 0.0, %v2973
  %2975 = vmatmul.f32.gmra.mxu0 %v2765
  %v2976 = vpop.f32.mrf.mxu0
  %v2977 = vadd.f32 0.0, %v2976
  %2978 = vmatmul.f32.gmra.mxu0 %v2768
  %v2979 = vpop.f32.mrf.mxu0
  %v2980 = vadd.f32 0.0, %v2979
  %2981 = vmatmul.f32.gmra.mxu0 %v2771
  %v2982 = vpop.f32.mrf.mxu0
  %v2983 = vadd.f32 0.0, %v2982
  %2984 = vmatmul.f32.gmra.mxu0 %v2774
  %v2985 = vpop.f32.mrf.mxu0
  %v2986 = vadd.f32 0.0, %v2985
  %2987 = vmatmul.f32.gmra.mxu0 %v2777
  %v2988 = vpop.f32.mrf.mxu0
  %v2989 = vadd.f32 0.0, %v2988
  %2990 = vmatmul.f32.gmra.mxu0 %v2780
  %v2991 = vpop.f32.mrf.mxu0
  %v2992 = vadd.f32 0.0, %v2991
  %2993 = vmatmul.f32.gmra.mxu0 %v2783
  %v2994 = vpop.f32.mrf.mxu0
  %v2995 = vadd.f32 0.0, %v2994
  %2996 = vmatmul.f32.gmra.mxu0 %v2786
  %v2997 = vpop.f32.mrf.mxu0
  %v2998 = vadd.f32 0.0, %v2997
  %2999 = vmatmul.f32.gmra.mxu0 %v2789
  %v3000 = vpop.f32.mrf.mxu0
  %v3001 = vadd.f32 0.0, %v3000
  %3002 = vmatmul.f32.gmra.mxu0 %v2792
  %v3003 = vpop.f32.mrf.mxu0
  %v3004 = vadd.f32 0.0, %v3003
  %3005 = vmatmul.f32.gmra.mxu0 %v2795
  %v3006 = vpop.f32.mrf.mxu0
  %v3007 = vadd.f32 0.0, %v3006
  %3008 = vmatmul.f32.gmra.mxu0 %v2798
  %v3009 = vpop.f32.mrf.mxu0
  %v3010 = vadd.f32 0.0, %v3009
  %3011 = vmatmul.f32.gmra.mxu0 %v2801
  %v3012 = vpop.f32.mrf.mxu0
  %v3013 = vadd.f32 0.0, %v3012
  %3014 = vmatmul.f32.gmra.mxu0 %v2804
  %v3015 = vpop.f32.mrf.mxu0
  %v3016 = vadd.f32 0.0, %v3015
  %3017 = vmatmul.f32.gmra.mxu0 %v2807
  %v3018 = vpop.f32.mrf.mxu0
  %v3019 = vadd.f32 0.0, %v3018
  %3020 = vmatmul.f32.gmra.mxu0 %v2810
  %v3021 = vpop.f32.mrf.mxu0
  %v3022 = vadd.f32 0.0, %v3021
  %3023 = vmatmul.f32.gmra.mxu0 %v2813
  %v3024 = vpop.f32.mrf.mxu0
  %v3025 = vadd.f32 0.0, %v3024
  %3026 = vmatmul.f32.gmra.mxu0 %v2816
  %v3027 = vpop.f32.mrf.mxu0
  %v3028 = vadd.f32 0.0, %v3027
  %3029 = vmatmul.f32.gmra.mxu0 %v2819
  %v3030 = vpop.f32.mrf.mxu0
  %v3031 = vadd.f32 0.0, %v3030
  %3032 = vmatmul.f32.gmra.mxu0 %v2822
  %v3033 = vpop.f32.mrf.mxu0
  %v3034 = vadd.f32 0.0, %v3033
  %3035 = vmatmul.f32.gmra.mxu0 %v2825
  %v3036 = vpop.f32.mrf.mxu0
  %v3037 = vadd.f32 0.0, %v3036
  %3038 = vmatmul.f32.gmra.mxu0 %v2828
  %v3039 = vpop.f32.mrf.mxu0
  %v3040 = vadd.f32 0.0, %v3039
  %3041 = vmatmul.f32.gmra.mxu0 %v2831
  %v3042 = vpop.f32.mrf.mxu0
  %v3043 = vadd.f32 0.0, %v3042
  %3044 = vmatmul.f32.gmra.mxu0 %v2834
  %v3045 = vpop.f32.mrf.mxu0
  %v3046 = vadd.f32 0.0, %v3045
  %3047 = vmatmul.f32.gmra.mxu0 %v2837
  %v3048 = vpop.f32.mrf.mxu0
  %v3049 = vadd.f32 0.0, %v3048
  %3050 = vmatmul.f32.gmra.mxu0 %v2840
  %v3051 = vpop.f32.mrf.mxu0
  %v3052 = vadd.f32 0.0, %v3051
  %3053 = vdwg.mxu0
  %v3054 = vadd.f32 %v2520, %v2863
  %v3055 = vadd.f32 %v2521, %v2866
  %v3056 = vadd.f32 %v2522, %v2869
  %v3057 = vadd.f32 %v2523, %v2872
  %v3058 = vadd.f32 %v2524, %v2875
  %v3059 = vadd.f32 %v2525, %v2878
  %v3060 = vadd.f32 %v2526, %v2881
  %v3061 = vadd.f32 %v2527, %v2884
  %v3062 = vadd.f32 %v2528, %v2887
  %v3063 = vadd.f32 %v2529, %v2890
  %v3064 = vadd.f32 %v2530, %v2893
  %v3065 = vadd.f32 %v2531, %v2896
  %v3066 = vadd.f32 %v2532, %v2899
  %v3067 = vadd.f32 %v2533, %v2902
  %v3068 = vadd.f32 %v2534, %v2905
  %v3069 = vadd.f32 %v2535, %v2908
  %v3070 = vadd.f32 %v2536, %v2911
  %v3071 = vadd.f32 %v2537, %v2914
  %v3072 = vadd.f32 %v2538, %v2917
  %v3073 = vadd.f32 %v2539, %v2920
  %v3074 = vadd.f32 %v2540, %v2923
  %v3075 = vadd.f32 %v2541, %v2926
  %v3076 = vadd.f32 %v2542, %v2929
  %v3077 = vadd.f32 %v2543, %v2932
  %v3078 = vadd.f32 %v2544, %v2935
  %v3079 = vadd.f32 %v2545, %v2938
  %v3080 = vadd.f32 %v2546, %v2941
  %v3081 = vadd.f32 %v2547, %v2944
  %v3082 = vadd.f32 %v2548, %v2947
  %v3083 = vadd.f32 %v2549, %v2950
  %v3084 = vadd.f32 %v2550, %v2953
  %v3085 = vadd.f32 %v2551, %v2956
  %v3086 = vadd.f32 %v2552, %v2959
  %v3087 = vadd.f32 %v2553, %v2962
  %v3088 = vadd.f32 %v2554, %v2965
  %v3089 = vadd.f32 %v2555, %v2968
  %v3090 = vadd.f32 %v2556, %v2971
  %v3091 = vadd.f32 %v2557, %v2974
  %v3092 = vadd.f32 %v2558, %v2977
  %v3093 = vadd.f32 %v2559, %v2980
  %v3094 = vadd.f32 %v2560, %v2983
  %v3095 = vadd.f32 %v2561, %v2986
  %v3096 = vadd.f32 %v2562, %v2989
  %v3097 = vadd.f32 %v2563, %v2992
  %v3098 = vadd.f32 %v2564, %v2995
  %v3099 = vadd.f32 %v2565, %v2998
  %v3100 = vadd.f32 %v2566, %v3001
  %v3101 = vadd.f32 %v2567, %v3004
  %v3102 = vadd.f32 %v2568, %v3007
  %v3103 = vadd.f32 %v2569, %v3010
  %v3104 = vadd.f32 %v2570, %v3013
  %v3105 = vadd.f32 %v2571, %v3016
  %v3106 = vadd.f32 %v2572, %v3019
  %v3107 = vadd.f32 %v2573, %v3022
  %v3108 = vadd.f32 %v2574, %v3025
  %v3109 = vadd.f32 %v2575, %v3028
  %v3110 = vadd.f32 %v2576, %v3031
  %v3111 = vadd.f32 %v2577, %v3034
  %v3112 = vadd.f32 %v2578, %v3037
  %v3113 = vadd.f32 %v2579, %v3040
  %v3114 = vadd.f32 %v2580, %v3043
  %v3115 = vadd.f32 %v2581, %v3046
  %v3116 = vadd.f32 %v2582, %v3049
  %v3117 = vadd.f32 %v2583, %v3052
  %v3118 = vld [vmem:[%s6] sm:$0xff]
  %v3119 = vld [vmem:[%s6 + $0x8] sm:$0xff]
  %v3120 = vld [vmem:[%s6 + $0x10] sm:$0xff]
  %v3121 = vld [vmem:[%s6 + $0x18] sm:$0xff]
  %v3122 = vld [vmem:[%s6 + $0x20] sm:$0xff]
  %v3123 = vld [vmem:[%s6 + $0x28] sm:$0xff]
  %v3124 = vld [vmem:[%s6 + $0x30] sm:$0xff]
  %v3125 = vld [vmem:[%s6 + $0x38] sm:$0xff]
  %v3126 = vld [vmem:[%s6 + $0x40] sm:$0xff]
  %v3127 = vld [vmem:[%s6 + $0x48] sm:$0xff]
  %v3128 = vld [vmem:[%s6 + $0x50] sm:$0xff]
  %v3129 = vld [vmem:[%s6 + $0x58] sm:$0xff]
  %v3130 = vld [vmem:[%s6 + $0x60] sm:$0xff]
  %v3131 = vld [vmem:[%s6 + $0x68] sm:$0xff]
  %v3132 = vld [vmem:[%s6 + $0x70] sm:$0xff]
  %v3133 = vld [vmem:[%s6 + $0x78] sm:$0xff]
  %v3134 = vld [vmem:[%s6 + $0x80] sm:$0xff]
  %v3135 = vld [vmem:[%s6 + $0x88] sm:$0xff]
  %v3136 = vld [vmem:[%s6 + $0x90] sm:$0xff]
  %v3137 = vld [vmem:[%s6 + $0x98] sm:$0xff]
  %v3138 = vld [vmem:[%s6 + $0xa0] sm:$0xff]
  %v3139 = vld [vmem:[%s6 + $0xa8] sm:$0xff]
  %v3140 = vld [vmem:[%s6 + $0xb0] sm:$0xff]
  %v3141 = vld [vmem:[%s6 + $0xb8] sm:$0xff]
  %v3142 = vld [vmem:[%s6 + $0xc0] sm:$0xff]
  %v3143 = vld [vmem:[%s6 + $0xc8] sm:$0xff]
  %v3144 = vld [vmem:[%s6 + $0xd0] sm:$0xff]
  %v3145 = vld [vmem:[%s6 + $0xd8] sm:$0xff]
  %v3146 = vld [vmem:[%s6 + $0xe0] sm:$0xff]
  %v3147 = vld [vmem:[%s6 + $0xe8] sm:$0xff]
  %v3148 = vld [vmem:[%s6 + $0xf0] sm:$0xff]
  %v3149 = vld [vmem:[%s6 + $0xf8] sm:$0xff]
  %v3150 = vld [vmem:[%s6 + $0x100] sm:$0xff]
  %v3151 = vld [vmem:[%s6 + $0x108] sm:$0xff]
  %v3152 = vld [vmem:[%s6 + $0x110] sm:$0xff]
  %v3153 = vld [vmem:[%s6 + $0x118] sm:$0xff]
  %v3154 = vld [vmem:[%s6 + $0x120] sm:$0xff]
  %v3155 = vld [vmem:[%s6 + $0x128] sm:$0xff]
  %v3156 = vld [vmem:[%s6 + $0x130] sm:$0xff]
  %v3157 = vld [vmem:[%s6 + $0x138] sm:$0xff]
  %v3158 = vld [vmem:[%s6 + $0x140] sm:$0xff]
  %v3159 = vld [vmem:[%s6 + $0x148] sm:$0xff]
  %v3160 = vld [vmem:[%s6 + $0x150] sm:$0xff]
  %v3161 = vld [vmem:[%s6 + $0x158] sm:$0xff]
  %v3162 = vld [vmem:[%s6 + $0x160] sm:$0xff]
  %v3163 = vld [vmem:[%s6 + $0x168] sm:$0xff]
  %v3164 = vld [vmem:[%s6 + $0x170] sm:$0xff]
  %v3165 = vld [vmem:[%s6 + $0x178] sm:$0xff]
  %v3166 = vld [vmem:[%s6 + $0x180] sm:$0xff]
  %v3167 = vld [vmem:[%s6 + $0x188] sm:$0xff]
  %v3168 = vld [vmem:[%s6 + $0x190] sm:$0xff]
  %v3169 = vld [vmem:[%s6 + $0x198] sm:$0xff]
  %v3170 = vld [vmem:[%s6 + $0x1a0] sm:$0xff]
  %v3171 = vld [vmem:[%s6 + $0x1a8] sm:$0xff]
  %v3172 = vld [vmem:[%s6 + $0x1b0] sm:$0xff]
  %v3173 = vld [vmem:[%s6 + $0x1b8] sm:$0xff]
  %v3174 = vld [vmem:[%s6 + $0x1c0] sm:$0xff]
  %v3175 = vld [vmem:[%s6 + $0x1c8] sm:$0xff]
  %v3176 = vld [vmem:[%s6 + $0x1d0] sm:$0xff]
  %v3177 = vld [vmem:[%s6 + $0x1d8] sm:$0xff]
  %v3178 = vld [vmem:[%s6 + $0x1e0] sm:$0xff]
  %v3179 = vld [vmem:[%s6 + $0x1e8] sm:$0xff]
  %v3180 = vld [vmem:[%s6 + $0x1f0] sm:$0xff]
  %v3181 = vld [vmem:[%s6 + $0x1f8] sm:$0xff]
  %s3182 = scalar_lea.vmem %s9, 24
  %v3183 = vld [vmem:[%s3182] sm:$0x7]
  %v3185 = vsel %vm172, %v3118, 0
  %v3188 = vsel %vm172, %v3119, 0
  %v3191 = vsel %vm172, %v3120, 0
  %v3194 = vsel %vm172, %v3121, 0
  %v3197 = vsel %vm172, %v3122, 0
  %v3200 = vsel %vm172, %v3123, 0
  %v3203 = vsel %vm172, %v3124, 0
  %v3206 = vsel %vm172, %v3125, 0
  %v3209 = vsel %vm172, %v3126, 0
  %v3212 = vsel %vm172, %v3127, 0
  %v3215 = vsel %vm172, %v3128, 0
  %v3218 = vsel %vm172, %v3129, 0
  %v3221 = vsel %vm172, %v3130, 0
  %v3224 = vsel %vm172, %v3131, 0
  %v3227 = vsel %vm172, %v3132, 0
  %v3230 = vsel %vm172, %v3133, 0
  %v3233 = vsel %vm172, %v3134, 0
  %v3236 = vsel %vm172, %v3135, 0
  %v3239 = vsel %vm172, %v3136, 0
  %v3242 = vsel %vm172, %v3137, 0
  %v3245 = vsel %vm172, %v3138, 0
  %v3248 = vsel %vm172, %v3139, 0
  %v3251 = vsel %vm172, %v3140, 0
  %v3254 = vsel %vm172, %v3141, 0
  %v3257 = vsel %vm172, %v3142, 0
  %v3260 = vsel %vm172, %v3143, 0
  %v3263 = vsel %vm172, %v3144, 0
  %v3266 = vsel %vm172, %v3145, 0
  %v3269 = vsel %vm172, %v3146, 0
  %v3272 = vsel %vm172, %v3147, 0
  %v3275 = vsel %vm172, %v3148, 0
  %v3278 = vsel %vm172, %v3149, 0
  %v3281 = vsel %vm172, %v3150, 0
  %v3284 = vsel %vm172, %v3151, 0
  %v3287 = vsel %vm172, %v3152, 0
  %v3290 = vsel %vm172, %v3153, 0
  %v3293 = vsel %vm172, %v3154, 0
  %v3296 = vsel %vm172, %v3155, 0
  %v3299 = vsel %vm172, %v3156, 0
  %v3302 = vsel %vm172, %v3157, 0
  %v3305 = vsel %vm172, %v3158, 0
  %v3308 = vsel %vm172, %v3159, 0
  %v3311 = vsel %vm172, %v3160, 0
  %v3314 = vsel %vm172, %v3161, 0
  %v3317 = vsel %vm172, %v3162, 0
  %v3320 = vsel %vm172, %v3163, 0
  %v3323 = vsel %vm172, %v3164, 0
  %v3326 = vsel %vm172, %v3165, 0
  %v3329 = vsel %vm172, %v3166, 0
  %v3332 = vsel %vm172, %v3167, 0
  %v3335 = vsel %vm172, %v3168, 0
  %v3338 = vsel %vm172, %v3169, 0
  %v3341 = vsel %vm172, %v3170, 0
  %v3344 = vsel %vm172, %v3171, 0
  %v3347 = vsel %vm172, %v3172, 0
  %v3350 = vsel %vm172, %v3173, 0
  %v3353 = vsel %vm172, %v3174, 0
  %v3356 = vsel %vm172, %v3175, 0
  %v3359 = vsel %vm172, %v3176, 0
  %v3362 = vsel %vm172, %v3177, 0
  %v3365 = vsel %vm172, %v3178, 0
  %v3368 = vsel %vm172, %v3179, 0
  %v3371 = vsel %vm172, %v3180, 0
  %v3374 = vsel %vm172, %v3181, 0
  %v3377 = vsel %vm365, %v3183, 0
  %3379 = vmatpush.msra.mxu0 0.0
  %3380 = vmatpush.msra.mxu0 0.0
  %3381 = vmatpush.msra.mxu0 0.0
  %3382 = vmatpush.msra.mxu0 0.0
  %3383 = vmatpush.msra.mxu0 0.0
  %3384 = vmatpush.msra.mxu0 0.0
  %3385 = vmatpush.msra.mxu0 0.0
  %3386 = vmatpush.msra.mxu0 0.0
  %3387 = vmatpush.msra.mxu0 0.0
  %3388 = vmatpush.msra.mxu0 0.0
  %3389 = vmatpush.msra.mxu0 0.0
  %3390 = vmatpush.msra.mxu0 0.0
  %3391 = vmatpush.msra.mxu0 0.0
  %3392 = vmatpush.msra.mxu0 0.0
  %3393 = vmatpush.msra.mxu0 0.0
  %3394 = vmatpush.msra.mxu0 %v3377
  %3395 = vmatmul.f32.gmra.mxu0 %v3185
  %v3396 = vpop.f32.mrf.mxu0
  %v3397 = vadd.f32 0.0, %v3396
  %3398 = vmatmul.f32.gmra.mxu0 %v3188
  %v3399 = vpop.f32.mrf.mxu0
  %v3400 = vadd.f32 0.0, %v3399
  %3401 = vmatmul.f32.gmra.mxu0 %v3191
  %v3402 = vpop.f32.mrf.mxu0
  %v3403 = vadd.f32 0.0, %v3402
  %3404 = vmatmul.f32.gmra.mxu0 %v3194
  %v3405 = vpop.f32.mrf.mxu0
  %v3406 = vadd.f32 0.0, %v3405
  %3407 = vmatmul.f32.gmra.mxu0 %v3197
  %v3408 = vpop.f32.mrf.mxu0
  %v3409 = vadd.f32 0.0, %v3408
  %3410 = vmatmul.f32.gmra.mxu0 %v3200
  %v3411 = vpop.f32.mrf.mxu0
  %v3412 = vadd.f32 0.0, %v3411
  %3413 = vmatmul.f32.gmra.mxu0 %v3203
  %v3414 = vpop.f32.mrf.mxu0
  %v3415 = vadd.f32 0.0, %v3414
  %3416 = vmatmul.f32.gmra.mxu0 %v3206
  %v3417 = vpop.f32.mrf.mxu0
  %v3418 = vadd.f32 0.0, %v3417
  %3419 = vmatmul.f32.gmra.mxu0 %v3209
  %v3420 = vpop.f32.mrf.mxu0
  %v3421 = vadd.f32 0.0, %v3420
  %3422 = vmatmul.f32.gmra.mxu0 %v3212
  %v3423 = vpop.f32.mrf.mxu0
  %v3424 = vadd.f32 0.0, %v3423
  %3425 = vmatmul.f32.gmra.mxu0 %v3215
  %v3426 = vpop.f32.mrf.mxu0
  %v3427 = vadd.f32 0.0, %v3426
  %3428 = vmatmul.f32.gmra.mxu0 %v3218
  %v3429 = vpop.f32.mrf.mxu0
  %v3430 = vadd.f32 0.0, %v3429
  %3431 = vmatmul.f32.gmra.mxu0 %v3221
  %v3432 = vpop.f32.mrf.mxu0
  %v3433 = vadd.f32 0.0, %v3432
  %3434 = vmatmul.f32.gmra.mxu0 %v3224
  %v3435 = vpop.f32.mrf.mxu0
  %v3436 = vadd.f32 0.0, %v3435
  %3437 = vmatmul.f32.gmra.mxu0 %v3227
  %v3438 = vpop.f32.mrf.mxu0
  %v3439 = vadd.f32 0.0, %v3438
  %3440 = vmatmul.f32.gmra.mxu0 %v3230
  %v3441 = vpop.f32.mrf.mxu0
  %v3442 = vadd.f32 0.0, %v3441
  %3443 = vmatmul.f32.gmra.mxu0 %v3233
  %v3444 = vpop.f32.mrf.mxu0
  %v3445 = vadd.f32 0.0, %v3444
  %3446 = vmatmul.f32.gmra.mxu0 %v3236
  %v3447 = vpop.f32.mrf.mxu0
  %v3448 = vadd.f32 0.0, %v3447
  %3449 = vmatmul.f32.gmra.mxu0 %v3239
  %v3450 = vpop.f32.mrf.mxu0
  %v3451 = vadd.f32 0.0, %v3450
  %3452 = vmatmul.f32.gmra.mxu0 %v3242
  %v3453 = vpop.f32.mrf.mxu0
  %v3454 = vadd.f32 0.0, %v3453
  %3455 = vmatmul.f32.gmra.mxu0 %v3245
  %v3456 = vpop.f32.mrf.mxu0
  %v3457 = vadd.f32 0.0, %v3456
  %3458 = vmatmul.f32.gmra.mxu0 %v3248
  %v3459 = vpop.f32.mrf.mxu0
  %v3460 = vadd.f32 0.0, %v3459
  %3461 = vmatmul.f32.gmra.mxu0 %v3251
  %v3462 = vpop.f32.mrf.mxu0
  %v3463 = vadd.f32 0.0, %v3462
  %3464 = vmatmul.f32.gmra.mxu0 %v3254
  %v3465 = vpop.f32.mrf.mxu0
  %v3466 = vadd.f32 0.0, %v3465
  %3467 = vmatmul.f32.gmra.mxu0 %v3257
  %v3468 = vpop.f32.mrf.mxu0
  %v3469 = vadd.f32 0.0, %v3468
  %3470 = vmatmul.f32.gmra.mxu0 %v3260
  %v3471 = vpop.f32.mrf.mxu0
  %v3472 = vadd.f32 0.0, %v3471
  %3473 = vmatmul.f32.gmra.mxu0 %v3263
  %v3474 = vpop.f32.mrf.mxu0
  %v3475 = vadd.f32 0.0, %v3474
  %3476 = vmatmul.f32.gmra.mxu0 %v3266
  %v3477 = vpop.f32.mrf.mxu0
  %v3478 = vadd.f32 0.0, %v3477
  %3479 = vmatmul.f32.gmra.mxu0 %v3269
  %v3480 = vpop.f32.mrf.mxu0
  %v3481 = vadd.f32 0.0, %v3480
  %3482 = vmatmul.f32.gmra.mxu0 %v3272
  %v3483 = vpop.f32.mrf.mxu0
  %v3484 = vadd.f32 0.0, %v3483
  %3485 = vmatmul.f32.gmra.mxu0 %v3275
  %v3486 = vpop.f32.mrf.mxu0
  %v3487 = vadd.f32 0.0, %v3486
  %3488 = vmatmul.f32.gmra.mxu0 %v3278
  %v3489 = vpop.f32.mrf.mxu0
  %v3490 = vadd.f32 0.0, %v3489
  %3491 = vmatmul.f32.gmra.mxu0 %v3281
  %v3492 = vpop.f32.mrf.mxu0
  %v3493 = vadd.f32 0.0, %v3492
  %3494 = vmatmul.f32.gmra.mxu0 %v3284
  %v3495 = vpop.f32.mrf.mxu0
  %v3496 = vadd.f32 0.0, %v3495
  %3497 = vmatmul.f32.gmra.mxu0 %v3287
  %v3498 = vpop.f32.mrf.mxu0
  %v3499 = vadd.f32 0.0, %v3498
  %3500 = vmatmul.f32.gmra.mxu0 %v3290
  %v3501 = vpop.f32.mrf.mxu0
  %v3502 = vadd.f32 0.0, %v3501
  %3503 = vmatmul.f32.gmra.mxu0 %v3293
  %v3504 = vpop.f32.mrf.mxu0
  %v3505 = vadd.f32 0.0, %v3504
  %3506 = vmatmul.f32.gmra.mxu0 %v3296
  %v3507 = vpop.f32.mrf.mxu0
  %v3508 = vadd.f32 0.0, %v3507
  %3509 = vmatmul.f32.gmra.mxu0 %v3299
  %v3510 = vpop.f32.mrf.mxu0
  %v3511 = vadd.f32 0.0, %v3510
  %3512 = vmatmul.f32.gmra.mxu0 %v3302
  %v3513 = vpop.f32.mrf.mxu0
  %v3514 = vadd.f32 0.0, %v3513
  %3515 = vmatmul.f32.gmra.mxu0 %v3305
  %v3516 = vpop.f32.mrf.mxu0
  %v3517 = vadd.f32 0.0, %v3516
  %3518 = vmatmul.f32.gmra.mxu0 %v3308
  %v3519 = vpop.f32.mrf.mxu0
  %v3520 = vadd.f32 0.0, %v3519
  %3521 = vmatmul.f32.gmra.mxu0 %v3311
  %v3522 = vpop.f32.mrf.mxu0
  %v3523 = vadd.f32 0.0, %v3522
  %3524 = vmatmul.f32.gmra.mxu0 %v3314
  %v3525 = vpop.f32.mrf.mxu0
  %v3526 = vadd.f32 0.0, %v3525
  %3527 = vmatmul.f32.gmra.mxu0 %v3317
  %v3528 = vpop.f32.mrf.mxu0
  %v3529 = vadd.f32 0.0, %v3528
  %3530 = vmatmul.f32.gmra.mxu0 %v3320
  %v3531 = vpop.f32.mrf.mxu0
  %v3532 = vadd.f32 0.0, %v3531
  %3533 = vmatmul.f32.gmra.mxu0 %v3323
  %v3534 = vpop.f32.mrf.mxu0
  %v3535 = vadd.f32 0.0, %v3534
  %3536 = vmatmul.f32.gmra.mxu0 %v3326
  %v3537 = vpop.f32.mrf.mxu0
  %v3538 = vadd.f32 0.0, %v3537
  %3539 = vmatmul.f32.gmra.mxu0 %v3329
  %v3540 = vpop.f32.mrf.mxu0
  %v3541 = vadd.f32 0.0, %v3540
  %3542 = vmatmul.f32.gmra.mxu0 %v3332
  %v3543 = vpop.f32.mrf.mxu0
  %v3544 = vadd.f32 0.0, %v3543
  %3545 = vmatmul.f32.gmra.mxu0 %v3335
  %v3546 = vpop.f32.mrf.mxu0
  %v3547 = vadd.f32 0.0, %v3546
  %3548 = vmatmul.f32.gmra.mxu0 %v3338
  %v3549 = vpop.f32.mrf.mxu0
  %v3550 = vadd.f32 0.0, %v3549
  %3551 = vmatmul.f32.gmra.mxu0 %v3341
  %v3552 = vpop.f32.mrf.mxu0
  %v3553 = vadd.f32 0.0, %v3552
  %3554 = vmatmul.f32.gmra.mxu0 %v3344
  %v3555 = vpop.f32.mrf.mxu0
  %v3556 = vadd.f32 0.0, %v3555
  %3557 = vmatmul.f32.gmra.mxu0 %v3347
  %v3558 = vpop.f32.mrf.mxu0
  %v3559 = vadd.f32 0.0, %v3558
  %3560 = vmatmul.f32.gmra.mxu0 %v3350
  %v3561 = vpop.f32.mrf.mxu0
  %v3562 = vadd.f32 0.0, %v3561
  %3563 = vmatmul.f32.gmra.mxu0 %v3353
  %v3564 = vpop.f32.mrf.mxu0
  %v3565 = vadd.f32 0.0, %v3564
  %3566 = vmatmul.f32.gmra.mxu0 %v3356
  %v3567 = vpop.f32.mrf.mxu0
  %v3568 = vadd.f32 0.0, %v3567
  %3569 = vmatmul.f32.gmra.mxu0 %v3359
  %v3570 = vpop.f32.mrf.mxu0
  %v3571 = vadd.f32 0.0, %v3570
  %3572 = vmatmul.f32.gmra.mxu0 %v3362
  %v3573 = vpop.f32.mrf.mxu0
  %v3574 = vadd.f32 0.0, %v3573
  %3575 = vmatmul.f32.gmra.mxu0 %v3365
  %v3576 = vpop.f32.mrf.mxu0
  %v3577 = vadd.f32 0.0, %v3576
  %3578 = vmatmul.f32.gmra.mxu0 %v3368
  %v3579 = vpop.f32.mrf.mxu0
  %v3580 = vadd.f32 0.0, %v3579
  %3581 = vmatmul.f32.gmra.mxu0 %v3371
  %v3582 = vpop.f32.mrf.mxu0
  %v3583 = vadd.f32 0.0, %v3582
  %3584 = vmatmul.f32.gmra.mxu0 %v3374
  %v3585 = vpop.f32.mrf.mxu0
  %v3586 = vadd.f32 0.0, %v3585
  %3587 = vdwg.mxu0
  %v3588 = vadd.f32 %v3054, %v3397
  %v3589 = vadd.f32 %v3055, %v3400
  %v3590 = vadd.f32 %v3056, %v3403
  %v3591 = vadd.f32 %v3057, %v3406
  %v3592 = vadd.f32 %v3058, %v3409
  %v3593 = vadd.f32 %v3059, %v3412
  %v3594 = vadd.f32 %v3060, %v3415
  %v3595 = vadd.f32 %v3061, %v3418
  %v3596 = vadd.f32 %v3062, %v3421
  %v3597 = vadd.f32 %v3063, %v3424
  %v3598 = vadd.f32 %v3064, %v3427
  %v3599 = vadd.f32 %v3065, %v3430
  %v3600 = vadd.f32 %v3066, %v3433
  %v3601 = vadd.f32 %v3067, %v3436
  %v3602 = vadd.f32 %v3068, %v3439
  %v3603 = vadd.f32 %v3069, %v3442
  %v3604 = vadd.f32 %v3070, %v3445
  %v3605 = vadd.f32 %v3071, %v3448
  %v3606 = vadd.f32 %v3072, %v3451
  %v3607 = vadd.f32 %v3073, %v3454
  %v3608 = vadd.f32 %v3074, %v3457
  %v3609 = vadd.f32 %v3075, %v3460
  %v3610 = vadd.f32 %v3076, %v3463
  %v3611 = vadd.f32 %v3077, %v3466
  %v3612 = vadd.f32 %v3078, %v3469
  %v3613 = vadd.f32 %v3079, %v3472
  %v3614 = vadd.f32 %v3080, %v3475
  %v3615 = vadd.f32 %v3081, %v3478
  %v3616 = vadd.f32 %v3082, %v3481
  %v3617 = vadd.f32 %v3083, %v3484
  %v3618 = vadd.f32 %v3084, %v3487
  %v3619 = vadd.f32 %v3085, %v3490
  %v3620 = vadd.f32 %v3086, %v3493
  %v3621 = vadd.f32 %v3087, %v3496
  %v3622 = vadd.f32 %v3088, %v3499
  %v3623 = vadd.f32 %v3089, %v3502
  %v3624 = vadd.f32 %v3090, %v3505
  %v3625 = vadd.f32 %v3091, %v3508
  %v3626 = vadd.f32 %v3092, %v3511
  %v3627 = vadd.f32 %v3093, %v3514
  %v3628 = vadd.f32 %v3094, %v3517
  %v3629 = vadd.f32 %v3095, %v3520
  %v3630 = vadd.f32 %v3096, %v3523
  %v3631 = vadd.f32 %v3097, %v3526
  %v3632 = vadd.f32 %v3098, %v3529
  %v3633 = vadd.f32 %v3099, %v3532
  %v3634 = vadd.f32 %v3100, %v3535
  %v3635 = vadd.f32 %v3101, %v3538
  %v3636 = vadd.f32 %v3102, %v3541
  %v3637 = vadd.f32 %v3103, %v3544
  %v3638 = vadd.f32 %v3104, %v3547
  %v3639 = vadd.f32 %v3105, %v3550
  %v3640 = vadd.f32 %v3106, %v3553
  %v3641 = vadd.f32 %v3107, %v3556
  %v3642 = vadd.f32 %v3108, %v3559
  %v3643 = vadd.f32 %v3109, %v3562
  %v3644 = vadd.f32 %v3110, %v3565
  %v3645 = vadd.f32 %v3111, %v3568
  %v3646 = vadd.f32 %v3112, %v3571
  %v3647 = vadd.f32 %v3113, %v3574
  %v3648 = vadd.f32 %v3114, %v3577
  %v3649 = vadd.f32 %v3115, %v3580
  %v3650 = vadd.f32 %v3116, %v3583
  %v3651 = vadd.f32 %v3117, %v3586
  %v3652 = vld [vmem:[%s7] sm:$0xff]
  %v3653 = vld [vmem:[%s7 + $0x8] sm:$0xff]
  %v3654 = vld [vmem:[%s7 + $0x10] sm:$0xff]
  %v3655 = vld [vmem:[%s7 + $0x18] sm:$0xff]
  %v3656 = vld [vmem:[%s7 + $0x20] sm:$0xff]
  %v3657 = vld [vmem:[%s7 + $0x28] sm:$0xff]
  %v3658 = vld [vmem:[%s7 + $0x30] sm:$0xff]
  %v3659 = vld [vmem:[%s7 + $0x38] sm:$0xff]
  %v3660 = vld [vmem:[%s7 + $0x40] sm:$0xff]
  %v3661 = vld [vmem:[%s7 + $0x48] sm:$0xff]
  %v3662 = vld [vmem:[%s7 + $0x50] sm:$0xff]
  %v3663 = vld [vmem:[%s7 + $0x58] sm:$0xff]
  %v3664 = vld [vmem:[%s7 + $0x60] sm:$0xff]
  %v3665 = vld [vmem:[%s7 + $0x68] sm:$0xff]
  %v3666 = vld [vmem:[%s7 + $0x70] sm:$0xff]
  %v3667 = vld [vmem:[%s7 + $0x78] sm:$0xff]
  %v3668 = vld [vmem:[%s7 + $0x80] sm:$0xff]
  %v3669 = vld [vmem:[%s7 + $0x88] sm:$0xff]
  %v3670 = vld [vmem:[%s7 + $0x90] sm:$0xff]
  %v3671 = vld [vmem:[%s7 + $0x98] sm:$0xff]
  %v3672 = vld [vmem:[%s7 + $0xa0] sm:$0xff]
  %v3673 = vld [vmem:[%s7 + $0xa8] sm:$0xff]
  %v3674 = vld [vmem:[%s7 + $0xb0] sm:$0xff]
  %v3675 = vld [vmem:[%s7 + $0xb8] sm:$0xff]
  %v3676 = vld [vmem:[%s7 + $0xc0] sm:$0xff]
  %v3677 = vld [vmem:[%s7 + $0xc8] sm:$0xff]
  %v3678 = vld [vmem:[%s7 + $0xd0] sm:$0xff]
  %v3679 = vld [vmem:[%s7 + $0xd8] sm:$0xff]
  %v3680 = vld [vmem:[%s7 + $0xe0] sm:$0xff]
  %v3681 = vld [vmem:[%s7 + $0xe8] sm:$0xff]
  %v3682 = vld [vmem:[%s7 + $0xf0] sm:$0xff]
  %v3683 = vld [vmem:[%s7 + $0xf8] sm:$0xff]
  %v3684 = vld [vmem:[%s7 + $0x100] sm:$0xff]
  %v3685 = vld [vmem:[%s7 + $0x108] sm:$0xff]
  %v3686 = vld [vmem:[%s7 + $0x110] sm:$0xff]
  %v3687 = vld [vmem:[%s7 + $0x118] sm:$0xff]
  %v3688 = vld [vmem:[%s7 + $0x120] sm:$0xff]
  %v3689 = vld [vmem:[%s7 + $0x128] sm:$0xff]
  %v3690 = vld [vmem:[%s7 + $0x130] sm:$0xff]
  %v3691 = vld [vmem:[%s7 + $0x138] sm:$0xff]
  %v3692 = vld [vmem:[%s7 + $0x140] sm:$0xff]
  %v3693 = vld [vmem:[%s7 + $0x148] sm:$0xff]
  %v3694 = vld [vmem:[%s7 + $0x150] sm:$0xff]
  %v3695 = vld [vmem:[%s7 + $0x158] sm:$0xff]
  %v3696 = vld [vmem:[%s7 + $0x160] sm:$0xff]
  %v3697 = vld [vmem:[%s7 + $0x168] sm:$0xff]
  %v3698 = vld [vmem:[%s7 + $0x170] sm:$0xff]
  %v3699 = vld [vmem:[%s7 + $0x178] sm:$0xff]
  %v3700 = vld [vmem:[%s7 + $0x180] sm:$0xff]
  %v3701 = vld [vmem:[%s7 + $0x188] sm:$0xff]
  %v3702 = vld [vmem:[%s7 + $0x190] sm:$0xff]
  %v3703 = vld [vmem:[%s7 + $0x198] sm:$0xff]
  %v3704 = vld [vmem:[%s7 + $0x1a0] sm:$0xff]
  %v3705 = vld [vmem:[%s7 + $0x1a8] sm:$0xff]
  %v3706 = vld [vmem:[%s7 + $0x1b0] sm:$0xff]
  %v3707 = vld [vmem:[%s7 + $0x1b8] sm:$0xff]
  %v3708 = vld [vmem:[%s7 + $0x1c0] sm:$0xff]
  %v3709 = vld [vmem:[%s7 + $0x1c8] sm:$0xff]
  %v3710 = vld [vmem:[%s7 + $0x1d0] sm:$0xff]
  %v3711 = vld [vmem:[%s7 + $0x1d8] sm:$0xff]
  %v3712 = vld [vmem:[%s7 + $0x1e0] sm:$0xff]
  %v3713 = vld [vmem:[%s7 + $0x1e8] sm:$0xff]
  %v3714 = vld [vmem:[%s7 + $0x1f0] sm:$0xff]
  %v3715 = vld [vmem:[%s7 + $0x1f8] sm:$0xff]
  %s3716 = scalar_lea.vmem %s9, 28
  %v3717 = vld [vmem:[%s3716] sm:$0x7]
  %v3719 = vsel %vm172, %v3652, 0
  %v3722 = vsel %vm172, %v3653, 0
  %v3725 = vsel %vm172, %v3654, 0
  %v3728 = vsel %vm172, %v3655, 0
  %v3731 = vsel %vm172, %v3656, 0
  %v3734 = vsel %vm172, %v3657, 0
  %v3737 = vsel %vm172, %v3658, 0
  %v3740 = vsel %vm172, %v3659, 0
  %v3743 = vsel %vm172, %v3660, 0
  %v3746 = vsel %vm172, %v3661, 0
  %v3749 = vsel %vm172, %v3662, 0
  %v3752 = vsel %vm172, %v3663, 0
  %v3755 = vsel %vm172, %v3664, 0
  %v3758 = vsel %vm172, %v3665, 0
  %v3761 = vsel %vm172, %v3666, 0
  %v3764 = vsel %vm172, %v3667, 0
  %v3767 = vsel %vm172, %v3668, 0
  %v3770 = vsel %vm172, %v3669, 0
  %v3773 = vsel %vm172, %v3670, 0
  %v3776 = vsel %vm172, %v3671, 0
  %v3779 = vsel %vm172, %v3672, 0
  %v3782 = vsel %vm172, %v3673, 0
  %v3785 = vsel %vm172, %v3674, 0
  %v3788 = vsel %vm172, %v3675, 0
  %v3791 = vsel %vm172, %v3676, 0
  %v3794 = vsel %vm172, %v3677, 0
  %v3797 = vsel %vm172, %v3678, 0
  %v3800 = vsel %vm172, %v3679, 0
  %v3803 = vsel %vm172, %v3680, 0
  %v3806 = vsel %vm172, %v3681, 0
  %v3809 = vsel %vm172, %v3682, 0
  %v3812 = vsel %vm172, %v3683, 0
  %v3815 = vsel %vm172, %v3684, 0
  %v3818 = vsel %vm172, %v3685, 0
  %v3821 = vsel %vm172, %v3686, 0
  %v3824 = vsel %vm172, %v3687, 0
  %v3827 = vsel %vm172, %v3688, 0
  %v3830 = vsel %vm172, %v3689, 0
  %v3833 = vsel %vm172, %v3690, 0
  %v3836 = vsel %vm172, %v3691, 0
  %v3839 = vsel %vm172, %v3692, 0
  %v3842 = vsel %vm172, %v3693, 0
  %v3845 = vsel %vm172, %v3694, 0
  %v3848 = vsel %vm172, %v3695, 0
  %v3851 = vsel %vm172, %v3696, 0
  %v3854 = vsel %vm172, %v3697, 0
  %v3857 = vsel %vm172, %v3698, 0
  %v3860 = vsel %vm172, %v3699, 0
  %v3863 = vsel %vm172, %v3700, 0
  %v3866 = vsel %vm172, %v3701, 0
  %v3869 = vsel %vm172, %v3702, 0
  %v3872 = vsel %vm172, %v3703, 0
  %v3875 = vsel %vm172, %v3704, 0
  %v3878 = vsel %vm172, %v3705, 0
  %v3881 = vsel %vm172, %v3706, 0
  %v3884 = vsel %vm172, %v3707, 0
  %v3887 = vsel %vm172, %v3708, 0
  %v3890 = vsel %vm172, %v3709, 0
  %v3893 = vsel %vm172, %v3710, 0
  %v3896 = vsel %vm172, %v3711, 0
  %v3899 = vsel %vm172, %v3712, 0
  %v3902 = vsel %vm172, %v3713, 0
  %v3905 = vsel %vm172, %v3714, 0
  %v3908 = vsel %vm172, %v3715, 0
  %v3911 = vsel %vm365, %v3717, 0
  %3913 = vmatpush.msra.mxu0 0.0
  %3914 = vmatpush.msra.mxu0 0.0
  %3915 = vmatpush.msra.mxu0 0.0
  %3916 = vmatpush.msra.mxu0 0.0
  %3917 = vmatpush.msra.mxu0 0.0
  %3918 = vmatpush.msra.mxu0 0.0
  %3919 = vmatpush.msra.mxu0 0.0
  %3920 = vmatpush.msra.mxu0 0.0
  %3921 = vmatpush.msra.mxu0 0.0
  %3922 = vmatpush.msra.mxu0 0.0
  %3923 = vmatpush.msra.mxu0 0.0
  %3924 = vmatpush.msra.mxu0 0.0
  %3925 = vmatpush.msra.mxu0 0.0
  %3926 = vmatpush.msra.mxu0 0.0
  %3927 = vmatpush.msra.mxu0 0.0
  %3928 = vmatpush.msra.mxu0 %v3911
  %3929 = vmatmul.f32.gmra.mxu0 %v3719
  %v3930 = vpop.f32.mrf.mxu0
  %v3931 = vadd.f32 0.0, %v3930
  %3932 = vmatmul.f32.gmra.mxu0 %v3722
  %v3933 = vpop.f32.mrf.mxu0
  %v3934 = vadd.f32 0.0, %v3933
  %3935 = vmatmul.f32.gmra.mxu0 %v3725
  %v3936 = vpop.f32.mrf.mxu0
  %v3937 = vadd.f32 0.0, %v3936
  %3938 = vmatmul.f32.gmra.mxu0 %v3728
  %v3939 = vpop.f32.mrf.mxu0
  %v3940 = vadd.f32 0.0, %v3939
  %3941 = vmatmul.f32.gmra.mxu0 %v3731
  %v3942 = vpop.f32.mrf.mxu0
  %v3943 = vadd.f32 0.0, %v3942
  %3944 = vmatmul.f32.gmra.mxu0 %v3734
  %v3945 = vpop.f32.mrf.mxu0
  %v3946 = vadd.f32 0.0, %v3945
  %3947 = vmatmul.f32.gmra.mxu0 %v3737
  %v3948 = vpop.f32.mrf.mxu0
  %v3949 = vadd.f32 0.0, %v3948
  %3950 = vmatmul.f32.gmra.mxu0 %v3740
  %v3951 = vpop.f32.mrf.mxu0
  %v3952 = vadd.f32 0.0, %v3951
  %3953 = vmatmul.f32.gmra.mxu0 %v3743
  %v3954 = vpop.f32.mrf.mxu0
  %v3955 = vadd.f32 0.0, %v3954
  %3956 = vmatmul.f32.gmra.mxu0 %v3746
  %v3957 = vpop.f32.mrf.mxu0
  %v3958 = vadd.f32 0.0, %v3957
  %3959 = vmatmul.f32.gmra.mxu0 %v3749
  %v3960 = vpop.f32.mrf.mxu0
  %v3961 = vadd.f32 0.0, %v3960
  %3962 = vmatmul.f32.gmra.mxu0 %v3752
  %v3963 = vpop.f32.mrf.mxu0
  %v3964 = vadd.f32 0.0, %v3963
  %3965 = vmatmul.f32.gmra.mxu0 %v3755
  %v3966 = vpop.f32.mrf.mxu0
  %v3967 = vadd.f32 0.0, %v3966
  %3968 = vmatmul.f32.gmra.mxu0 %v3758
  %v3969 = vpop.f32.mrf.mxu0
  %v3970 = vadd.f32 0.0, %v3969
  %3971 = vmatmul.f32.gmra.mxu0 %v3761
  %v3972 = vpop.f32.mrf.mxu0
  %v3973 = vadd.f32 0.0, %v3972
  %3974 = vmatmul.f32.gmra.mxu0 %v3764
  %v3975 = vpop.f32.mrf.mxu0
  %v3976 = vadd.f32 0.0, %v3975
  %3977 = vmatmul.f32.gmra.mxu0 %v3767
  %v3978 = vpop.f32.mrf.mxu0
  %v3979 = vadd.f32 0.0, %v3978
  %3980 = vmatmul.f32.gmra.mxu0 %v3770
  %v3981 = vpop.f32.mrf.mxu0
  %v3982 = vadd.f32 0.0, %v3981
  %3983 = vmatmul.f32.gmra.mxu0 %v3773
  %v3984 = vpop.f32.mrf.mxu0
  %v3985 = vadd.f32 0.0, %v3984
  %3986 = vmatmul.f32.gmra.mxu0 %v3776
  %v3987 = vpop.f32.mrf.mxu0
  %v3988 = vadd.f32 0.0, %v3987
  %3989 = vmatmul.f32.gmra.mxu0 %v3779
  %v3990 = vpop.f32.mrf.mxu0
  %v3991 = vadd.f32 0.0, %v3990
  %3992 = vmatmul.f32.gmra.mxu0 %v3782
  %v3993 = vpop.f32.mrf.mxu0
  %v3994 = vadd.f32 0.0, %v3993
  %3995 = vmatmul.f32.gmra.mxu0 %v3785
  %v3996 = vpop.f32.mrf.mxu0
  %v3997 = vadd.f32 0.0, %v3996
  %3998 = vmatmul.f32.gmra.mxu0 %v3788
  %v3999 = vpop.f32.mrf.mxu0
  %v4000 = vadd.f32 0.0, %v3999
  %4001 = vmatmul.f32.gmra.mxu0 %v3791
  %v4002 = vpop.f32.mrf.mxu0
  %v4003 = vadd.f32 0.0, %v4002
  %4004 = vmatmul.f32.gmra.mxu0 %v3794
  %v4005 = vpop.f32.mrf.mxu0
  %v4006 = vadd.f32 0.0, %v4005
  %4007 = vmatmul.f32.gmra.mxu0 %v3797
  %v4008 = vpop.f32.mrf.mxu0
  %v4009 = vadd.f32 0.0, %v4008
  %4010 = vmatmul.f32.gmra.mxu0 %v3800
  %v4011 = vpop.f32.mrf.mxu0
  %v4012 = vadd.f32 0.0, %v4011
  %4013 = vmatmul.f32.gmra.mxu0 %v3803
  %v4014 = vpop.f32.mrf.mxu0
  %v4015 = vadd.f32 0.0, %v4014
  %4016 = vmatmul.f32.gmra.mxu0 %v3806
  %v4017 = vpop.f32.mrf.mxu0
  %v4018 = vadd.f32 0.0, %v4017
  %4019 = vmatmul.f32.gmra.mxu0 %v3809
  %v4020 = vpop.f32.mrf.mxu0
  %v4021 = vadd.f32 0.0, %v4020
  %4022 = vmatmul.f32.gmra.mxu0 %v3812
  %v4023 = vpop.f32.mrf.mxu0
  %v4024 = vadd.f32 0.0, %v4023
  %4025 = vmatmul.f32.gmra.mxu0 %v3815
  %v4026 = vpop.f32.mrf.mxu0
  %v4027 = vadd.f32 0.0, %v4026
  %4028 = vmatmul.f32.gmra.mxu0 %v3818
  %v4029 = vpop.f32.mrf.mxu0
  %v4030 = vadd.f32 0.0, %v4029
  %4031 = vmatmul.f32.gmra.mxu0 %v3821
  %v4032 = vpop.f32.mrf.mxu0
  %v4033 = vadd.f32 0.0, %v4032
  %4034 = vmatmul.f32.gmra.mxu0 %v3824
  %v4035 = vpop.f32.mrf.mxu0
  %v4036 = vadd.f32 0.0, %v4035
  %4037 = vmatmul.f32.gmra.mxu0 %v3827
  %v4038 = vpop.f32.mrf.mxu0
  %v4039 = vadd.f32 0.0, %v4038
  %4040 = vmatmul.f32.gmra.mxu0 %v3830
  %v4041 = vpop.f32.mrf.mxu0
  %v4042 = vadd.f32 0.0, %v4041
  %4043 = vmatmul.f32.gmra.mxu0 %v3833
  %v4044 = vpop.f32.mrf.mxu0
  %v4045 = vadd.f32 0.0, %v4044
  %4046 = vmatmul.f32.gmra.mxu0 %v3836
  %v4047 = vpop.f32.mrf.mxu0
  %v4048 = vadd.f32 0.0, %v4047
  %4049 = vmatmul.f32.gmra.mxu0 %v3839
  %v4050 = vpop.f32.mrf.mxu0
  %v4051 = vadd.f32 0.0, %v4050
  %4052 = vmatmul.f32.gmra.mxu0 %v3842
  %v4053 = vpop.f32.mrf.mxu0
  %v4054 = vadd.f32 0.0, %v4053
  %4055 = vmatmul.f32.gmra.mxu0 %v3845
  %v4056 = vpop.f32.mrf.mxu0
  %v4057 = vadd.f32 0.0, %v4056
  %4058 = vmatmul.f32.gmra.mxu0 %v3848
  %v4059 = vpop.f32.mrf.mxu0
  %v4060 = vadd.f32 0.0, %v4059
  %4061 = vmatmul.f32.gmra.mxu0 %v3851
  %v4062 = vpop.f32.mrf.mxu0
  %v4063 = vadd.f32 0.0, %v4062
  %4064 = vmatmul.f32.gmra.mxu0 %v3854
  %v4065 = vpop.f32.mrf.mxu0
  %v4066 = vadd.f32 0.0, %v4065
  %4067 = vmatmul.f32.gmra.mxu0 %v3857
  %v4068 = vpop.f32.mrf.mxu0
  %v4069 = vadd.f32 0.0, %v4068
  %4070 = vmatmul.f32.gmra.mxu0 %v3860
  %v4071 = vpop.f32.mrf.mxu0
  %v4072 = vadd.f32 0.0, %v4071
  %4073 = vmatmul.f32.gmra.mxu0 %v3863
  %v4074 = vpop.f32.mrf.mxu0
  %v4075 = vadd.f32 0.0, %v4074
  %4076 = vmatmul.f32.gmra.mxu0 %v3866
  %v4077 = vpop.f32.mrf.mxu0
  %v4078 = vadd.f32 0.0, %v4077
  %4079 = vmatmul.f32.gmra.mxu0 %v3869
  %v4080 = vpop.f32.mrf.mxu0
  %v4081 = vadd.f32 0.0, %v4080
  %4082 = vmatmul.f32.gmra.mxu0 %v3872
  %v4083 = vpop.f32.mrf.mxu0
  %v4084 = vadd.f32 0.0, %v4083
  %4085 = vmatmul.f32.gmra.mxu0 %v3875
  %v4086 = vpop.f32.mrf.mxu0
  %v4087 = vadd.f32 0.0, %v4086
  %4088 = vmatmul.f32.gmra.mxu0 %v3878
  %v4089 = vpop.f32.mrf.mxu0
  %v4090 = vadd.f32 0.0, %v4089
  %4091 = vmatmul.f32.gmra.mxu0 %v3881
  %v4092 = vpop.f32.mrf.mxu0
  %v4093 = vadd.f32 0.0, %v4092
  %4094 = vmatmul.f32.gmra.mxu0 %v3884
  %v4095 = vpop.f32.mrf.mxu0
  %v4096 = vadd.f32 0.0, %v4095
  %4097 = vmatmul.f32.gmra.mxu0 %v3887
  %v4098 = vpop.f32.mrf.mxu0
  %v4099 = vadd.f32 0.0, %v4098
  %4100 = vmatmul.f32.gmra.mxu0 %v3890
  %v4101 = vpop.f32.mrf.mxu0
  %v4102 = vadd.f32 0.0, %v4101
  %4103 = vmatmul.f32.gmra.mxu0 %v3893
  %v4104 = vpop.f32.mrf.mxu0
  %v4105 = vadd.f32 0.0, %v4104
  %4106 = vmatmul.f32.gmra.mxu0 %v3896
  %v4107 = vpop.f32.mrf.mxu0
  %v4108 = vadd.f32 0.0, %v4107
  %4109 = vmatmul.f32.gmra.mxu0 %v3899
  %v4110 = vpop.f32.mrf.mxu0
  %v4111 = vadd.f32 0.0, %v4110
  %4112 = vmatmul.f32.gmra.mxu0 %v3902
  %v4113 = vpop.f32.mrf.mxu0
  %v4114 = vadd.f32 0.0, %v4113
  %4115 = vmatmul.f32.gmra.mxu0 %v3905
  %v4116 = vpop.f32.mrf.mxu0
  %v4117 = vadd.f32 0.0, %v4116
  %4118 = vmatmul.f32.gmra.mxu0 %v3908
  %v4119 = vpop.f32.mrf.mxu0
  %v4120 = vadd.f32 0.0, %v4119
  %4121 = vdwg.mxu0
  %v4122 = vadd.f32 %v3588, %v3931
  %v4123 = vadd.f32 %v3589, %v3934
  %v4124 = vadd.f32 %v3590, %v3937
  %v4125 = vadd.f32 %v3591, %v3940
  %v4126 = vadd.f32 %v3592, %v3943
  %v4127 = vadd.f32 %v3593, %v3946
  %v4128 = vadd.f32 %v3594, %v3949
  %v4129 = vadd.f32 %v3595, %v3952
  %v4130 = vadd.f32 %v3596, %v3955
  %v4131 = vadd.f32 %v3597, %v3958
  %v4132 = vadd.f32 %v3598, %v3961
  %v4133 = vadd.f32 %v3599, %v3964
  %v4134 = vadd.f32 %v3600, %v3967
  %v4135 = vadd.f32 %v3601, %v3970
  %v4136 = vadd.f32 %v3602, %v3973
  %v4137 = vadd.f32 %v3603, %v3976
  %v4138 = vadd.f32 %v3604, %v3979
  %v4139 = vadd.f32 %v3605, %v3982
  %v4140 = vadd.f32 %v3606, %v3985
  %v4141 = vadd.f32 %v3607, %v3988
  %v4142 = vadd.f32 %v3608, %v3991
  %v4143 = vadd.f32 %v3609, %v3994
  %v4144 = vadd.f32 %v3610, %v3997
  %v4145 = vadd.f32 %v3611, %v4000
  %v4146 = vadd.f32 %v3612, %v4003
  %v4147 = vadd.f32 %v3613, %v4006
  %v4148 = vadd.f32 %v3614, %v4009
  %v4149 = vadd.f32 %v3615, %v4012
  %v4150 = vadd.f32 %v3616, %v4015
  %v4151 = vadd.f32 %v3617, %v4018
  %v4152 = vadd.f32 %v3618, %v4021
  %v4153 = vadd.f32 %v3619, %v4024
  %v4154 = vadd.f32 %v3620, %v4027
  %v4155 = vadd.f32 %v3621, %v4030
  %v4156 = vadd.f32 %v3622, %v4033
  %v4157 = vadd.f32 %v3623, %v4036
  %v4158 = vadd.f32 %v3624, %v4039
  %v4159 = vadd.f32 %v3625, %v4042
  %v4160 = vadd.f32 %v3626, %v4045
  %v4161 = vadd.f32 %v3627, %v4048
  %v4162 = vadd.f32 %v3628, %v4051
  %v4163 = vadd.f32 %v3629, %v4054
  %v4164 = vadd.f32 %v3630, %v4057
  %v4165 = vadd.f32 %v3631, %v4060
  %v4166 = vadd.f32 %v3632, %v4063
  %v4167 = vadd.f32 %v3633, %v4066
  %v4168 = vadd.f32 %v3634, %v4069
  %v4169 = vadd.f32 %v3635, %v4072
  %v4170 = vadd.f32 %v3636, %v4075
  %v4171 = vadd.f32 %v3637, %v4078
  %v4172 = vadd.f32 %v3638, %v4081
  %v4173 = vadd.f32 %v3639, %v4084
  %v4174 = vadd.f32 %v3640, %v4087
  %v4175 = vadd.f32 %v3641, %v4090
  %v4176 = vadd.f32 %v3642, %v4093
  %v4177 = vadd.f32 %v3643, %v4096
  %v4178 = vadd.f32 %v3644, %v4099
  %v4179 = vadd.f32 %v3645, %v4102
  %v4180 = vadd.f32 %v3646, %v4105
  %v4181 = vadd.f32 %v3647, %v4108
  %v4182 = vadd.f32 %v3648, %v4111
  %v4183 = vadd.f32 %v3649, %v4114
  %v4184 = vadd.f32 %v3650, %v4117
  %v4185 = vadd.f32 %v3651, %v4120
  %v4186 = vld [vmem:[%s8] sm:$0xff]
  %v4187 = vld [vmem:[%s8 + $0x8] sm:$0xff]
  %v4188 = vld [vmem:[%s8 + $0x10] sm:$0xff]
  %v4189 = vld [vmem:[%s8 + $0x18] sm:$0xff]
  %v4190 = vld [vmem:[%s8 + $0x20] sm:$0xff]
  %v4191 = vld [vmem:[%s8 + $0x28] sm:$0xff]
  %v4192 = vld [vmem:[%s8 + $0x30] sm:$0xff]
  %v4193 = vld [vmem:[%s8 + $0x38] sm:$0xff]
  %v4194 = vld [vmem:[%s8 + $0x40] sm:$0xff]
  %v4195 = vld [vmem:[%s8 + $0x48] sm:$0xff]
  %v4196 = vld [vmem:[%s8 + $0x50] sm:$0xff]
  %v4197 = vld [vmem:[%s8 + $0x58] sm:$0xff]
  %v4198 = vld [vmem:[%s8 + $0x60] sm:$0xff]
  %v4199 = vld [vmem:[%s8 + $0x68] sm:$0xff]
  %v4200 = vld [vmem:[%s8 + $0x70] sm:$0xff]
  %v4201 = vld [vmem:[%s8 + $0x78] sm:$0xff]
  %v4202 = vld [vmem:[%s8 + $0x80] sm:$0xff]
  %v4203 = vld [vmem:[%s8 + $0x88] sm:$0xff]
  %v4204 = vld [vmem:[%s8 + $0x90] sm:$0xff]
  %v4205 = vld [vmem:[%s8 + $0x98] sm:$0xff]
  %v4206 = vld [vmem:[%s8 + $0xa0] sm:$0xff]
  %v4207 = vld [vmem:[%s8 + $0xa8] sm:$0xff]
  %v4208 = vld [vmem:[%s8 + $0xb0] sm:$0xff]
  %v4209 = vld [vmem:[%s8 + $0xb8] sm:$0xff]
  %v4210 = vld [vmem:[%s8 + $0xc0] sm:$0xff]
  %v4211 = vld [vmem:[%s8 + $0xc8] sm:$0xff]
  %v4212 = vld [vmem:[%s8 + $0xd0] sm:$0xff]
  %v4213 = vld [vmem:[%s8 + $0xd8] sm:$0xff]
  %v4214 = vld [vmem:[%s8 + $0xe0] sm:$0xff]
  %v4215 = vld [vmem:[%s8 + $0xe8] sm:$0xff]
  %v4216 = vld [vmem:[%s8 + $0xf0] sm:$0xff]
  %v4217 = vld [vmem:[%s8 + $0xf8] sm:$0xff]
  %v4218 = vld [vmem:[%s8 + $0x100] sm:$0xff]
  %v4219 = vld [vmem:[%s8 + $0x108] sm:$0xff]
  %v4220 = vld [vmem:[%s8 + $0x110] sm:$0xff]
  %v4221 = vld [vmem:[%s8 + $0x118] sm:$0xff]
  %v4222 = vld [vmem:[%s8 + $0x120] sm:$0xff]
  %v4223 = vld [vmem:[%s8 + $0x128] sm:$0xff]
  %v4224 = vld [vmem:[%s8 + $0x130] sm:$0xff]
  %v4225 = vld [vmem:[%s8 + $0x138] sm:$0xff]
  %v4226 = vld [vmem:[%s8 + $0x140] sm:$0xff]
  %v4227 = vld [vmem:[%s8 + $0x148] sm:$0xff]
  %v4228 = vld [vmem:[%s8 + $0x150] sm:$0xff]
  %v4229 = vld [vmem:[%s8 + $0x158] sm:$0xff]
  %v4230 = vld [vmem:[%s8 + $0x160] sm:$0xff]
  %v4231 = vld [vmem:[%s8 + $0x168] sm:$0xff]
  %v4232 = vld [vmem:[%s8 + $0x170] sm:$0xff]
  %v4233 = vld [vmem:[%s8 + $0x178] sm:$0xff]
  %v4234 = vld [vmem:[%s8 + $0x180] sm:$0xff]
  %v4235 = vld [vmem:[%s8 + $0x188] sm:$0xff]
  %v4236 = vld [vmem:[%s8 + $0x190] sm:$0xff]
  %v4237 = vld [vmem:[%s8 + $0x198] sm:$0xff]
  %v4238 = vld [vmem:[%s8 + $0x1a0] sm:$0xff]
  %v4239 = vld [vmem:[%s8 + $0x1a8] sm:$0xff]
  %v4240 = vld [vmem:[%s8 + $0x1b0] sm:$0xff]
  %v4241 = vld [vmem:[%s8 + $0x1b8] sm:$0xff]
  %v4242 = vld [vmem:[%s8 + $0x1c0] sm:$0xff]
  %v4243 = vld [vmem:[%s8 + $0x1c8] sm:$0xff]
  %v4244 = vld [vmem:[%s8 + $0x1d0] sm:$0xff]
  %v4245 = vld [vmem:[%s8 + $0x1d8] sm:$0xff]
  %v4246 = vld [vmem:[%s8 + $0x1e0] sm:$0xff]
  %v4247 = vld [vmem:[%s8 + $0x1e8] sm:$0xff]
  %v4248 = vld [vmem:[%s8 + $0x1f0] sm:$0xff]
  %v4249 = vld [vmem:[%s8 + $0x1f8] sm:$0xff]
  %s4250 = scalar_lea.vmem %s9, 32
  %v4251 = vld [vmem:[%s4250] sm:$0x7]
  %v4253 = vsel %vm172, %v4186, 0
  %v4256 = vsel %vm172, %v4187, 0
  %v4259 = vsel %vm172, %v4188, 0
  %v4262 = vsel %vm172, %v4189, 0
  %v4265 = vsel %vm172, %v4190, 0
  %v4268 = vsel %vm172, %v4191, 0
  %v4271 = vsel %vm172, %v4192, 0
  %v4274 = vsel %vm172, %v4193, 0
  %v4277 = vsel %vm172, %v4194, 0
  %v4280 = vsel %vm172, %v4195, 0
  %v4283 = vsel %vm172, %v4196, 0
  %v4286 = vsel %vm172, %v4197, 0
  %v4289 = vsel %vm172, %v4198, 0
  %v4292 = vsel %vm172, %v4199, 0
  %v4295 = vsel %vm172, %v4200, 0
  %v4298 = vsel %vm172, %v4201, 0
  %v4301 = vsel %vm172, %v4202, 0
  %v4304 = vsel %vm172, %v4203, 0
  %v4307 = vsel %vm172, %v4204, 0
  %v4310 = vsel %vm172, %v4205, 0
  %v4313 = vsel %vm172, %v4206, 0
  %v4316 = vsel %vm172, %v4207, 0
  %v4319 = vsel %vm172, %v4208, 0
  %v4322 = vsel %vm172, %v4209, 0
  %v4325 = vsel %vm172, %v4210, 0
  %v4328 = vsel %vm172, %v4211, 0
  %v4331 = vsel %vm172, %v4212, 0
  %v4334 = vsel %vm172, %v4213, 0
  %v4337 = vsel %vm172, %v4214, 0
  %v4340 = vsel %vm172, %v4215, 0
  %v4343 = vsel %vm172, %v4216, 0
  %v4346 = vsel %vm172, %v4217, 0
  %v4349 = vsel %vm172, %v4218, 0
  %v4352 = vsel %vm172, %v4219, 0
  %v4355 = vsel %vm172, %v4220, 0
  %v4358 = vsel %vm172, %v4221, 0
  %v4361 = vsel %vm172, %v4222, 0
  %v4364 = vsel %vm172, %v4223, 0
  %v4367 = vsel %vm172, %v4224, 0
  %v4370 = vsel %vm172, %v4225, 0
  %v4373 = vsel %vm172, %v4226, 0
  %v4376 = vsel %vm172, %v4227, 0
  %v4379 = vsel %vm172, %v4228, 0
  %v4382 = vsel %vm172, %v4229, 0
  %v4385 = vsel %vm172, %v4230, 0
  %v4388 = vsel %vm172, %v4231, 0
  %v4391 = vsel %vm172, %v4232, 0
  %v4394 = vsel %vm172, %v4233, 0
  %v4397 = vsel %vm172, %v4234, 0
  %v4400 = vsel %vm172, %v4235, 0
  %v4403 = vsel %vm172, %v4236, 0
  %v4406 = vsel %vm172, %v4237, 0
  %v4409 = vsel %vm172, %v4238, 0
  %v4412 = vsel %vm172, %v4239, 0
  %v4415 = vsel %vm172, %v4240, 0
  %v4418 = vsel %vm172, %v4241, 0
  %v4421 = vsel %vm172, %v4242, 0
  %v4424 = vsel %vm172, %v4243, 0
  %v4427 = vsel %vm172, %v4244, 0
  %v4430 = vsel %vm172, %v4245, 0
  %v4433 = vsel %vm172, %v4246, 0
  %v4436 = vsel %vm172, %v4247, 0
  %v4439 = vsel %vm172, %v4248, 0
  %v4442 = vsel %vm172, %v4249, 0
  %v4445 = vsel %vm365, %v4251, 0
  %4447 = vmatpush.msra.mxu0 0.0
  %4448 = vmatpush.msra.mxu0 0.0
  %4449 = vmatpush.msra.mxu0 0.0
  %4450 = vmatpush.msra.mxu0 0.0
  %4451 = vmatpush.msra.mxu0 0.0
  %4452 = vmatpush.msra.mxu0 0.0
  %4453 = vmatpush.msra.mxu0 0.0
  %4454 = vmatpush.msra.mxu0 0.0
  %4455 = vmatpush.msra.mxu0 0.0
  %4456 = vmatpush.msra.mxu0 0.0
  %4457 = vmatpush.msra.mxu0 0.0
  %4458 = vmatpush.msra.mxu0 0.0
  %4459 = vmatpush.msra.mxu0 0.0
  %4460 = vmatpush.msra.mxu0 0.0
  %4461 = vmatpush.msra.mxu0 0.0
  %4462 = vmatpush.msra.mxu0 %v4445
  %4463 = vmatmul.f32.gmra.mxu0 %v4253
  %v4464 = vpop.f32.mrf.mxu0
  %v4465 = vadd.f32 0.0, %v4464
  %4466 = vmatmul.f32.gmra.mxu0 %v4256
  %v4467 = vpop.f32.mrf.mxu0
  %v4468 = vadd.f32 0.0, %v4467
  %4469 = vmatmul.f32.gmra.mxu0 %v4259
  %v4470 = vpop.f32.mrf.mxu0
  %v4471 = vadd.f32 0.0, %v4470
  %4472 = vmatmul.f32.gmra.mxu0 %v4262
  %v4473 = vpop.f32.mrf.mxu0
  %v4474 = vadd.f32 0.0, %v4473
  %4475 = vmatmul.f32.gmra.mxu0 %v4265
  %v4476 = vpop.f32.mrf.mxu0
  %v4477 = vadd.f32 0.0, %v4476
  %4478 = vmatmul.f32.gmra.mxu0 %v4268
  %v4479 = vpop.f32.mrf.mxu0
  %v4480 = vadd.f32 0.0, %v4479
  %4481 = vmatmul.f32.gmra.mxu0 %v4271
  %v4482 = vpop.f32.mrf.mxu0
  %v4483 = vadd.f32 0.0, %v4482
  %4484 = vmatmul.f32.gmra.mxu0 %v4274
  %v4485 = vpop.f32.mrf.mxu0
  %v4486 = vadd.f32 0.0, %v4485
  %4487 = vmatmul.f32.gmra.mxu0 %v4277
  %v4488 = vpop.f32.mrf.mxu0
  %v4489 = vadd.f32 0.0, %v4488
  %4490 = vmatmul.f32.gmra.mxu0 %v4280
  %v4491 = vpop.f32.mrf.mxu0
  %v4492 = vadd.f32 0.0, %v4491
  %4493 = vmatmul.f32.gmra.mxu0 %v4283
  %v4494 = vpop.f32.mrf.mxu0
  %v4495 = vadd.f32 0.0, %v4494
  %4496 = vmatmul.f32.gmra.mxu0 %v4286
  %v4497 = vpop.f32.mrf.mxu0
  %v4498 = vadd.f32 0.0, %v4497
  %4499 = vmatmul.f32.gmra.mxu0 %v4289
  %v4500 = vpop.f32.mrf.mxu0
  %v4501 = vadd.f32 0.0, %v4500
  %4502 = vmatmul.f32.gmra.mxu0 %v4292
  %v4503 = vpop.f32.mrf.mxu0
  %v4504 = vadd.f32 0.0, %v4503
  %4505 = vmatmul.f32.gmra.mxu0 %v4295
  %v4506 = vpop.f32.mrf.mxu0
  %v4507 = vadd.f32 0.0, %v4506
  %4508 = vmatmul.f32.gmra.mxu0 %v4298
  %v4509 = vpop.f32.mrf.mxu0
  %v4510 = vadd.f32 0.0, %v4509
  %4511 = vmatmul.f32.gmra.mxu0 %v4301
  %v4512 = vpop.f32.mrf.mxu0
  %v4513 = vadd.f32 0.0, %v4512
  %4514 = vmatmul.f32.gmra.mxu0 %v4304
  %v4515 = vpop.f32.mrf.mxu0
  %v4516 = vadd.f32 0.0, %v4515
  %4517 = vmatmul.f32.gmra.mxu0 %v4307
  %v4518 = vpop.f32.mrf.mxu0
  %v4519 = vadd.f32 0.0, %v4518
  %4520 = vmatmul.f32.gmra.mxu0 %v4310
  %v4521 = vpop.f32.mrf.mxu0
  %v4522 = vadd.f32 0.0, %v4521
  %4523 = vmatmul.f32.gmra.mxu0 %v4313
  %v4524 = vpop.f32.mrf.mxu0
  %v4525 = vadd.f32 0.0, %v4524
  %4526 = vmatmul.f32.gmra.mxu0 %v4316
  %v4527 = vpop.f32.mrf.mxu0
  %v4528 = vadd.f32 0.0, %v4527
  %4529 = vmatmul.f32.gmra.mxu0 %v4319
  %v4530 = vpop.f32.mrf.mxu0
  %v4531 = vadd.f32 0.0, %v4530
  %4532 = vmatmul.f32.gmra.mxu0 %v4322
  %v4533 = vpop.f32.mrf.mxu0
  %v4534 = vadd.f32 0.0, %v4533
  %4535 = vmatmul.f32.gmra.mxu0 %v4325
  %v4536 = vpop.f32.mrf.mxu0
  %v4537 = vadd.f32 0.0, %v4536
  %4538 = vmatmul.f32.gmra.mxu0 %v4328
  %v4539 = vpop.f32.mrf.mxu0
  %v4540 = vadd.f32 0.0, %v4539
  %4541 = vmatmul.f32.gmra.mxu0 %v4331
  %v4542 = vpop.f32.mrf.mxu0
  %v4543 = vadd.f32 0.0, %v4542
  %4544 = vmatmul.f32.gmra.mxu0 %v4334
  %v4545 = vpop.f32.mrf.mxu0
  %v4546 = vadd.f32 0.0, %v4545
  %4547 = vmatmul.f32.gmra.mxu0 %v4337
  %v4548 = vpop.f32.mrf.mxu0
  %v4549 = vadd.f32 0.0, %v4548
  %4550 = vmatmul.f32.gmra.mxu0 %v4340
  %v4551 = vpop.f32.mrf.mxu0
  %v4552 = vadd.f32 0.0, %v4551
  %4553 = vmatmul.f32.gmra.mxu0 %v4343
  %v4554 = vpop.f32.mrf.mxu0
  %v4555 = vadd.f32 0.0, %v4554
  %4556 = vmatmul.f32.gmra.mxu0 %v4346
  %v4557 = vpop.f32.mrf.mxu0
  %v4558 = vadd.f32 0.0, %v4557
  %4559 = vmatmul.f32.gmra.mxu0 %v4349
  %v4560 = vpop.f32.mrf.mxu0
  %v4561 = vadd.f32 0.0, %v4560
  %4562 = vmatmul.f32.gmra.mxu0 %v4352
  %v4563 = vpop.f32.mrf.mxu0
  %v4564 = vadd.f32 0.0, %v4563
  %4565 = vmatmul.f32.gmra.mxu0 %v4355
  %v4566 = vpop.f32.mrf.mxu0
  %v4567 = vadd.f32 0.0, %v4566
  %4568 = vmatmul.f32.gmra.mxu0 %v4358
  %v4569 = vpop.f32.mrf.mxu0
  %v4570 = vadd.f32 0.0, %v4569
  %4571 = vmatmul.f32.gmra.mxu0 %v4361
  %v4572 = vpop.f32.mrf.mxu0
  %v4573 = vadd.f32 0.0, %v4572
  %4574 = vmatmul.f32.gmra.mxu0 %v4364
  %v4575 = vpop.f32.mrf.mxu0
  %v4576 = vadd.f32 0.0, %v4575
  %4577 = vmatmul.f32.gmra.mxu0 %v4367
  %v4578 = vpop.f32.mrf.mxu0
  %v4579 = vadd.f32 0.0, %v4578
  %4580 = vmatmul.f32.gmra.mxu0 %v4370
  %v4581 = vpop.f32.mrf.mxu0
  %v4582 = vadd.f32 0.0, %v4581
  %4583 = vmatmul.f32.gmra.mxu0 %v4373
  %v4584 = vpop.f32.mrf.mxu0
  %v4585 = vadd.f32 0.0, %v4584
  %4586 = vmatmul.f32.gmra.mxu0 %v4376
  %v4587 = vpop.f32.mrf.mxu0
  %v4588 = vadd.f32 0.0, %v4587
  %4589 = vmatmul.f32.gmra.mxu0 %v4379
  %v4590 = vpop.f32.mrf.mxu0
  %v4591 = vadd.f32 0.0, %v4590
  %4592 = vmatmul.f32.gmra.mxu0 %v4382
  %v4593 = vpop.f32.mrf.mxu0
  %v4594 = vadd.f32 0.0, %v4593
  %4595 = vmatmul.f32.gmra.mxu0 %v4385
  %v4596 = vpop.f32.mrf.mxu0
  %v4597 = vadd.f32 0.0, %v4596
  %4598 = vmatmul.f32.gmra.mxu0 %v4388
  %v4599 = vpop.f32.mrf.mxu0
  %v4600 = vadd.f32 0.0, %v4599
  %4601 = vmatmul.f32.gmra.mxu0 %v4391
  %v4602 = vpop.f32.mrf.mxu0
  %v4603 = vadd.f32 0.0, %v4602
  %4604 = vmatmul.f32.gmra.mxu0 %v4394
  %v4605 = vpop.f32.mrf.mxu0
  %v4606 = vadd.f32 0.0, %v4605
  %4607 = vmatmul.f32.gmra.mxu0 %v4397
  %v4608 = vpop.f32.mrf.mxu0
  %v4609 = vadd.f32 0.0, %v4608
  %4610 = vmatmul.f32.gmra.mxu0 %v4400
  %v4611 = vpop.f32.mrf.mxu0
  %v4612 = vadd.f32 0.0, %v4611
  %4613 = vmatmul.f32.gmra.mxu0 %v4403
  %v4614 = vpop.f32.mrf.mxu0
  %v4615 = vadd.f32 0.0, %v4614
  %4616 = vmatmul.f32.gmra.mxu0 %v4406
  %v4617 = vpop.f32.mrf.mxu0
  %v4618 = vadd.f32 0.0, %v4617
  %4619 = vmatmul.f32.gmra.mxu0 %v4409
  %v4620 = vpop.f32.mrf.mxu0
  %v4621 = vadd.f32 0.0, %v4620
  %4622 = vmatmul.f32.gmra.mxu0 %v4412
  %v4623 = vpop.f32.mrf.mxu0
  %v4624 = vadd.f32 0.0, %v4623
  %4625 = vmatmul.f32.gmra.mxu0 %v4415
  %v4626 = vpop.f32.mrf.mxu0
  %v4627 = vadd.f32 0.0, %v4626
  %4628 = vmatmul.f32.gmra.mxu0 %v4418
  %v4629 = vpop.f32.mrf.mxu0
  %v4630 = vadd.f32 0.0, %v4629
  %4631 = vmatmul.f32.gmra.mxu0 %v4421
  %v4632 = vpop.f32.mrf.mxu0
  %v4633 = vadd.f32 0.0, %v4632
  %4634 = vmatmul.f32.gmra.mxu0 %v4424
  %v4635 = vpop.f32.mrf.mxu0
  %v4636 = vadd.f32 0.0, %v4635
  %4637 = vmatmul.f32.gmra.mxu0 %v4427
  %v4638 = vpop.f32.mrf.mxu0
  %v4639 = vadd.f32 0.0, %v4638
  %4640 = vmatmul.f32.gmra.mxu0 %v4430
  %v4641 = vpop.f32.mrf.mxu0
  %v4642 = vadd.f32 0.0, %v4641
  %4643 = vmatmul.f32.gmra.mxu0 %v4433
  %v4644 = vpop.f32.mrf.mxu0
  %v4645 = vadd.f32 0.0, %v4644
  %4646 = vmatmul.f32.gmra.mxu0 %v4436
  %v4647 = vpop.f32.mrf.mxu0
  %v4648 = vadd.f32 0.0, %v4647
  %4649 = vmatmul.f32.gmra.mxu0 %v4439
  %v4650 = vpop.f32.mrf.mxu0
  %v4651 = vadd.f32 0.0, %v4650
  %4652 = vmatmul.f32.gmra.mxu0 %v4442
  %v4653 = vpop.f32.mrf.mxu0
  %v4654 = vadd.f32 0.0, %v4653
  %4655 = vdwg.mxu0
  %v4656 = vadd.f32 %v4122, %v4465
  %v4657 = vadd.f32 %v4123, %v4468
  %v4658 = vadd.f32 %v4124, %v4471
  %v4659 = vadd.f32 %v4125, %v4474
  %v4660 = vadd.f32 %v4126, %v4477
  %v4661 = vadd.f32 %v4127, %v4480
  %v4662 = vadd.f32 %v4128, %v4483
  %v4663 = vadd.f32 %v4129, %v4486
  %v4664 = vadd.f32 %v4130, %v4489
  %v4665 = vadd.f32 %v4131, %v4492
  %v4666 = vadd.f32 %v4132, %v4495
  %v4667 = vadd.f32 %v4133, %v4498
  %v4668 = vadd.f32 %v4134, %v4501
  %v4669 = vadd.f32 %v4135, %v4504
  %v4670 = vadd.f32 %v4136, %v4507
  %v4671 = vadd.f32 %v4137, %v4510
  %v4672 = vadd.f32 %v4138, %v4513
  %v4673 = vadd.f32 %v4139, %v4516
  %v4674 = vadd.f32 %v4140, %v4519
  %v4675 = vadd.f32 %v4141, %v4522
  %v4676 = vadd.f32 %v4142, %v4525
  %v4677 = vadd.f32 %v4143, %v4528
  %v4678 = vadd.f32 %v4144, %v4531
  %v4679 = vadd.f32 %v4145, %v4534
  %v4680 = vadd.f32 %v4146, %v4537
  %v4681 = vadd.f32 %v4147, %v4540
  %v4682 = vadd.f32 %v4148, %v4543
  %v4683 = vadd.f32 %v4149, %v4546
  %v4684 = vadd.f32 %v4150, %v4549
  %v4685 = vadd.f32 %v4151, %v4552
  %v4686 = vadd.f32 %v4152, %v4555
  %v4687 = vadd.f32 %v4153, %v4558
  %v4688 = vadd.f32 %v4154, %v4561
  %v4689 = vadd.f32 %v4155, %v4564
  %v4690 = vadd.f32 %v4156, %v4567
  %v4691 = vadd.f32 %v4157, %v4570
  %v4692 = vadd.f32 %v4158, %v4573
  %v4693 = vadd.f32 %v4159, %v4576
  %v4694 = vadd.f32 %v4160, %v4579
  %v4695 = vadd.f32 %v4161, %v4582
  %v4696 = vadd.f32 %v4162, %v4585
  %v4697 = vadd.f32 %v4163, %v4588
  %v4698 = vadd.f32 %v4164, %v4591
  %v4699 = vadd.f32 %v4165, %v4594
  %v4700 = vadd.f32 %v4166, %v4597
  %v4701 = vadd.f32 %v4167, %v4600
  %v4702 = vadd.f32 %v4168, %v4603
  %v4703 = vadd.f32 %v4169, %v4606
  %v4704 = vadd.f32 %v4170, %v4609
  %v4705 = vadd.f32 %v4171, %v4612
  %v4706 = vadd.f32 %v4172, %v4615
  %v4707 = vadd.f32 %v4173, %v4618
  %v4708 = vadd.f32 %v4174, %v4621
  %v4709 = vadd.f32 %v4175, %v4624
  %v4710 = vadd.f32 %v4176, %v4627
  %v4711 = vadd.f32 %v4177, %v4630
  %v4712 = vadd.f32 %v4178, %v4633
  %v4713 = vadd.f32 %v4179, %v4636
  %v4714 = vadd.f32 %v4180, %v4639
  %v4715 = vadd.f32 %v4181, %v4642
  %v4716 = vadd.f32 %v4182, %v4645
  %v4717 = vadd.f32 %v4183, %v4648
  %v4718 = vadd.f32 %v4184, %v4651
  %v4719 = vadd.f32 %v4185, %v4654
  %vm4720 = vcmask 523264
  %v4721 = vsel %vm4720, %v4656, 0.0
  %v4722 = vsel %vm4720, %v4657, 0.0
  %v4723 = vadd.f32 %v4721, %v4722
  %v4724 = vsel %vm4720, %v4658, 0.0
  %v4725 = vadd.f32 %v4723, %v4724
  %v4726 = vsel %vm4720, %v4659, 0.0
  %v4727 = vadd.f32 %v4725, %v4726
  %v4728 = vsel %vm4720, %v4660, 0.0
  %v4729 = vadd.f32 %v4727, %v4728
  %v4730 = vsel %vm4720, %v4661, 0.0
  %v4731 = vadd.f32 %v4729, %v4730
  %v4732 = vsel %vm4720, %v4662, 0.0
  %v4733 = vadd.f32 %v4731, %v4732
  %v4734 = vsel %vm4720, %v4663, 0.0
  %v4735 = vadd.f32 %v4733, %v4734
  %v4736 = vsel %vm4720, %v4664, 0.0
  %v4737 = vadd.f32 %v4735, %v4736
  %v4738 = vsel %vm4720, %v4665, 0.0
  %v4739 = vadd.f32 %v4737, %v4738
  %v4740 = vsel %vm4720, %v4666, 0.0
  %v4741 = vadd.f32 %v4739, %v4740
  %v4742 = vsel %vm4720, %v4667, 0.0
  %v4743 = vadd.f32 %v4741, %v4742
  %v4744 = vsel %vm4720, %v4668, 0.0
  %v4745 = vadd.f32 %v4743, %v4744
  %v4746 = vsel %vm4720, %v4669, 0.0
  %v4747 = vadd.f32 %v4745, %v4746
  %v4748 = vsel %vm4720, %v4670, 0.0
  %v4749 = vadd.f32 %v4747, %v4748
  %v4750 = vsel %vm4720, %v4671, 0.0
  %v4751 = vadd.f32 %v4749, %v4750
  %v4752 = vsel %vm4720, %v4672, 0.0
  %v4753 = vadd.f32 %v4751, %v4752
  %v4754 = vsel %vm4720, %v4673, 0.0
  %v4755 = vadd.f32 %v4753, %v4754
  %v4756 = vsel %vm4720, %v4674, 0.0
  %v4757 = vadd.f32 %v4755, %v4756
  %v4758 = vsel %vm4720, %v4675, 0.0
  %v4759 = vadd.f32 %v4757, %v4758
  %v4760 = vsel %vm4720, %v4676, 0.0
  %v4761 = vadd.f32 %v4759, %v4760
  %v4762 = vsel %vm4720, %v4677, 0.0
  %v4763 = vadd.f32 %v4761, %v4762
  %v4764 = vsel %vm4720, %v4678, 0.0
  %v4765 = vadd.f32 %v4763, %v4764
  %v4766 = vsel %vm4720, %v4679, 0.0
  %v4767 = vadd.f32 %v4765, %v4766
  %v4768 = vsel %vm4720, %v4680, 0.0
  %v4769 = vadd.f32 %v4767, %v4768
  %v4770 = vsel %vm4720, %v4681, 0.0
  %v4771 = vadd.f32 %v4769, %v4770
  %v4772 = vsel %vm4720, %v4682, 0.0
  %v4773 = vadd.f32 %v4771, %v4772
  %v4774 = vsel %vm4720, %v4683, 0.0
  %v4775 = vadd.f32 %v4773, %v4774
  %v4776 = vsel %vm4720, %v4684, 0.0
  %v4777 = vadd.f32 %v4775, %v4776
  %v4778 = vsel %vm4720, %v4685, 0.0
  %v4779 = vadd.f32 %v4777, %v4778
  %v4780 = vsel %vm4720, %v4686, 0.0
  %v4781 = vadd.f32 %v4779, %v4780
  %v4782 = vsel %vm4720, %v4687, 0.0
  %v4783 = vadd.f32 %v4781, %v4782
  %v4784 = vsel %vm4720, %v4688, 0.0
  %v4785 = vadd.f32 %v4783, %v4784
  %v4786 = vsel %vm4720, %v4689, 0.0
  %v4787 = vadd.f32 %v4785, %v4786
  %v4788 = vsel %vm4720, %v4690, 0.0
  %v4789 = vadd.f32 %v4787, %v4788
  %v4790 = vsel %vm4720, %v4691, 0.0
  %v4791 = vadd.f32 %v4789, %v4790
  %v4792 = vsel %vm4720, %v4692, 0.0
  %v4793 = vadd.f32 %v4791, %v4792
  %v4794 = vsel %vm4720, %v4693, 0.0
  %v4795 = vadd.f32 %v4793, %v4794
  %v4796 = vsel %vm4720, %v4694, 0.0
  %v4797 = vadd.f32 %v4795, %v4796
  %v4798 = vsel %vm4720, %v4695, 0.0
  %v4799 = vadd.f32 %v4797, %v4798
  %v4800 = vsel %vm4720, %v4696, 0.0
  %v4801 = vadd.f32 %v4799, %v4800
  %v4802 = vsel %vm4720, %v4697, 0.0
  %v4803 = vadd.f32 %v4801, %v4802
  %v4804 = vsel %vm4720, %v4698, 0.0
  %v4805 = vadd.f32 %v4803, %v4804
  %v4806 = vsel %vm4720, %v4699, 0.0
  %v4807 = vadd.f32 %v4805, %v4806
  %v4808 = vsel %vm4720, %v4700, 0.0
  %v4809 = vadd.f32 %v4807, %v4808
  %v4810 = vsel %vm4720, %v4701, 0.0
  %v4811 = vadd.f32 %v4809, %v4810
  %v4812 = vsel %vm4720, %v4702, 0.0
  %v4813 = vadd.f32 %v4811, %v4812
  %v4814 = vsel %vm4720, %v4703, 0.0
  %v4815 = vadd.f32 %v4813, %v4814
  %v4816 = vsel %vm4720, %v4704, 0.0
  %v4817 = vadd.f32 %v4815, %v4816
  %v4818 = vsel %vm4720, %v4705, 0.0
  %v4819 = vadd.f32 %v4817, %v4818
  %v4820 = vsel %vm4720, %v4706, 0.0
  %v4821 = vadd.f32 %v4819, %v4820
  %v4822 = vsel %vm4720, %v4707, 0.0
  %v4823 = vadd.f32 %v4821, %v4822
  %v4824 = vsel %vm4720, %v4708, 0.0
  %v4825 = vadd.f32 %v4823, %v4824
  %v4826 = vsel %vm4720, %v4709, 0.0
  %v4827 = vadd.f32 %v4825, %v4826
  %v4828 = vsel %vm4720, %v4710, 0.0
  %v4829 = vadd.f32 %v4827, %v4828
  %v4830 = vsel %vm4720, %v4711, 0.0
  %v4831 = vadd.f32 %v4829, %v4830
  %v4832 = vsel %vm4720, %v4712, 0.0
  %v4833 = vadd.f32 %v4831, %v4832
  %v4834 = vsel %vm4720, %v4713, 0.0
  %v4835 = vadd.f32 %v4833, %v4834
  %v4836 = vsel %vm4720, %v4714, 0.0
  %v4837 = vadd.f32 %v4835, %v4836
  %v4838 = vsel %vm4720, %v4715, 0.0
  %v4839 = vadd.f32 %v4837, %v4838
  %v4840 = vsel %vm4720, %v4716, 0.0
  %v4841 = vadd.f32 %v4839, %v4840
  %v4842 = vsel %vm4720, %v4717, 0.0
  %v4843 = vadd.f32 %v4841, %v4842
  %v4844 = vsel %vm4720, %v4718, 0.0
  %v4845 = vadd.f32 %v4843, %v4844
  %v4846 = vsel %vm4720, %v4719, 0.0
  %v4847 = vadd.f32 %v4845, %v4846
  %v4848 = vrot.slane %v4847, 4
  %v4849 = vadd.f32 %v4847, %v4848
  %v4850 = vrot.slane %v4849, 2
  %v4851 = vadd.f32 %v4849, %v4850
  %v4852 = vrot.slane %v4851, 1
  %v4853 = vadd.f32 %v4851, %v4852
  %v4854 = vmul.f32 %v4853, 0.001953125
  %v4855 = vsub.f32 %v4656, %v4854
  %v4856 = vsub.f32 %v4657, %v4854
  %v4857 = vsub.f32 %v4658, %v4854
  %v4858 = vsub.f32 %v4659, %v4854
  %v4859 = vsub.f32 %v4660, %v4854
  %v4860 = vsub.f32 %v4661, %v4854
  %v4861 = vsub.f32 %v4662, %v4854
  %v4862 = vsub.f32 %v4663, %v4854
  %v4863 = vsub.f32 %v4664, %v4854
  %v4864 = vsub.f32 %v4665, %v4854
  %v4865 = vsub.f32 %v4666, %v4854
  %v4866 = vsub.f32 %v4667, %v4854
  %v4867 = vsub.f32 %v4668, %v4854
  %v4868 = vsub.f32 %v4669, %v4854
  %v4869 = vsub.f32 %v4670, %v4854
  %v4870 = vsub.f32 %v4671, %v4854
  %v4871 = vsub.f32 %v4672, %v4854
  %v4872 = vsub.f32 %v4673, %v4854
  %v4873 = vsub.f32 %v4674, %v4854
  %v4874 = vsub.f32 %v4675, %v4854
  %v4875 = vsub.f32 %v4676, %v4854
  %v4876 = vsub.f32 %v4677, %v4854
  %v4877 = vsub.f32 %v4678, %v4854
  %v4878 = vsub.f32 %v4679, %v4854
  %v4879 = vsub.f32 %v4680, %v4854
  %v4880 = vsub.f32 %v4681, %v4854
  %v4881 = vsub.f32 %v4682, %v4854
  %v4882 = vsub.f32 %v4683, %v4854
  %v4883 = vsub.f32 %v4684, %v4854
  %v4884 = vsub.f32 %v4685, %v4854
  %v4885 = vsub.f32 %v4686, %v4854
  %v4886 = vsub.f32 %v4687, %v4854
  %v4887 = vsub.f32 %v4688, %v4854
  %v4888 = vsub.f32 %v4689, %v4854
  %v4889 = vsub.f32 %v4690, %v4854
  %v4890 = vsub.f32 %v4691, %v4854
  %v4891 = vsub.f32 %v4692, %v4854
  %v4892 = vsub.f32 %v4693, %v4854
  %v4893 = vsub.f32 %v4694, %v4854
  %v4894 = vsub.f32 %v4695, %v4854
  %v4895 = vsub.f32 %v4696, %v4854
  %v4896 = vsub.f32 %v4697, %v4854
  %v4897 = vsub.f32 %v4698, %v4854
  %v4898 = vsub.f32 %v4699, %v4854
  %v4899 = vsub.f32 %v4700, %v4854
  %v4900 = vsub.f32 %v4701, %v4854
  %v4901 = vsub.f32 %v4702, %v4854
  %v4902 = vsub.f32 %v4703, %v4854
  %v4903 = vsub.f32 %v4704, %v4854
  %v4904 = vsub.f32 %v4705, %v4854
  %v4905 = vsub.f32 %v4706, %v4854
  %v4906 = vsub.f32 %v4707, %v4854
  %v4907 = vsub.f32 %v4708, %v4854
  %v4908 = vsub.f32 %v4709, %v4854
  %v4909 = vsub.f32 %v4710, %v4854
  %v4910 = vsub.f32 %v4711, %v4854
  %v4911 = vsub.f32 %v4712, %v4854
  %v4912 = vsub.f32 %v4713, %v4854
  %v4913 = vsub.f32 %v4714, %v4854
  %v4914 = vsub.f32 %v4715, %v4854
  %v4915 = vsub.f32 %v4716, %v4854
  %v4916 = vsub.f32 %v4717, %v4854
  %v4917 = vsub.f32 %v4718, %v4854
  %v4918 = vsub.f32 %v4719, %v4854
  %v4919 = vmul.f32 %v4855, %v4855
  %v4920 = vmul.f32 %v4856, %v4856
  %v4921 = vmul.f32 %v4857, %v4857
  %v4922 = vmul.f32 %v4858, %v4858
  %v4923 = vmul.f32 %v4859, %v4859
  %v4924 = vmul.f32 %v4860, %v4860
  %v4925 = vmul.f32 %v4861, %v4861
  %v4926 = vmul.f32 %v4862, %v4862
  %v4927 = vmul.f32 %v4863, %v4863
  %v4928 = vmul.f32 %v4864, %v4864
  %v4929 = vmul.f32 %v4865, %v4865
  %v4930 = vmul.f32 %v4866, %v4866
  %v4931 = vmul.f32 %v4867, %v4867
  %v4932 = vmul.f32 %v4868, %v4868
  %v4933 = vmul.f32 %v4869, %v4869
  %v4934 = vmul.f32 %v4870, %v4870
  %v4935 = vmul.f32 %v4871, %v4871
  %v4936 = vmul.f32 %v4872, %v4872
  %v4937 = vmul.f32 %v4873, %v4873
  %v4938 = vmul.f32 %v4874, %v4874
  %v4939 = vmul.f32 %v4875, %v4875
  %v4940 = vmul.f32 %v4876, %v4876
  %v4941 = vmul.f32 %v4877, %v4877
  %v4942 = vmul.f32 %v4878, %v4878
  %v4943 = vmul.f32 %v4879, %v4879
  %v4944 = vmul.f32 %v4880, %v4880
  %v4945 = vmul.f32 %v4881, %v4881
  %v4946 = vmul.f32 %v4882, %v4882
  %v4947 = vmul.f32 %v4883, %v4883
  %v4948 = vmul.f32 %v4884, %v4884
  %v4949 = vmul.f32 %v4885, %v4885
  %v4950 = vmul.f32 %v4886, %v4886
  %v4951 = vmul.f32 %v4887, %v4887
  %v4952 = vmul.f32 %v4888, %v4888
  %v4953 = vmul.f32 %v4889, %v4889
  %v4954 = vmul.f32 %v4890, %v4890
  %v4955 = vmul.f32 %v4891, %v4891
  %v4956 = vmul.f32 %v4892, %v4892
  %v4957 = vmul.f32 %v4893, %v4893
  %v4958 = vmul.f32 %v4894, %v4894
  %v4959 = vmul.f32 %v4895, %v4895
  %v4960 = vmul.f32 %v4896, %v4896
  %v4961 = vmul.f32 %v4897, %v4897
  %v4962 = vmul.f32 %v4898, %v4898
  %v4963 = vmul.f32 %v4899, %v4899
  %v4964 = vmul.f32 %v4900, %v4900
  %v4965 = vmul.f32 %v4901, %v4901
  %v4966 = vmul.f32 %v4902, %v4902
  %v4967 = vmul.f32 %v4903, %v4903
  %v4968 = vmul.f32 %v4904, %v4904
  %v4969 = vmul.f32 %v4905, %v4905
  %v4970 = vmul.f32 %v4906, %v4906
  %v4971 = vmul.f32 %v4907, %v4907
  %v4972 = vmul.f32 %v4908, %v4908
  %v4973 = vmul.f32 %v4909, %v4909
  %v4974 = vmul.f32 %v4910, %v4910
  %v4975 = vmul.f32 %v4911, %v4911
  %v4976 = vmul.f32 %v4912, %v4912
  %v4977 = vmul.f32 %v4913, %v4913
  %v4978 = vmul.f32 %v4914, %v4914
  %v4979 = vmul.f32 %v4915, %v4915
  %v4980 = vmul.f32 %v4916, %v4916
  %v4981 = vmul.f32 %v4917, %v4917
  %v4982 = vmul.f32 %v4918, %v4918
  %v4983 = vsel %vm4720, %v4919, 0.0
  %v4984 = vsel %vm4720, %v4920, 0.0
  %v4985 = vadd.f32 %v4983, %v4984
  %v4986 = vsel %vm4720, %v4921, 0.0
  %v4987 = vadd.f32 %v4985, %v4986
  %v4988 = vsel %vm4720, %v4922, 0.0
  %v4989 = vadd.f32 %v4987, %v4988
  %v4990 = vsel %vm4720, %v4923, 0.0
  %v4991 = vadd.f32 %v4989, %v4990
  %v4992 = vsel %vm4720, %v4924, 0.0
  %v4993 = vadd.f32 %v4991, %v4992
  %v4994 = vsel %vm4720, %v4925, 0.0
  %v4995 = vadd.f32 %v4993, %v4994
  %v4996 = vsel %vm4720, %v4926, 0.0
  %v4997 = vadd.f32 %v4995, %v4996
  %v4998 = vsel %vm4720, %v4927, 0.0
  %v4999 = vadd.f32 %v4997, %v4998
  %v5000 = vsel %vm4720, %v4928, 0.0
  %v5001 = vadd.f32 %v4999, %v5000
  %v5002 = vsel %vm4720, %v4929, 0.0
  %v5003 = vadd.f32 %v5001, %v5002
  %v5004 = vsel %vm4720, %v4930, 0.0
  %v5005 = vadd.f32 %v5003, %v5004
  %v5006 = vsel %vm4720, %v4931, 0.0
  %v5007 = vadd.f32 %v5005, %v5006
  %v5008 = vsel %vm4720, %v4932, 0.0
  %v5009 = vadd.f32 %v5007, %v5008
  %v5010 = vsel %vm4720, %v4933, 0.0
  %v5011 = vadd.f32 %v5009, %v5010
  %v5012 = vsel %vm4720, %v4934, 0.0
  %v5013 = vadd.f32 %v5011, %v5012
  %v5014 = vsel %vm4720, %v4935, 0.0
  %v5015 = vadd.f32 %v5013, %v5014
  %v5016 = vsel %vm4720, %v4936, 0.0
  %v5017 = vadd.f32 %v5015, %v5016
  %v5018 = vsel %vm4720, %v4937, 0.0
  %v5019 = vadd.f32 %v5017, %v5018
  %v5020 = vsel %vm4720, %v4938, 0.0
  %v5021 = vadd.f32 %v5019, %v5020
  %v5022 = vsel %vm4720, %v4939, 0.0
  %v5023 = vadd.f32 %v5021, %v5022
  %v5024 = vsel %vm4720, %v4940, 0.0
  %v5025 = vadd.f32 %v5023, %v5024
  %v5026 = vsel %vm4720, %v4941, 0.0
  %v5027 = vadd.f32 %v5025, %v5026
  %v5028 = vsel %vm4720, %v4942, 0.0
  %v5029 = vadd.f32 %v5027, %v5028
  %v5030 = vsel %vm4720, %v4943, 0.0
  %v5031 = vadd.f32 %v5029, %v5030
  %v5032 = vsel %vm4720, %v4944, 0.0
  %v5033 = vadd.f32 %v5031, %v5032
  %v5034 = vsel %vm4720, %v4945, 0.0
  %v5035 = vadd.f32 %v5033, %v5034
  %v5036 = vsel %vm4720, %v4946, 0.0
  %v5037 = vadd.f32 %v5035, %v5036
  %v5038 = vsel %vm4720, %v4947, 0.0
  %v5039 = vadd.f32 %v5037, %v5038
  %v5040 = vsel %vm4720, %v4948, 0.0
  %v5041 = vadd.f32 %v5039, %v5040
  %v5042 = vsel %vm4720, %v4949, 0.0
  %v5043 = vadd.f32 %v5041, %v5042
  %v5044 = vsel %vm4720, %v4950, 0.0
  %v5045 = vadd.f32 %v5043, %v5044
  %v5046 = vsel %vm4720, %v4951, 0.0
  %v5047 = vadd.f32 %v5045, %v5046
  %v5048 = vsel %vm4720, %v4952, 0.0
  %v5049 = vadd.f32 %v5047, %v5048
  %v5050 = vsel %vm4720, %v4953, 0.0
  %v5051 = vadd.f32 %v5049, %v5050
  %v5052 = vsel %vm4720, %v4954, 0.0
  %v5053 = vadd.f32 %v5051, %v5052
  %v5054 = vsel %vm4720, %v4955, 0.0
  %v5055 = vadd.f32 %v5053, %v5054
  %v5056 = vsel %vm4720, %v4956, 0.0
  %v5057 = vadd.f32 %v5055, %v5056
  %v5058 = vsel %vm4720, %v4957, 0.0
  %v5059 = vadd.f32 %v5057, %v5058
  %v5060 = vsel %vm4720, %v4958, 0.0
  %v5061 = vadd.f32 %v5059, %v5060
  %v5062 = vsel %vm4720, %v4959, 0.0
  %v5063 = vadd.f32 %v5061, %v5062
  %v5064 = vsel %vm4720, %v4960, 0.0
  %v5065 = vadd.f32 %v5063, %v5064
  %v5066 = vsel %vm4720, %v4961, 0.0
  %v5067 = vadd.f32 %v5065, %v5066
  %v5068 = vsel %vm4720, %v4962, 0.0
  %v5069 = vadd.f32 %v5067, %v5068
  %v5070 = vsel %vm4720, %v4963, 0.0
  %v5071 = vadd.f32 %v5069, %v5070
  %v5072 = vsel %vm4720, %v4964, 0.0
  %v5073 = vadd.f32 %v5071, %v5072
  %v5074 = vsel %vm4720, %v4965, 0.0
  %v5075 = vadd.f32 %v5073, %v5074
  %v5076 = vsel %vm4720, %v4966, 0.0
  %v5077 = vadd.f32 %v5075, %v5076
  %v5078 = vsel %vm4720, %v4967, 0.0
  %v5079 = vadd.f32 %v5077, %v5078
  %v5080 = vsel %vm4720, %v4968, 0.0
  %v5081 = vadd.f32 %v5079, %v5080
  %v5082 = vsel %vm4720, %v4969, 0.0
  %v5083 = vadd.f32 %v5081, %v5082
  %v5084 = vsel %vm4720, %v4970, 0.0
  %v5085 = vadd.f32 %v5083, %v5084
  %v5086 = vsel %vm4720, %v4971, 0.0
  %v5087 = vadd.f32 %v5085, %v5086
  %v5088 = vsel %vm4720, %v4972, 0.0
  %v5089 = vadd.f32 %v5087, %v5088
  %v5090 = vsel %vm4720, %v4973, 0.0
  %v5091 = vadd.f32 %v5089, %v5090
  %v5092 = vsel %vm4720, %v4974, 0.0
  %v5093 = vadd.f32 %v5091, %v5092
  %v5094 = vsel %vm4720, %v4975, 0.0
  %v5095 = vadd.f32 %v5093, %v5094
  %v5096 = vsel %vm4720, %v4976, 0.0
  %v5097 = vadd.f32 %v5095, %v5096
  %v5098 = vsel %vm4720, %v4977, 0.0
  %v5099 = vadd.f32 %v5097, %v5098
  %v5100 = vsel %vm4720, %v4978, 0.0
  %v5101 = vadd.f32 %v5099, %v5100
  %v5102 = vsel %vm4720, %v4979, 0.0
  %v5103 = vadd.f32 %v5101, %v5102
  %v5104 = vsel %vm4720, %v4980, 0.0
  %v5105 = vadd.f32 %v5103, %v5104
  %v5106 = vsel %vm4720, %v4981, 0.0
  %v5107 = vadd.f32 %v5105, %v5106
  %v5108 = vsel %vm4720, %v4982, 0.0
  %v5109 = vadd.f32 %v5107, %v5108
  %v5110 = vrot.slane %v5109, 4
  %v5111 = vadd.f32 %v5109, %v5110
  %v5112 = vrot.slane %v5111, 2
  %v5113 = vadd.f32 %v5111, %v5112
  %v5114 = vrot.slane %v5113, 1
  %v5115 = vadd.f32 %v5113, %v5114
  %v5116 = vmul.f32 %v5115, 0.001953125
  %v5117 = vld [vmem:[%s10] sm:$0x1]
  %v5118 = vadd.f32 %v5116, 1e-05
  %v5119 = vrsqrt.pop %v5118
  %v5120 = vmul.f32 %v5119, %v5118
  %v5121 = vmul.f32 %v5120, %v5119
  %v5122 = vmul.f32 0.5, %v5121
  %v5123 = vsub.f32 1.5, %v5122
  %v5124 = vmul.f32 %v5119, %v5123
  %vm5125 = vweird.f32 %v5118
  %vm5126 = vweird.f32 %v5119
  %vm5127 = vmor %vm5125, %vm5126
  %v5128 = vsel %vm5127, %v5119, %v5124
  %v5129 = vmul.f32 %v5117, %v5128
  %v5131 = vperm.slane %v5129, 0
  %v5133 = vmul.f32 %v4855, %v5131
  %v5134 = vmul.f32 %v4856, %v5131
  %v5135 = vmul.f32 %v4857, %v5131
  %v5136 = vmul.f32 %v4858, %v5131
  %v5137 = vmul.f32 %v4859, %v5131
  %v5138 = vmul.f32 %v4860, %v5131
  %v5139 = vmul.f32 %v4861, %v5131
  %v5140 = vmul.f32 %v4862, %v5131
  %v5141 = vmul.f32 %v4863, %v5131
  %v5142 = vmul.f32 %v4864, %v5131
  %v5143 = vmul.f32 %v4865, %v5131
  %v5144 = vmul.f32 %v4866, %v5131
  %v5145 = vmul.f32 %v4867, %v5131
  %v5146 = vmul.f32 %v4868, %v5131
  %v5147 = vmul.f32 %v4869, %v5131
  %v5148 = vmul.f32 %v4870, %v5131
  %v5149 = vmul.f32 %v4871, %v5131
  %v5150 = vmul.f32 %v4872, %v5131
  %v5151 = vmul.f32 %v4873, %v5131
  %v5152 = vmul.f32 %v4874, %v5131
  %v5153 = vmul.f32 %v4875, %v5131
  %v5154 = vmul.f32 %v4876, %v5131
  %v5155 = vmul.f32 %v4877, %v5131
  %v5156 = vmul.f32 %v4878, %v5131
  %v5157 = vmul.f32 %v4879, %v5131
  %v5158 = vmul.f32 %v4880, %v5131
  %v5159 = vmul.f32 %v4881, %v5131
  %v5160 = vmul.f32 %v4882, %v5131
  %v5161 = vmul.f32 %v4883, %v5131
  %v5162 = vmul.f32 %v4884, %v5131
  %v5163 = vmul.f32 %v4885, %v5131
  %v5164 = vmul.f32 %v4886, %v5131
  %v5165 = vmul.f32 %v4887, %v5131
  %v5166 = vmul.f32 %v4888, %v5131
  %v5167 = vmul.f32 %v4889, %v5131
  %v5168 = vmul.f32 %v4890, %v5131
  %v5169 = vmul.f32 %v4891, %v5131
  %v5170 = vmul.f32 %v4892, %v5131
  %v5171 = vmul.f32 %v4893, %v5131
  %v5172 = vmul.f32 %v4894, %v5131
  %v5173 = vmul.f32 %v4895, %v5131
  %v5174 = vmul.f32 %v4896, %v5131
  %v5175 = vmul.f32 %v4897, %v5131
  %v5176 = vmul.f32 %v4898, %v5131
  %v5177 = vmul.f32 %v4899, %v5131
  %v5178 = vmul.f32 %v4900, %v5131
  %v5179 = vmul.f32 %v4901, %v5131
  %v5180 = vmul.f32 %v4902, %v5131
  %v5181 = vmul.f32 %v4903, %v5131
  %v5182 = vmul.f32 %v4904, %v5131
  %v5183 = vmul.f32 %v4905, %v5131
  %v5184 = vmul.f32 %v4906, %v5131
  %v5185 = vmul.f32 %v4907, %v5131
  %v5186 = vmul.f32 %v4908, %v5131
  %v5187 = vmul.f32 %v4909, %v5131
  %v5188 = vmul.f32 %v4910, %v5131
  %v5189 = vmul.f32 %v4911, %v5131
  %v5190 = vmul.f32 %v4912, %v5131
  %v5191 = vmul.f32 %v4913, %v5131
  %v5192 = vmul.f32 %v4914, %v5131
  %v5193 = vmul.f32 %v4915, %v5131
  %v5194 = vmul.f32 %v4916, %v5131
  %v5195 = vmul.f32 %v4917, %v5131
  %v5196 = vmul.f32 %v4918, %v5131
  %v5197 = vld [vmem:[%s11] sm:$0x1]
  %v5199 = vperm.slane %v5197, 0
  %v5201 = vadd.f32 %v5133, %v5199
  %v5202 = vadd.f32 %v5134, %v5199
  %v5203 = vadd.f32 %v5135, %v5199
  %v5204 = vadd.f32 %v5136, %v5199
  %v5205 = vadd.f32 %v5137, %v5199
  %v5206 = vadd.f32 %v5138, %v5199
  %v5207 = vadd.f32 %v5139, %v5199
  %v5208 = vadd.f32 %v5140, %v5199
  %v5209 = vadd.f32 %v5141, %v5199
  %v5210 = vadd.f32 %v5142, %v5199
  %v5211 = vadd.f32 %v5143, %v5199
  %v5212 = vadd.f32 %v5144, %v5199
  %v5213 = vadd.f32 %v5145, %v5199
  %v5214 = vadd.f32 %v5146, %v5199
  %v5215 = vadd.f32 %v5147, %v5199
  %v5216 = vadd.f32 %v5148, %v5199
  %v5217 = vadd.f32 %v5149, %v5199
  %v5218 = vadd.f32 %v5150, %v5199
  %v5219 = vadd.f32 %v5151, %v5199
  %v5220 = vadd.f32 %v5152, %v5199
  %v5221 = vadd.f32 %v5153, %v5199
  %v5222 = vadd.f32 %v5154, %v5199
  %v5223 = vadd.f32 %v5155, %v5199
  %v5224 = vadd.f32 %v5156, %v5199
  %v5225 = vadd.f32 %v5157, %v5199
  %v5226 = vadd.f32 %v5158, %v5199
  %v5227 = vadd.f32 %v5159, %v5199
  %v5228 = vadd.f32 %v5160, %v5199
  %v5229 = vadd.f32 %v5161, %v5199
  %v5230 = vadd.f32 %v5162, %v5199
  %v5231 = vadd.f32 %v5163, %v5199
  %v5232 = vadd.f32 %v5164, %v5199
  %v5233 = vadd.f32 %v5165, %v5199
  %v5234 = vadd.f32 %v5166, %v5199
  %v5235 = vadd.f32 %v5167, %v5199
  %v5236 = vadd.f32 %v5168, %v5199
  %v5237 = vadd.f32 %v5169, %v5199
  %v5238 = vadd.f32 %v5170, %v5199
  %v5239 = vadd.f32 %v5171, %v5199
  %v5240 = vadd.f32 %v5172, %v5199
  %v5241 = vadd.f32 %v5173, %v5199
  %v5242 = vadd.f32 %v5174, %v5199
  %v5243 = vadd.f32 %v5175, %v5199
  %v5244 = vadd.f32 %v5176, %v5199
  %v5245 = vadd.f32 %v5177, %v5199
  %v5246 = vadd.f32 %v5178, %v5199
  %v5247 = vadd.f32 %v5179, %v5199
  %v5248 = vadd.f32 %v5180, %v5199
  %v5249 = vadd.f32 %v5181, %v5199
  %v5250 = vadd.f32 %v5182, %v5199
  %v5251 = vadd.f32 %v5183, %v5199
  %v5252 = vadd.f32 %v5184, %v5199
  %v5253 = vadd.f32 %v5185, %v5199
  %v5254 = vadd.f32 %v5186, %v5199
  %v5255 = vadd.f32 %v5187, %v5199
  %v5256 = vadd.f32 %v5188, %v5199
  %v5257 = vadd.f32 %v5189, %v5199
  %v5258 = vadd.f32 %v5190, %v5199
  %v5259 = vadd.f32 %v5191, %v5199
  %v5260 = vadd.f32 %v5192, %v5199
  %v5261 = vadd.f32 %v5193, %v5199
  %v5262 = vadd.f32 %v5194, %v5199
  %v5263 = vadd.f32 %v5195, %v5199
  %v5264 = vadd.f32 %v5196, %v5199
  %v5265 = vmax.f32 %v5201, 0.0
  %v5266 = vmax.f32 %v5202, 0.0
  %v5267 = vmax.f32 %v5203, 0.0
  %v5268 = vmax.f32 %v5204, 0.0
  %v5269 = vmax.f32 %v5205, 0.0
  %v5270 = vmax.f32 %v5206, 0.0
  %v5271 = vmax.f32 %v5207, 0.0
  %v5272 = vmax.f32 %v5208, 0.0
  %v5273 = vmax.f32 %v5209, 0.0
  %v5274 = vmax.f32 %v5210, 0.0
  %v5275 = vmax.f32 %v5211, 0.0
  %v5276 = vmax.f32 %v5212, 0.0
  %v5277 = vmax.f32 %v5213, 0.0
  %v5278 = vmax.f32 %v5214, 0.0
  %v5279 = vmax.f32 %v5215, 0.0
  %v5280 = vmax.f32 %v5216, 0.0
  %v5281 = vmax.f32 %v5217, 0.0
  %v5282 = vmax.f32 %v5218, 0.0
  %v5283 = vmax.f32 %v5219, 0.0
  %v5284 = vmax.f32 %v5220, 0.0
  %v5285 = vmax.f32 %v5221, 0.0
  %v5286 = vmax.f32 %v5222, 0.0
  %v5287 = vmax.f32 %v5223, 0.0
  %v5288 = vmax.f32 %v5224, 0.0
  %v5289 = vmax.f32 %v5225, 0.0
  %v5290 = vmax.f32 %v5226, 0.0
  %v5291 = vmax.f32 %v5227, 0.0
  %v5292 = vmax.f32 %v5228, 0.0
  %v5293 = vmax.f32 %v5229, 0.0
  %v5294 = vmax.f32 %v5230, 0.0
  %v5295 = vmax.f32 %v5231, 0.0
  %v5296 = vmax.f32 %v5232, 0.0
  %v5297 = vmax.f32 %v5233, 0.0
  %v5298 = vmax.f32 %v5234, 0.0
  %v5299 = vmax.f32 %v5235, 0.0
  %v5300 = vmax.f32 %v5236, 0.0
  %v5301 = vmax.f32 %v5237, 0.0
  %v5302 = vmax.f32 %v5238, 0.0
  %v5303 = vmax.f32 %v5239, 0.0
  %v5304 = vmax.f32 %v5240, 0.0
  %v5305 = vmax.f32 %v5241, 0.0
  %v5306 = vmax.f32 %v5242, 0.0
  %v5307 = vmax.f32 %v5243, 0.0
  %v5308 = vmax.f32 %v5244, 0.0
  %v5309 = vmax.f32 %v5245, 0.0
  %v5310 = vmax.f32 %v5246, 0.0
  %v5311 = vmax.f32 %v5247, 0.0
  %v5312 = vmax.f32 %v5248, 0.0
  %v5313 = vmax.f32 %v5249, 0.0
  %v5314 = vmax.f32 %v5250, 0.0
  %v5315 = vmax.f32 %v5251, 0.0
  %v5316 = vmax.f32 %v5252, 0.0
  %v5317 = vmax.f32 %v5253, 0.0
  %v5318 = vmax.f32 %v5254, 0.0
  %v5319 = vmax.f32 %v5255, 0.0
  %v5320 = vmax.f32 %v5256, 0.0
  %v5321 = vmax.f32 %v5257, 0.0
  %v5322 = vmax.f32 %v5258, 0.0
  %v5323 = vmax.f32 %v5259, 0.0
  %v5324 = vmax.f32 %v5260, 0.0
  %v5325 = vmax.f32 %v5261, 0.0
  %v5326 = vmax.f32 %v5262, 0.0
  %v5327 = vmax.f32 %v5263, 0.0
  %v5328 = vmax.f32 %v5264, 0.0
  %5329 = vst.msk [vmem:[%s12] sm:$0xff] %vm4720, %v5265
  %5330 = vst.msk [vmem:[%s12 + $0x8] sm:$0xff] %vm4720, %v5266
  %5331 = vst.msk [vmem:[%s12 + $0x10] sm:$0xff] %vm4720, %v5267
  %5332 = vst.msk [vmem:[%s12 + $0x18] sm:$0xff] %vm4720, %v5268
  %5333 = vst.msk [vmem:[%s12 + $0x20] sm:$0xff] %vm4720, %v5269
  %5334 = vst.msk [vmem:[%s12 + $0x28] sm:$0xff] %vm4720, %v5270
  %5335 = vst.msk [vmem:[%s12 + $0x30] sm:$0xff] %vm4720, %v5271
  %5336 = vst.msk [vmem:[%s12 + $0x38] sm:$0xff] %vm4720, %v5272
  %5337 = vst.msk [vmem:[%s12 + $0x40] sm:$0xff] %vm4720, %v5273
  %5338 = vst.msk [vmem:[%s12 + $0x48] sm:$0xff] %vm4720, %v5274
  %5339 = vst.msk [vmem:[%s12 + $0x50] sm:$0xff] %vm4720, %v5275
  %5340 = vst.msk [vmem:[%s12 + $0x58] sm:$0xff] %vm4720, %v5276
  %5341 = vst.msk [vmem:[%s12 + $0x60] sm:$0xff] %vm4720, %v5277
  %5342 = vst.msk [vmem:[%s12 + $0x68] sm:$0xff] %vm4720, %v5278
  %5343 = vst.msk [vmem:[%s12 + $0x70] sm:$0xff] %vm4720, %v5279
  %5344 = vst.msk [vmem:[%s12 + $0x78] sm:$0xff] %vm4720, %v5280
  %5345 = vst.msk [vmem:[%s12 + $0x80] sm:$0xff] %vm4720, %v5281
  %5346 = vst.msk [vmem:[%s12 + $0x88] sm:$0xff] %vm4720, %v5282
  %5347 = vst.msk [vmem:[%s12 + $0x90] sm:$0xff] %vm4720, %v5283
  %5348 = vst.msk [vmem:[%s12 + $0x98] sm:$0xff] %vm4720, %v5284
  %5349 = vst.msk [vmem:[%s12 + $0xa0] sm:$0xff] %vm4720, %v5285
  %5350 = vst.msk [vmem:[%s12 + $0xa8] sm:$0xff] %vm4720, %v5286
  %5351 = vst.msk [vmem:[%s12 + $0xb0] sm:$0xff] %vm4720, %v5287
  %5352 = vst.msk [vmem:[%s12 + $0xb8] sm:$0xff] %vm4720, %v5288
  %5353 = vst.msk [vmem:[%s12 + $0xc0] sm:$0xff] %vm4720, %v5289
  %5354 = vst.msk [vmem:[%s12 + $0xc8] sm:$0xff] %vm4720, %v5290
  %5355 = vst.msk [vmem:[%s12 + $0xd0] sm:$0xff] %vm4720, %v5291
  %5356 = vst.msk [vmem:[%s12 + $0xd8] sm:$0xff] %vm4720, %v5292
  %5357 = vst.msk [vmem:[%s12 + $0xe0] sm:$0xff] %vm4720, %v5293
  %5358 = vst.msk [vmem:[%s12 + $0xe8] sm:$0xff] %vm4720, %v5294
  %5359 = vst.msk [vmem:[%s12 + $0xf0] sm:$0xff] %vm4720, %v5295
  %5360 = vst.msk [vmem:[%s12 + $0xf8] sm:$0xff] %vm4720, %v5296
  %5361 = vst.msk [vmem:[%s12 + $0x100] sm:$0xff] %vm4720, %v5297
  %5362 = vst.msk [vmem:[%s12 + $0x108] sm:$0xff] %vm4720, %v5298
  %5363 = vst.msk [vmem:[%s12 + $0x110] sm:$0xff] %vm4720, %v5299
  %5364 = vst.msk [vmem:[%s12 + $0x118] sm:$0xff] %vm4720, %v5300
  %5365 = vst.msk [vmem:[%s12 + $0x120] sm:$0xff] %vm4720, %v5301
  %5366 = vst.msk [vmem:[%s12 + $0x128] sm:$0xff] %vm4720, %v5302
  %5367 = vst.msk [vmem:[%s12 + $0x130] sm:$0xff] %vm4720, %v5303
  %5368 = vst.msk [vmem:[%s12 + $0x138] sm:$0xff] %vm4720, %v5304
  %5369 = vst.msk [vmem:[%s12 + $0x140] sm:$0xff] %vm4720, %v5305
  %5370 = vst.msk [vmem:[%s12 + $0x148] sm:$0xff] %vm4720, %v5306
  %5371 = vst.msk [vmem:[%s12 + $0x150] sm:$0xff] %vm4720, %v5307
  %5372 = vst.msk [vmem:[%s12 + $0x158] sm:$0xff] %vm4720, %v5308
  %5373 = vst.msk [vmem:[%s12 + $0x160] sm:$0xff] %vm4720, %v5309
  %5374 = vst.msk [vmem:[%s12 + $0x168] sm:$0xff] %vm4720, %v5310
  %5375 = vst.msk [vmem:[%s12 + $0x170] sm:$0xff] %vm4720, %v5311
  %5376 = vst.msk [vmem:[%s12 + $0x178] sm:$0xff] %vm4720, %v5312
  %5377 = vst.msk [vmem:[%s12 + $0x180] sm:$0xff] %vm4720, %v5313
  %5378 = vst.msk [vmem:[%s12 + $0x188] sm:$0xff] %vm4720, %v5314
  %5379 = vst.msk [vmem:[%s12 + $0x190] sm:$0xff] %vm4720, %v5315
  %5380 = vst.msk [vmem:[%s12 + $0x198] sm:$0xff] %vm4720, %v5316
  %5381 = vst.msk [vmem:[%s12 + $0x1a0] sm:$0xff] %vm4720, %v5317
  %5382 = vst.msk [vmem:[%s12 + $0x1a8] sm:$0xff] %vm4720, %v5318
  %5383 = vst.msk [vmem:[%s12 + $0x1b0] sm:$0xff] %vm4720, %v5319
  %5384 = vst.msk [vmem:[%s12 + $0x1b8] sm:$0xff] %vm4720, %v5320
  %5385 = vst.msk [vmem:[%s12 + $0x1c0] sm:$0xff] %vm4720, %v5321
  %5386 = vst.msk [vmem:[%s12 + $0x1c8] sm:$0xff] %vm4720, %v5322
  %5387 = vst.msk [vmem:[%s12 + $0x1d0] sm:$0xff] %vm4720, %v5323
  %5388 = vst.msk [vmem:[%s12 + $0x1d8] sm:$0xff] %vm4720, %v5324
  %5389 = vst.msk [vmem:[%s12 + $0x1e0] sm:$0xff] %vm4720, %v5325
  %5390 = vst.msk [vmem:[%s12 + $0x1e8] sm:$0xff] %vm4720, %v5326
  %5391 = vst.msk [vmem:[%s12 + $0x1f0] sm:$0xff] %vm4720, %v5327
  %5392 = vst.msk [vmem:[%s12 + $0x1f8] sm:$0xff] %vm4720, %v5328
  // Predicated region
  $region50: #{tpu_custom_call.1} parent=0 // pred_check
    _
  $region51: #{tpu_custom_call.1} parent=0 // pred_check_branch
    %5394 = sbr.rel (0) target = $region53
  $region52: #{tpu_custom_call.1} parent=0 // pred_region
    _
  $region53: #{tpu_custom_call.1} parent=0 // pred_fallthru
    _
  // Predicated region
  $region54: #{tpu_custom_call.1} parent=0 // pred_check
    _
  $region55: #{tpu_custom_call.1} parent=0 // pred_check_branch
    %5396 = sbr.rel (0) target = $region57
  $region56: #{tpu_custom_call.1} parent=0 // pred_region
    _
  $region57: #{tpu_custom_call.1} parent=0 // pred_fallthru
    _

</llo_original>
